<compile_context>
chip_gen: v6e
topology: v6e:2x2x1
jax: 0.10.0
libtpu: 0.0.40
codegen_flags: <defaults>
</compile_context>

<pallas_src>
import functools

import jax
import jax.numpy as jnp
import numpy as np
from jax.experimental import pallas as pl
from jax.experimental.pallas import tpu as pltpu


# ------------------------------ Pallas kernel -------------------------------


def _rpa_kernel(x_ref, w1_ref, b1_ref, w2_ref, b2_ref, w3_ref, b3_ref,
                w4_ref, b4_ref, out_ref, pad3_ref, pad4_ref,
                *, W, C, Hb, compute_dtype):
    """Fused RPA forward for one (batch, row-band) grid point (NHWC)."""
    C4 = 4 * C
    band = pl.program_id(1)
    nbands = pl.num_programs(1)
    rows_in = Hb + 4      # x / z2 rows for this band (2-row halo, padded coords)
    rows_mid = Hb + 2     # conv3-output / attention rows (1-row halo)

    # Band start row inside the row-padded image (x_ref holds H+4 rows).
    r0 = pl.multiple_of(band * Hb, Hb)

    # ---- x band (f32), padded rows [r0, r0 + Hb + 4) -------------------------
    x_band = x_ref[0, pl.ds(r0, rows_in), :, :]               # (Hb+4, W, C)
    x_flat = x_band.reshape(rows_in * W, C)

    # ---- conv1 (1x1) + LeakyReLU(0.2), conv2 (1x1) + LeakyReLU(0.2) ----------
    z = jnp.dot(x_flat.astype(compute_dtype), w1_ref[...],
                preferred_element_type=jnp.float32) + b1_ref[...]
    z = jnp.where(z >= 0.0, z, 0.2 * z)
    z = jnp.dot(z.astype(compute_dtype), w2_ref[...],
                preferred_element_type=jnp.float32) + b2_ref[...]
    z = jnp.where(z >= 0.0, z, 0.2 * z)                       # (rows_in*W, 4C) f32

    # ---- stage z2 in a (Hb+4, W+2, 4C) column-halo buffer ---------------------
    # Zero only the 1-px column-halo strips; the interior is fully overwritten.
    pad3_ref[:, 0:1, :] = jnp.zeros((rows_in, 1, C4), compute_dtype)
    pad3_ref[:, W + 1:W + 2, :] = jnp.zeros((rows_in, 1, C4), compute_dtype)
    pad3_ref[:, 1:W + 1, :] = z.reshape(rows_in, W, C4).astype(compute_dtype)

    # conv3's SAME padding requires z2 == 0 outside the real image; only the
    # two outermost bands own such rows (band size >= 2 is enforced host-side).
    @pl.when(band == 0)
    def _():
        pad3_ref[0:2, :, :] = jnp.zeros((2, W + 2, C4), compute_dtype)

    @pl.when(band == nbands - 1)
    def _():
        pad3_ref[rows_in - 2:rows_in, :, :] = jnp.zeros((2, W + 2, C4),
                                                        compute_dtype)

    # ---- conv3 (3x3 SAME, 4C -> C): 9 accumulating shifted-window MXU dots ----
    acc = None
    for dy in range(3):
        for dx in range(3):
            lhs = pad3_ref[dy:dy + rows_mid, dx:dx + W, :].reshape(
                rows_mid * W, C4)
            t = jnp.dot(lhs, w3_ref[dy, dx, :, :],
                        preferred_element_type=jnp.float32)
            acc = t if acc is None else acc + t
    z3 = acc + b3_ref[...]                                    # (rows_mid*W, C) f32

    # ---- pixel attention + residual: att = x * sigmoid(z3) + x ---------------
    sig = pl.reciprocal(1.0 + jnp.exp(-z3), approx=True)      # EUP exp + rcp
    x_mid = x_band[1:1 + rows_mid, :, :].reshape(rows_mid * W, C)   # f32 residual
    att = x_mid * sig + x_mid    # f32; automatically 0 on the padded halo rows

    # ---- stage att in its own lane-dense C-wide column-halo buffer ------------
    pad4_ref[:, 0:1, :] = jnp.zeros((rows_mid, 1, C), compute_dtype)
    pad4_ref[:, W + 1:W + 2, :] = jnp.zeros((rows_mid, 1, C), compute_dtype)
    pad4_ref[:, 1:W + 1, :] = att.reshape(rows_mid, W, C).astype(compute_dtype)

    # ---- conv4 (3x3 SAME, C -> C): 9 accumulating dots + LeakyReLU ------------
    acc = None
    for dy in range(3):
        for dx in range(3):
            lhs = pad4_ref[dy:dy + Hb, dx:dx + W, :].reshape(Hb * W, C)
            t = jnp.dot(lhs, w4_ref[dy, dx, :, :],
                        preferred_element_type=jnp.float32)
            acc = t if acc is None else acc + t
    z4 = acc + b4_ref[...]
    out = jnp.where(z4 >= 0.0, z4, 0.2 * z4)
    out_ref[...] = out.reshape(1, Hb, W, C).astype(out_ref.dtype)


# ----------------------------- VMEM budgeting --------------------------------


def _vmem_bytes_estimate(H, W, C, Hb, cd_itemsize):
    """Rough per-core VMEM footprint for one band (blocks + scratch + live vals)."""
    C2, C4 = 2 * C, 4 * C
    f32 = 4
    rows_in, rows_mid = Hb + 4, Hb + 2
    x_block = 2 * (H + 4) * W * C * f32                   # resident input image
    out_block = 2 * Hb * W * C * f32                       # double-buffered out
    weights = 2 * (C * C2 + C2 * C4 + 9 * C4 * C + 9 * C * C) * cd_itemsize
    pad3 = rows_in * (W + 2) * C4 * cd_itemsize
    pad4 = rows_mid * (W + 2) * C * cd_itemsize
    live = (rows_in * W * C4 + 4 * rows_mid * W * C + 2 * Hb * W * C) * f32
    return x_block + out_block + weights + pad3 + pad4 + live


def _pick_band_rows(H, W, C, cd_itemsize, budget_bytes, max_band_rows):
    """Largest divisor of H (>= 2 unless H == 1) fitting the VMEM budget."""
    divisors = [d for d in range(1, H + 1)
                if H % d == 0 and (d >= 2 or d == H)]
    fitting = [d for d in divisors
               if d <= max_band_rows
               and _vmem_bytes_estimate(H, W, C, d, cd_itemsize) <= budget_bytes]
    if fitting:
        return max(fitting)
    return min(divisors)


# ------------------------------ Host wrappers --------------------------------


def rpa_pallas_nhwc(x_nhwc, params, *, compute_dtype=jnp.bfloat16,
                    max_band_rows=32, vmem_budget_bytes=24 * 1024 * 1024):
    """Fused RPA forward on NHWC input via one pallas_call over (N, row-bands)."""
    N, H, W, C = x_nhwc.shape
    C2, C4 = 2 * C, 4 * C
    itemsize = jnp.dtype(compute_dtype).itemsize

    Hb = _pick_band_rows(H, W, C, itemsize, vmem_budget_bytes, max_band_rows)
    num_bands = H // Hb

    # 2 zero rows top/bottom so every band reads a fixed-size (Hb+4)-row window
    # of x; conv3's zero padding on the 4C intermediate is applied in-kernel.
    x_pad = jnp.pad(x_nhwc.astype(jnp.float32), ((0, 0), (2, 2), (0, 0), (0, 0)))

    # Weights pre-cast to the MXU operand dtype; biases stay f32 (f32 epilogue).
    w1 = params["w1"].reshape(C, C2).astype(compute_dtype)
    w2 = params["w2"].reshape(C2, C4).astype(compute_dtype)
    w3 = params["w3"].astype(compute_dtype)           # (3, 3, 4C, C)  HWIO
    w4 = params["w4"].astype(compute_dtype)           # (3, 3,  C, C)  HWIO
    b1 = params["b1"].reshape(1, C2).astype(jnp.float32)
    b2 = params["b2"].reshape(1, C4).astype(jnp.float32)
    b3 = params["b3"].reshape(1, C).astype(jnp.float32)
    b4 = params["b4"].reshape(1, C).astype(jnp.float32)

    kernel = functools.partial(_rpa_kernel, W=W, C=C, Hb=Hb,
                               compute_dtype=compute_dtype)

    est = _vmem_bytes_estimate(H, W, C, Hb, itemsize)
    cp_kwargs = dict(dimension_semantics=("parallel", "parallel"))
    if est > vmem_budget_bytes:
        # No band size fit the budget: raise the scoped-VMEM limit explicitly.
        # TODO(synk): clamp to ~56 MiB on v7x (64 MiB physical) via get_tpu_info.
        cp_kwargs["vmem_limit_bytes"] = min(int(est * 3) // 2, 112 * 1024 * 1024)

    return pl.pallas_call(
        kernel,
        out_shape=jax.ShapeDtypeStruct((N, H, W, C), jnp.float32),
        grid_spec=pltpu.PrefetchScalarGridSpec(
            num_scalar_prefetch=0,
            grid=(N, num_bands),
            in_specs=[
                # Full row-padded x image stays VMEM-resident across the band
                # axis (constant block index), so bands need no overlapping DMA.
                pl.BlockSpec((1, H + 4, W, C), lambda n, b: (n, 0, 0, 0)),
                pl.BlockSpec((C, C2), lambda n, b: (0, 0)),               # w1
                pl.BlockSpec((1, C2), lambda n, b: (0, 0)),               # b1
                pl.BlockSpec((C2, C4), lambda n, b: (0, 0)),              # w2
                pl.BlockSpec((1, C4), lambda n, b: (0, 0)),               # b2
                pl.BlockSpec((3, 3, C4, C), lambda n, b: (0, 0, 0, 0)),   # w3
                pl.BlockSpec((1, C), lambda n, b: (0, 0)),                # b3
                pl.BlockSpec((3, 3, C, C), lambda n, b: (0, 0, 0, 0)),    # w4
                pl.BlockSpec((1, C), lambda n, b: (0, 0)),                # b4
            ],
            out_specs=pl.BlockSpec((1, Hb, W, C), lambda n, b: (n, b, 0, 0)),
            scratch_shapes=[
                pltpu.VMEM((Hb + 4, W + 2, C4), compute_dtype),  # z2 + col halo
                pltpu.VMEM((Hb + 2, W + 2, C), compute_dtype),   # att + col halo
            ],
        ),
        compiler_params=pltpu.CompilerParams(**cp_kwargs),
    )(x_pad, w1, b1, w2, b2, w3, b3, w4, b4)


def rpa_forward(x_nchw, params, **kwargs):
    """Forward pass matching RPA.forward (NCHW in/out like PyTorch)."""
    x = jnp.transpose(x_nchw, (0, 2, 3, 1))   # NCHW -> NHWC (channels on lanes)
    y = rpa_pallas_nhwc(x, params, **kwargs)
    return jnp.transpose(y, (0, 3, 1, 2))     # NHWC -> NCHW


# ---------------------------- Pure-JAX reference -----------------------------


def _conv_ref(x, w, b):
    y = jax.lax.conv_general_dilated(
        x, w, (1, 1), "SAME",
        dimension_numbers=("NHWC", "HWIO", "NHWC"),
        precision=jax.lax.Precision.HIGHEST)
    return y + b


def _lrelu_ref(x):
    return jnp.where(x >= 0.0, x, 0.2 * x)


def rpa_forward_ref(x_nchw, params):
    x = jnp.transpose(x_nchw, (0, 2, 3, 1))
    z = _lrelu_ref(_conv_ref(x, params["w1"], params["b1"]))
    z = _lrelu_ref(_conv_ref(z, params["w2"], params["b2"]))
    z = jax.nn.sigmoid(_conv_ref(z, params["w3"], params["b3"]))
    z = x * z + x
    z = _lrelu_ref(_conv_ref(z, params["w4"], params["b4"]))
    return jnp.transpose(z, (0, 3, 1, 2))


# ----------------------------------- Main ------------------------------------


def make_params(key, num_feat):
    """Deterministic synthetic init mimicking the module (kaiming, *0.1 on 1-3)."""
    C = num_feat
    shapes = {
        "w1": (1, 1, C, 2 * C), "w2": (1, 1, 2 * C, 4 * C),
        "w3": (3, 3, 4 * C, C), "w4": (3, 3, C, C),
    }
    scales = {"w1": 0.1, "w2": 0.1, "w3": 0.1, "w4": 1.0}
    params = {}
    for i, name in enumerate(["w1", "w2", "w3", "w4"], start=1):
        key, kw, kb = jax.random.split(key, 3)
        kh, kw_, ci, co = shapes[name]
        fan_in = kh * kw_ * ci
        std = np.sqrt(2.0 / fan_in)
        params[name] = scales[name] * std * jax.random.normal(
            kw, shapes[name], jnp.float32)
        # PyTorch-like bias magnitudes (also makes padding/halo bugs visible).
        params[f"b{i}"] = 0.3 * jax.random.normal(kb, (co,), jnp.float32)
    return params


if __name__ == "__main__":
    num_feat = 8
    N, H, W = 2, 16, 16

    key = jax.random.PRNGKey(0)
    kx, kp = jax.random.split(key)
    x = jax.random.normal(kx, (N, num_feat, H, W), jnp.float32)  # NCHW like PyTorch
    params = make_params(kp, num_feat)

    ref = rpa_forward_ref(x, params)

    # f32 MXU-operand path, multi-band (first / middle / last bands exercised).
    # Tolerance covers the approximate EUP reciprocal used inside the sigmoid.
    out_f32_bands = jax.block_until_ready(
        rpa_forward(x, params, compute_dtype=jnp.float32, max_band_rows=4))
    np.testing.assert_allclose(np.asarray(out_f32_bands), np.asarray(ref),
                               rtol=1e-2, atol=1e-2)

    # f32 path, single band (Hb == H): identical math, no internal band halos.
    out_f32_single = jax.block_until_ready(
        rpa_forward(x, params, compute_dtype=jnp.float32, max_band_rows=16))
    np.testing.assert_allclose(np.asarray(out_f32_single), np.asarray(ref),
                               rtol=1e-2, atol=1e-2)
    # Banded vs single-band must agree tightly -> validates the halo handling.
    np.testing.assert_allclose(np.asarray(out_f32_bands),
                               np.asarray(out_f32_single),
                               rtol=1e-4, atol=1e-4)

    # Production path: bf16 MXU operands, f32 accumulate + f32 epilogues.
    out_bf16 = jax.block_until_ready(rpa_forward(x, params, max_band_rows=8))
    np.testing.assert_allclose(np.asarray(out_bf16), np.asarray(ref),
                               rtol=5e-2, atol=5e-2)

    assert out_bf16.shape == x.shape and out_bf16.dtype == x.dtype
    print("KERNEL_OK")
</pallas_src>

<mosaic_0001>
module attributes {stable_mosaic.version = 11 : i64} {
  func.func @_rpa_kernel(%arg0: i32, %arg1: i32, %arg2: memref<1x20x16x8xf32, #tpu.memory_space<vmem>>, %arg3: memref<8x16xf32, #tpu.memory_space<vmem>>, %arg4: memref<1x16xf32, #tpu.memory_space<vmem>>, %arg5: memref<16x32xf32, #tpu.memory_space<vmem>>, %arg6: memref<1x32xf32, #tpu.memory_space<vmem>>, %arg7: memref<3x3x32x8xf32, #tpu.memory_space<vmem>>, %arg8: memref<1x8xf32, #tpu.memory_space<vmem>>, %arg9: memref<3x3x8x8xf32, #tpu.memory_space<vmem>>, %arg10: memref<1x8xf32, #tpu.memory_space<vmem>>, %arg11: memref<1x4x16x8xf32, #tpu.memory_space<vmem>>, %arg12: memref<8x18x32xf32, #tpu.memory_space<vmem>>, %arg13: memref<6x18x8xf32, #tpu.memory_space<vmem>>) attributes {dimension_semantics = [#tpu.dimension_semantics<parallel>, #tpu.dimension_semantics<parallel>], iteration_bounds = array<i64: 2, 4>, scalar_prefetch = 0 : i64, scratch_operands = 2 : i64, tpu.core_type = #tpu.core_type<tc>, window_params = [{transform_indices = @transform_0, window_bounds = array<i64: 1, 20, 16, 8>}, {pipeline_mode = #tpu.pipeline_mode<synchronous>, transform_indices = @transform_1, window_bounds = array<i64: 8, 16>}, {pipeline_mode = #tpu.pipeline_mode<synchronous>, transform_indices = @transform_2, window_bounds = array<i64: 1, 16>}, {pipeline_mode = #tpu.pipeline_mode<synchronous>, transform_indices = @transform_3, window_bounds = array<i64: 16, 32>}, {pipeline_mode = #tpu.pipeline_mode<synchronous>, transform_indices = @transform_4, window_bounds = array<i64: 1, 32>}, {pipeline_mode = #tpu.pipeline_mode<synchronous>, transform_indices = @transform_5, window_bounds = array<i64: 3, 3, 32, 8>}, {pipeline_mode = #tpu.pipeline_mode<synchronous>, transform_indices = @transform_6, window_bounds = array<i64: 1, 8>}, {pipeline_mode = #tpu.pipeline_mode<synchronous>, transform_indices = @transform_7, window_bounds = array<i64: 3, 3, 8, 8>}, {pipeline_mode = #tpu.pipeline_mode<synchronous>, transform_indices = @transform_8, window_bounds = array<i64: 1, 8>}, {transform_indices = @transform_9, window_bounds = array<i64: 1, 4, 16, 8>}]} {
    %c4_i32 = arith.constant 4 : i32
    %0 = arith.muli %arg1, %c4_i32 : i32
    %1 = tpu.assume_multiple %0, 4 : i32
    %c0 = arith.constant 0 : index
    %2 = arith.index_cast %1 : i32 to index
    %c0_0 = arith.constant 0 : index
    %c0_1 = arith.constant 0 : index
    %3 = vector.load %arg2[%c0, %2, %c0_0, %c0_1] : memref<1x20x16x8xf32, #tpu.memory_space<vmem>>, vector<1x8x16x8xf32>
    %4 = vector.shape_cast %3 : vector<1x8x16x8xf32> to vector<8x16x8xf32>
    %5 = vector.shape_cast %4 : vector<8x16x8xf32> to vector<128x8xf32>
    %c0_2 = arith.constant 0 : index
    %c0_3 = arith.constant 0 : index
    %6 = vector.load %arg3[%c0_2, %c0_3] : memref<8x16xf32, #tpu.memory_space<vmem>>, vector<8x16xf32>
    %cst = arith.constant dense<0.000000e+00> : vector<128x16xf32>
    %7 = tpu.matmul %5, %6, %cst {dimension_numbers = #tpu.dot_dimension_numbers<[1], [0], [0], [1], [0, 0, 1, 1], [], []>} : vector<128x8xf32>, vector<8x16xf32>, vector<128x16xf32> -> vector<128x16xf32>
    %c0_4 = arith.constant 0 : index
    %c0_5 = arith.constant 0 : index
    %8 = vector.load %arg4[%c0_4, %c0_5] : memref<1x16xf32, #tpu.memory_space<vmem>>, vector<1x16xf32>
    %9 = vector.broadcast %8 : vector<1x16xf32> to vector<128x16xf32>
    %10 = arith.addf %7, %9 : vector<128x16xf32>
    %cst_6 = arith.constant 0.000000e+00 : f32
    %11 = vector.broadcast %cst_6 : f32 to vector<128x16xf32>
    %12 = arith.cmpf oge, %10, %11 : vector<128x16xf32>
    %cst_7 = arith.constant 2.000000e-01 : f32
    %13 = vector.broadcast %cst_7 : f32 to vector<128x16xf32>
    %14 = arith.mulf %13, %10 : vector<128x16xf32>
    %15 = arith.select %12, %10, %14 : vector<128x16xi1>, vector<128x16xf32>
    %c0_8 = arith.constant 0 : index
    %c0_9 = arith.constant 0 : index
    %16 = vector.load %arg5[%c0_8, %c0_9] : memref<16x32xf32, #tpu.memory_space<vmem>>, vector<16x32xf32>
    %cst_10 = arith.constant dense<0.000000e+00> : vector<128x32xf32>
    %17 = tpu.matmul %15, %16, %cst_10 {dimension_numbers = #tpu.dot_dimension_numbers<[1], [0], [0], [1], [0, 0, 1, 1], [], []>} : vector<128x16xf32>, vector<16x32xf32>, vector<128x32xf32> -> vector<128x32xf32>
    %c0_11 = arith.constant 0 : index
    %c0_12 = arith.constant 0 : index
    %18 = vector.load %arg6[%c0_11, %c0_12] : memref<1x32xf32, #tpu.memory_space<vmem>>, vector<1x32xf32>
    %19 = vector.broadcast %18 : vector<1x32xf32> to vector<128x32xf32>
    %20 = arith.addf %17, %19 : vector<128x32xf32>
    %cst_13 = arith.constant 0.000000e+00 : f32
    %21 = vector.broadcast %cst_13 : f32 to vector<128x32xf32>
    %22 = arith.cmpf oge, %20, %21 : vector<128x32xf32>
    %cst_14 = arith.constant 2.000000e-01 : f32
    %23 = vector.broadcast %cst_14 : f32 to vector<128x32xf32>
    %24 = arith.mulf %23, %20 : vector<128x32xf32>
    %25 = arith.select %22, %20, %24 : vector<128x32xi1>, vector<128x32xf32>
    %cst_15 = arith.constant 0.000000e+00 : f32
    %26 = vector.broadcast %cst_15 : f32 to vector<8x1x32xf32>
    %c0_16 = arith.constant 0 : index
    %c0_17 = arith.constant 0 : index
    %c0_18 = arith.constant 0 : index
    %27 = vector.load %arg12[%c0_16, %c0_17, %c0_18] : memref<8x18x32xf32, #tpu.memory_space<vmem>>, vector<8x1x32xf32>
    tpu.vector_store %arg12[%c0_16, %c0_17, %c0_18], %26 {strides = array<i32>} : memref<8x18x32xf32, #tpu.memory_space<vmem>>, vector<8x1x32xf32>,
    %cst_19 = arith.constant 0.000000e+00 : f32
    %28 = vector.broadcast %cst_19 : f32 to vector<8x1x32xf32>
    %c0_20 = arith.constant 0 : index
    %c17 = arith.constant 17 : index
    %c0_21 = arith.constant 0 : index
    %29 = vector.load %arg12[%c0_20, %c17, %c0_21] : memref<8x18x32xf32, #tpu.memory_space<vmem>>, vector<8x1x32xf32>
    tpu.vector_store %arg12[%c0_20, %c17, %c0_21], %28 {strides = array<i32>} : memref<8x18x32xf32, #tpu.memory_space<vmem>>, vector<8x1x32xf32>,
    %30 = vector.shape_cast %25 : vector<128x32xf32> to vector<8x16x32xf32>
    %c0_22 = arith.constant 0 : index
    %c1 = arith.constant 1 : index
    %c0_23 = arith.constant 0 : index
    %31 = vector.load %arg12[%c0_22, %c1, %c0_23] : memref<8x18x32xf32, #tpu.memory_space<vmem>>, vector<8x16x32xf32>
    tpu.vector_store %arg12[%c0_22, %c1, %c0_23], %30 {strides = array<i32>} : memref<8x18x32xf32, #tpu.memory_space<vmem>>, vector<8x16x32xf32>,
    %c0_i32 = arith.constant 0 : i32
    %32 = arith.cmpi eq, %arg1, %c0_i32 : i32
    %33 = arith.extui %32 : i1 to i32
    %c0_i32_24 = arith.constant 0 : i32
    %34 = arith.cmpi ne, %33, %c0_i32_24 : i32
    scf.if %34 {
      %cst_192 = arith.constant 0.000000e+00 : f32
      %173 = vector.broadcast %cst_192 : f32 to vector<2x18x32xf32>
      %c0_193 = arith.constant 0 : index
      %c0_194 = arith.constant 0 : index
      %c0_195 = arith.constant 0 : index
      %174 = vector.load %arg12[%c0_193, %c0_194, %c0_195] : memref<8x18x32xf32, #tpu.memory_space<vmem>>, vector<2x18x32xf32>
      tpu.vector_store %arg12[%c0_193, %c0_194, %c0_195], %173 {strides = array<i32>} : memref<8x18x32xf32, #tpu.memory_space<vmem>>, vector<2x18x32xf32>,
    } else {
    }
    %c3_i32 = arith.constant 3 : i32
    %35 = arith.cmpi eq, %arg1, %c3_i32 : i32
    %36 = arith.extui %35 : i1 to i32
    %c0_i32_25 = arith.constant 0 : i32
    %37 = arith.cmpi ne, %36, %c0_i32_25 : i32
    scf.if %37 {
      %cst_192 = arith.constant 0.000000e+00 : f32
      %173 = vector.broadcast %cst_192 : f32 to vector<2x18x32xf32>
      %c6 = arith.constant 6 : index
      %c0_193 = arith.constant 0 : index
      %c0_194 = arith.constant 0 : index
      %174 = vector.load %arg12[%c6, %c0_193, %c0_194] : memref<8x18x32xf32, #tpu.memory_space<vmem>>, vector<2x18x32xf32>
      tpu.vector_store %arg12[%c6, %c0_193, %c0_194], %173 {strides = array<i32>} : memref<8x18x32xf32, #tpu.memory_space<vmem>>, vector<2x18x32xf32>,
    } else {
    }
    %c0_26 = arith.constant 0 : index
    %c0_27 = arith.constant 0 : index
    %c0_28 = arith.constant 0 : index
    %38 = vector.load %arg12[%c0_26, %c0_27, %c0_28] : memref<8x18x32xf32, #tpu.memory_space<vmem>>, vector<6x16x32xf32>
    %39 = vector.shape_cast %38 : vector<6x16x32xf32> to vector<96x32xf32>
    %c0_29 = arith.constant 0 : index
    %c0_30 = arith.constant 0 : index
    %c0_31 = arith.constant 0 : index
    %c0_32 = arith.constant 0 : index
    %40 = vector.load %arg7[%c0_29, %c0_30, %c0_31, %c0_32] : memref<3x3x32x8xf32, #tpu.memory_space<vmem>>, vector<1x1x32x8xf32>
    %41 = vector.shape_cast %40 : vector<1x1x32x8xf32> to vector<32x8xf32>
    %cst_33 = arith.constant dense<0.000000e+00> : vector<96x8xf32>
    %42 = tpu.matmul %39, %41, %cst_33 {dimension_numbers = #tpu.dot_dimension_numbers<[1], [0], [0], [1], [0, 0, 1, 1], [], []>} : vector<96x32xf32>, vector<32x8xf32>, vector<96x8xf32> -> vector<96x8xf32>
    %c0_34 = arith.constant 0 : index
    %c1_35 = arith.constant 1 : index
    %c0_36 = arith.constant 0 : index
    %43 = vector.load %arg12[%c0_34, %c1_35, %c0_36] : memref<8x18x32xf32, #tpu.memory_space<vmem>>, vector<6x16x32xf32>
    %44 = vector.shape_cast %43 : vector<6x16x32xf32> to vector<96x32xf32>
    %c0_37 = arith.constant 0 : index
    %c1_38 = arith.constant 1 : index
    %c0_39 = arith.constant 0 : index
    %c0_40 = arith.constant 0 : index
    %45 = vector.load %arg7[%c0_37, %c1_38, %c0_39, %c0_40] : memref<3x3x32x8xf32, #tpu.memory_space<vmem>>, vector<1x1x32x8xf32>
    %46 = vector.shape_cast %45 : vector<1x1x32x8xf32> to vector<32x8xf32>
    %cst_41 = arith.constant dense<0.000000e+00> : vector<96x8xf32>
    %47 = tpu.matmul %44, %46, %cst_41 {dimension_numbers = #tpu.dot_dimension_numbers<[1], [0], [0], [1], [0, 0, 1, 1], [], []>} : vector<96x32xf32>, vector<32x8xf32>, vector<96x8xf32> -> vector<96x8xf32>
    %48 = arith.addf %42, %47 : vector<96x8xf32>
    %c0_42 = arith.constant 0 : index
    %c2 = arith.constant 2 : index
    %c0_43 = arith.constant 0 : index
    %49 = vector.load %arg12[%c0_42, %c2, %c0_43] : memref<8x18x32xf32, #tpu.memory_space<vmem>>, vector<6x16x32xf32>
    %50 = vector.shape_cast %49 : vector<6x16x32xf32> to vector<96x32xf32>
    %c0_44 = arith.constant 0 : index
    %c2_45 = arith.constant 2 : index
    %c0_46 = arith.constant 0 : index
    %c0_47 = arith.constant 0 : index
    %51 = vector.load %arg7[%c0_44, %c2_45, %c0_46, %c0_47] : memref<3x3x32x8xf32, #tpu.memory_space<vmem>>, vector<1x1x32x8xf32>
    %52 = vector.shape_cast %51 : vector<1x1x32x8xf32> to vector<32x8xf32>
    %cst_48 = arith.constant dense<0.000000e+00> : vector<96x8xf32>
    %53 = tpu.matmul %50, %52, %cst_48 {dimension_numbers = #tpu.dot_dimension_numbers<[1], [0], [0], [1], [0, 0, 1, 1], [], []>} : vector<96x32xf32>, vector<32x8xf32>, vector<96x8xf32> -> vector<96x8xf32>
    %54 = arith.addf %48, %53 : vector<96x8xf32>
    %c1_49 = arith.constant 1 : index
    %c0_50 = arith.constant 0 : index
    %c0_51 = arith.constant 0 : index
    %55 = vector.load %arg12[%c1_49, %c0_50, %c0_51] : memref<8x18x32xf32, #tpu.memory_space<vmem>>, vector<6x16x32xf32>
    %56 = vector.shape_cast %55 : vector<6x16x32xf32> to vector<96x32xf32>
    %c1_52 = arith.constant 1 : index
    %c0_53 = arith.constant 0 : index
    %c0_54 = arith.constant 0 : index
    %c0_55 = arith.constant 0 : index
    %57 = vector.load %arg7[%c1_52, %c0_53, %c0_54, %c0_55] : memref<3x3x32x8xf32, #tpu.memory_space<vmem>>, vector<1x1x32x8xf32>
    %58 = vector.shape_cast %57 : vector<1x1x32x8xf32> to vector<32x8xf32>
    %cst_56 = arith.constant dense<0.000000e+00> : vector<96x8xf32>
    %59 = tpu.matmul %56, %58, %cst_56 {dimension_numbers = #tpu.dot_dimension_numbers<[1], [0], [0], [1], [0, 0, 1, 1], [], []>} : vector<96x32xf32>, vector<32x8xf32>, vector<96x8xf32> -> vector<96x8xf32>
    %60 = arith.addf %54, %59 : vector<96x8xf32>
    %c1_57 = arith.constant 1 : index
    %c1_58 = arith.constant 1 : index
    %c0_59 = arith.constant 0 : index
    %61 = vector.load %arg12[%c1_57, %c1_58, %c0_59] : memref<8x18x32xf32, #tpu.memory_space<vmem>>, vector<6x16x32xf32>
    %62 = vector.shape_cast %61 : vector<6x16x32xf32> to vector<96x32xf32>
    %c1_60 = arith.constant 1 : index
    %c1_61 = arith.constant 1 : index
    %c0_62 = arith.constant 0 : index
    %c0_63 = arith.constant 0 : index
    %63 = vector.load %arg7[%c1_60, %c1_61, %c0_62, %c0_63] : memref<3x3x32x8xf32, #tpu.memory_space<vmem>>, vector<1x1x32x8xf32>
    %64 = vector.shape_cast %63 : vector<1x1x32x8xf32> to vector<32x8xf32>
    %cst_64 = arith.constant dense<0.000000e+00> : vector<96x8xf32>
    %65 = tpu.matmul %62, %64, %cst_64 {dimension_numbers = #tpu.dot_dimension_numbers<[1], [0], [0], [1], [0, 0, 1, 1], [], []>} : vector<96x32xf32>, vector<32x8xf32>, vector<96x8xf32> -> vector<96x8xf32>
    %66 = arith.addf %60, %65 : vector<96x8xf32>
    %c1_65 = arith.constant 1 : index
    %c2_66 = arith.constant 2 : index
    %c0_67 = arith.constant 0 : index
    %67 = vector.load %arg12[%c1_65, %c2_66, %c0_67] : memref<8x18x32xf32, #tpu.memory_space<vmem>>, vector<6x16x32xf32>
    %68 = vector.shape_cast %67 : vector<6x16x32xf32> to vector<96x32xf32>
    %c1_68 = arith.constant 1 : index
    %c2_69 = arith.constant 2 : index
    %c0_70 = arith.constant 0 : index
    %c0_71 = arith.constant 0 : index
    %69 = vector.load %arg7[%c1_68, %c2_69, %c0_70, %c0_71] : memref<3x3x32x8xf32, #tpu.memory_space<vmem>>, vector<1x1x32x8xf32>
    %70 = vector.shape_cast %69 : vector<1x1x32x8xf32> to vector<32x8xf32>
    %cst_72 = arith.constant dense<0.000000e+00> : vector<96x8xf32>
    %71 = tpu.matmul %68, %70, %cst_72 {dimension_numbers = #tpu.dot_dimension_numbers<[1], [0], [0], [1], [0, 0, 1, 1], [], []>} : vector<96x32xf32>, vector<32x8xf32>, vector<96x8xf32> -> vector<96x8xf32>
    %72 = arith.addf %66, %71 : vector<96x8xf32>
    %c2_73 = arith.constant 2 : index
    %c0_74 = arith.constant 0 : index
    %c0_75 = arith.constant 0 : index
    %73 = vector.load %arg12[%c2_73, %c0_74, %c0_75] : memref<8x18x32xf32, #tpu.memory_space<vmem>>, vector<6x16x32xf32>
    %74 = vector.shape_cast %73 : vector<6x16x32xf32> to vector<96x32xf32>
    %c2_76 = arith.constant 2 : index
    %c0_77 = arith.constant 0 : index
    %c0_78 = arith.constant 0 : index
    %c0_79 = arith.constant 0 : index
    %75 = vector.load %arg7[%c2_76, %c0_77, %c0_78, %c0_79] : memref<3x3x32x8xf32, #tpu.memory_space<vmem>>, vector<1x1x32x8xf32>
    %76 = vector.shape_cast %75 : vector<1x1x32x8xf32> to vector<32x8xf32>
    %cst_80 = arith.constant dense<0.000000e+00> : vector<96x8xf32>
    %77 = tpu.matmul %74, %76, %cst_80 {dimension_numbers = #tpu.dot_dimension_numbers<[1], [0], [0], [1], [0, 0, 1, 1], [], []>} : vector<96x32xf32>, vector<32x8xf32>, vector<96x8xf32> -> vector<96x8xf32>
    %78 = arith.addf %72, %77 : vector<96x8xf32>
    %c2_81 = arith.constant 2 : index
    %c1_82 = arith.constant 1 : index
    %c0_83 = arith.constant 0 : index
    %79 = vector.load %arg12[%c2_81, %c1_82, %c0_83] : memref<8x18x32xf32, #tpu.memory_space<vmem>>, vector<6x16x32xf32>
    %80 = vector.shape_cast %79 : vector<6x16x32xf32> to vector<96x32xf32>
    %c2_84 = arith.constant 2 : index
    %c1_85 = arith.constant 1 : index
    %c0_86 = arith.constant 0 : index
    %c0_87 = arith.constant 0 : index
    %81 = vector.load %arg7[%c2_84, %c1_85, %c0_86, %c0_87] : memref<3x3x32x8xf32, #tpu.memory_space<vmem>>, vector<1x1x32x8xf32>
    %82 = vector.shape_cast %81 : vector<1x1x32x8xf32> to vector<32x8xf32>
    %cst_88 = arith.constant dense<0.000000e+00> : vector<96x8xf32>
    %83 = tpu.matmul %80, %82, %cst_88 {dimension_numbers = #tpu.dot_dimension_numbers<[1], [0], [0], [1], [0, 0, 1, 1], [], []>} : vector<96x32xf32>, vector<32x8xf32>, vector<96x8xf32> -> vector<96x8xf32>
    %84 = arith.addf %78, %83 : vector<96x8xf32>
    %c2_89 = arith.constant 2 : index
    %c2_90 = arith.constant 2 : index
    %c0_91 = arith.constant 0 : index
    %85 = vector.load %arg12[%c2_89, %c2_90, %c0_91] : memref<8x18x32xf32, #tpu.memory_space<vmem>>, vector<6x16x32xf32>
    %86 = vector.shape_cast %85 : vector<6x16x32xf32> to vector<96x32xf32>
    %c2_92 = arith.constant 2 : index
    %c2_93 = arith.constant 2 : index
    %c0_94 = arith.constant 0 : index
    %c0_95 = arith.constant 0 : index
    %87 = vector.load %arg7[%c2_92, %c2_93, %c0_94, %c0_95] : memref<3x3x32x8xf32, #tpu.memory_space<vmem>>, vector<1x1x32x8xf32>
    %88 = vector.shape_cast %87 : vector<1x1x32x8xf32> to vector<32x8xf32>
    %cst_96 = arith.constant dense<0.000000e+00> : vector<96x8xf32>
    %89 = tpu.matmul %86, %88, %cst_96 {dimension_numbers = #tpu.dot_dimension_numbers<[1], [0], [0], [1], [0, 0, 1, 1], [], []>} : vector<96x32xf32>, vector<32x8xf32>, vector<96x8xf32> -> vector<96x8xf32>
    %90 = arith.addf %84, %89 : vector<96x8xf32>
    %c0_97 = arith.constant 0 : index
    %c0_98 = arith.constant 0 : index
    %91 = vector.load %arg8[%c0_97, %c0_98] : memref<1x8xf32, #tpu.memory_space<vmem>>, vector<1x8xf32>
    %92 = vector.broadcast %91 : vector<1x8xf32> to vector<96x8xf32>
    %93 = arith.addf %90, %92 : vector<96x8xf32>
    %cst_99 = arith.constant 0.000000e+00 : f32
    %94 = vector.broadcast %cst_99 : f32 to vector<96x8xf32>
    %95 = arith.subf %94, %93 : vector<96x8xf32>
    %96 = math.exp %95 : vector<96x8xf32>
    %cst_100 = arith.constant 1.000000e+00 : f32
    %97 = vector.broadcast %cst_100 : f32 to vector<96x8xf32>
    %98 = arith.addf %97, %96 : vector<96x8xf32>
    %99 = tpu.reciprocal %98 {approx = true} : vector<96x8xf32> -> vector<96x8xf32>
    %100 = vector.extract_strided_slice %4 {offsets = [1, 0, 0], sizes = [6, 16, 8], strides = [1, 1, 1]} : vector<8x16x8xf32> to vector<6x16x8xf32>
    %101 = vector.shape_cast %100 : vector<6x16x8xf32> to vector<96x8xf32>
    %102 = arith.mulf %101, %99 : vector<96x8xf32>
    %103 = arith.addf %102, %101 : vector<96x8xf32>
    %cst_101 = arith.constant 0.000000e+00 : f32
    %104 = vector.broadcast %cst_101 : f32 to vector<6x1x8xf32>
    %c0_102 = arith.constant 0 : index
    %c0_103 = arith.constant 0 : index
    %c0_104 = arith.constant 0 : index
    %105 = vector.load %arg13[%c0_102, %c0_103, %c0_104] : memref<6x18x8xf32, #tpu.memory_space<vmem>>, vector<6x1x8xf32>
    tpu.vector_store %arg13[%c0_102, %c0_103, %c0_104], %104 {strides = array<i32>} : memref<6x18x8xf32, #tpu.memory_space<vmem>>, vector<6x1x8xf32>,
    %cst_105 = arith.constant 0.000000e+00 : f32
    %106 = vector.broadcast %cst_105 : f32 to vector<6x1x8xf32>
    %c0_106 = arith.constant 0 : index
    %c17_107 = arith.constant 17 : index
    %c0_108 = arith.constant 0 : index
    %107 = vector.load %arg13[%c0_106, %c17_107, %c0_108] : memref<6x18x8xf32, #tpu.memory_space<vmem>>, vector<6x1x8xf32>
    tpu.vector_store %arg13[%c0_106, %c17_107, %c0_108], %106 {strides = array<i32>} : memref<6x18x8xf32, #tpu.memory_space<vmem>>, vector<6x1x8xf32>,
    %108 = vector.shape_cast %103 : vector<96x8xf32> to vector<6x16x8xf32>
    %c0_109 = arith.constant 0 : index
    %c1_110 = arith.constant 1 : index
    %c0_111 = arith.constant 0 : index
    %109 = vector.load %arg13[%c0_109, %c1_110, %c0_111] : memref<6x18x8xf32, #tpu.memory_space<vmem>>, vector<6x16x8xf32>
    tpu.vector_store %arg13[%c0_109, %c1_110, %c0_111], %108 {strides = array<i32>} : memref<6x18x8xf32, #tpu.memory_space<vmem>>, vector<6x16x8xf32>,
    %c0_112 = arith.constant 0 : index
    %c0_113 = arith.constant 0 : index
    %c0_114 = arith.constant 0 : index
    %110 = vector.load %arg13[%c0_112, %c0_113, %c0_114] : memref<6x18x8xf32, #tpu.memory_space<vmem>>, vector<4x16x8xf32>
    %111 = vector.shape_cast %110 : vector<4x16x8xf32> to vector<64x8xf32>
    %c0_115 = arith.constant 0 : index
    %c0_116 = arith.constant 0 : index
    %c0_117 = arith.constant 0 : index
    %c0_118 = arith.constant 0 : index
    %112 = vector.load %arg9[%c0_115, %c0_116, %c0_117, %c0_118] : memref<3x3x8x8xf32, #tpu.memory_space<vmem>>, vector<1x1x8x8xf32>
    %113 = vector.shape_cast %112 : vector<1x1x8x8xf32> to vector<8x8xf32>
    %cst_119 = arith.constant dense<0.000000e+00> : vector<64x8xf32>
    %114 = tpu.matmul %111, %113, %cst_119 {dimension_numbers = #tpu.dot_dimension_numbers<[1], [0], [0], [1], [0, 0, 1, 1], [], []>} : vector<64x8xf32>, vector<8x8xf32>, vector<64x8xf32> -> vector<64x8xf32>
    %c0_120 = arith.constant 0 : index
    %c1_121 = arith.constant 1 : index
    %c0_122 = arith.constant 0 : index
    %115 = vector.load %arg13[%c0_120, %c1_121, %c0_122] : memref<6x18x8xf32, #tpu.memory_space<vmem>>, vector<4x16x8xf32>
    %116 = vector.shape_cast %115 : vector<4x16x8xf32> to vector<64x8xf32>
    %c0_123 = arith.constant 0 : index
    %c1_124 = arith.constant 1 : index
    %c0_125 = arith.constant 0 : index
    %c0_126 = arith.constant 0 : index
    %117 = vector.load %arg9[%c0_123, %c1_124, %c0_125, %c0_126] : memref<3x3x8x8xf32, #tpu.memory_space<vmem>>, vector<1x1x8x8xf32>
    %118 = vector.shape_cast %117 : vector<1x1x8x8xf32> to vector<8x8xf32>
    %cst_127 = arith.constant dense<0.000000e+00> : vector<64x8xf32>
    %119 = tpu.matmul %116, %118, %cst_127 {dimension_numbers = #tpu.dot_dimension_numbers<[1], [0], [0], [1], [0, 0, 1, 1], [], []>} : vector<64x8xf32>, vector<8x8xf32>, vector<64x8xf32> -> vector<64x8xf32>
    %120 = arith.addf %114, %119 : vector<64x8xf32>
    %c0_128 = arith.constant 0 : index
    %c2_129 = arith.constant 2 : index
    %c0_130 = arith.constant 0 : index
    %121 = vector.load %arg13[%c0_128, %c2_129, %c0_130] : memref<6x18x8xf32, #tpu.memory_space<vmem>>, vector<4x16x8xf32>
    %122 = vector.shape_cast %121 : vector<4x16x8xf32> to vector<64x8xf32>
    %c0_131 = arith.constant 0 : index
    %c2_132 = arith.constant 2 : index
    %c0_133 = arith.constant 0 : index
    %c0_134 = arith.constant 0 : index
    %123 = vector.load %arg9[%c0_131, %c2_132, %c0_133, %c0_134] : memref<3x3x8x8xf32, #tpu.memory_space<vmem>>, vector<1x1x8x8xf32>
    %124 = vector.shape_cast %123 : vector<1x1x8x8xf32> to vector<8x8xf32>
    %cst_135 = arith.constant dense<0.000000e+00> : vector<64x8xf32>
    %125 = tpu.matmul %122, %124, %cst_135 {dimension_numbers = #tpu.dot_dimension_numbers<[1], [0], [0], [1], [0, 0, 1, 1], [], []>} : vector<64x8xf32>, vector<8x8xf32>, vector<64x8xf32> -> vector<64x8xf32>
    %126 = arith.addf %120, %125 : vector<64x8xf32>
    %c1_136 = arith.constant 1 : index
    %c0_137 = arith.constant 0 : index
    %c0_138 = arith.constant 0 : index
    %127 = vector.load %arg13[%c1_136, %c0_137, %c0_138] : memref<6x18x8xf32, #tpu.memory_space<vmem>>, vector<4x16x8xf32>
    %128 = vector.shape_cast %127 : vector<4x16x8xf32> to vector<64x8xf32>
    %c1_139 = arith.constant 1 : index
    %c0_140 = arith.constant 0 : index
    %c0_141 = arith.constant 0 : index
    %c0_142 = arith.constant 0 : index
    %129 = vector.load %arg9[%c1_139, %c0_140, %c0_141, %c0_142] : memref<3x3x8x8xf32, #tpu.memory_space<vmem>>, vector<1x1x8x8xf32>
    %130 = vector.shape_cast %129 : vector<1x1x8x8xf32> to vector<8x8xf32>
    %cst_143 = arith.constant dense<0.000000e+00> : vector<64x8xf32>
    %131 = tpu.matmul %128, %130, %cst_143 {dimension_numbers = #tpu.dot_dimension_numbers<[1], [0], [0], [1], [0, 0, 1, 1], [], []>} : vector<64x8xf32>, vector<8x8xf32>, vector<64x8xf32> -> vector<64x8xf32>
    %132 = arith.addf %126, %131 : vector<64x8xf32>
    %c1_144 = arith.constant 1 : index
    %c1_145 = arith.constant 1 : index
    %c0_146 = arith.constant 0 : index
    %133 = vector.load %arg13[%c1_144, %c1_145, %c0_146] : memref<6x18x8xf32, #tpu.memory_space<vmem>>, vector<4x16x8xf32>
    %134 = vector.shape_cast %133 : vector<4x16x8xf32> to vector<64x8xf32>
    %c1_147 = arith.constant 1 : index
    %c1_148 = arith.constant 1 : index
    %c0_149 = arith.constant 0 : index
    %c0_150 = arith.constant 0 : index
    %135 = vector.load %arg9[%c1_147, %c1_148, %c0_149, %c0_150] : memref<3x3x8x8xf32, #tpu.memory_space<vmem>>, vector<1x1x8x8xf32>
    %136 = vector.shape_cast %135 : vector<1x1x8x8xf32> to vector<8x8xf32>
    %cst_151 = arith.constant dense<0.000000e+00> : vector<64x8xf32>
    %137 = tpu.matmul %134, %136, %cst_151 {dimension_numbers = #tpu.dot_dimension_numbers<[1], [0], [0], [1], [0, 0, 1, 1], [], []>} : vector<64x8xf32>, vector<8x8xf32>, vector<64x8xf32> -> vector<64x8xf32>
    %138 = arith.addf %132, %137 : vector<64x8xf32>
    %c1_152 = arith.constant 1 : index
    %c2_153 = arith.constant 2 : index
    %c0_154 = arith.constant 0 : index
    %139 = vector.load %arg13[%c1_152, %c2_153, %c0_154] : memref<6x18x8xf32, #tpu.memory_space<vmem>>, vector<4x16x8xf32>
    %140 = vector.shape_cast %139 : vector<4x16x8xf32> to vector<64x8xf32>
    %c1_155 = arith.constant 1 : index
    %c2_156 = arith.constant 2 : index
    %c0_157 = arith.constant 0 : index
    %c0_158 = arith.constant 0 : index
    %141 = vector.load %arg9[%c1_155, %c2_156, %c0_157, %c0_158] : memref<3x3x8x8xf32, #tpu.memory_space<vmem>>, vector<1x1x8x8xf32>
    %142 = vector.shape_cast %141 : vector<1x1x8x8xf32> to vector<8x8xf32>
    %cst_159 = arith.constant dense<0.000000e+00> : vector<64x8xf32>
    %143 = tpu.matmul %140, %142, %cst_159 {dimension_numbers = #tpu.dot_dimension_numbers<[1], [0], [0], [1], [0, 0, 1, 1], [], []>} : vector<64x8xf32>, vector<8x8xf32>, vector<64x8xf32> -> vector<64x8xf32>
    %144 = arith.addf %138, %143 : vector<64x8xf32>
    %c2_160 = arith.constant 2 : index
    %c0_161 = arith.constant 0 : index
    %c0_162 = arith.constant 0 : index
    %145 = vector.load %arg13[%c2_160, %c0_161, %c0_162] : memref<6x18x8xf32, #tpu.memory_space<vmem>>, vector<4x16x8xf32>
    %146 = vector.shape_cast %145 : vector<4x16x8xf32> to vector<64x8xf32>
    %c2_163 = arith.constant 2 : index
    %c0_164 = arith.constant 0 : index
    %c0_165 = arith.constant 0 : index
    %c0_166 = arith.constant 0 : index
    %147 = vector.load %arg9[%c2_163, %c0_164, %c0_165, %c0_166] : memref<3x3x8x8xf32, #tpu.memory_space<vmem>>, vector<1x1x8x8xf32>
    %148 = vector.shape_cast %147 : vector<1x1x8x8xf32> to vector<8x8xf32>
    %cst_167 = arith.constant dense<0.000000e+00> : vector<64x8xf32>
    %149 = tpu.matmul %146, %148, %cst_167 {dimension_numbers = #tpu.dot_dimension_numbers<[1], [0], [0], [1], [0, 0, 1, 1], [], []>} : vector<64x8xf32>, vector<8x8xf32>, vector<64x8xf32> -> vector<64x8xf32>
    %150 = arith.addf %144, %149 : vector<64x8xf32>
    %c2_168 = arith.constant 2 : index
    %c1_169 = arith.constant 1 : index
    %c0_170 = arith.constant 0 : index
    %151 = vector.load %arg13[%c2_168, %c1_169, %c0_170] : memref<6x18x8xf32, #tpu.memory_space<vmem>>, vector<4x16x8xf32>
    %152 = vector.shape_cast %151 : vector<4x16x8xf32> to vector<64x8xf32>
    %c2_171 = arith.constant 2 : index
    %c1_172 = arith.constant 1 : index
    %c0_173 = arith.constant 0 : index
    %c0_174 = arith.constant 0 : index
    %153 = vector.load %arg9[%c2_171, %c1_172, %c0_173, %c0_174] : memref<3x3x8x8xf32, #tpu.memory_space<vmem>>, vector<1x1x8x8xf32>
    %154 = vector.shape_cast %153 : vector<1x1x8x8xf32> to vector<8x8xf32>
    %cst_175 = arith.constant dense<0.000000e+00> : vector<64x8xf32>
    %155 = tpu.matmul %152, %154, %cst_175 {dimension_numbers = #tpu.dot_dimension_numbers<[1], [0], [0], [1], [0, 0, 1, 1], [], []>} : vector<64x8xf32>, vector<8x8xf32>, vector<64x8xf32> -> vector<64x8xf32>
    %156 = arith.addf %150, %155 : vector<64x8xf32>
    %c2_176 = arith.constant 2 : index
    %c2_177 = arith.constant 2 : index
    %c0_178 = arith.constant 0 : index
    %157 = vector.load %arg13[%c2_176, %c2_177, %c0_178] : memref<6x18x8xf32, #tpu.memory_space<vmem>>, vector<4x16x8xf32>
    %158 = vector.shape_cast %157 : vector<4x16x8xf32> to vector<64x8xf32>
    %c2_179 = arith.constant 2 : index
    %c2_180 = arith.constant 2 : index
    %c0_181 = arith.constant 0 : index
    %c0_182 = arith.constant 0 : index
    %159 = vector.load %arg9[%c2_179, %c2_180, %c0_181, %c0_182] : memref<3x3x8x8xf32, #tpu.memory_space<vmem>>, vector<1x1x8x8xf32>
    %160 = vector.shape_cast %159 : vector<1x1x8x8xf32> to vector<8x8xf32>
    %cst_183 = arith.constant dense<0.000000e+00> : vector<64x8xf32>
    %161 = tpu.matmul %158, %160, %cst_183 {dimension_numbers = #tpu.dot_dimension_numbers<[1], [0], [0], [1], [0, 0, 1, 1], [], []>} : vector<64x8xf32>, vector<8x8xf32>, vector<64x8xf32> -> vector<64x8xf32>
    %162 = arith.addf %156, %161 : vector<64x8xf32>
    %c0_184 = arith.constant 0 : index
    %c0_185 = arith.constant 0 : index
    %163 = vector.load %arg10[%c0_184, %c0_185] : memref<1x8xf32, #tpu.memory_space<vmem>>, vector<1x8xf32>
    %164 = vector.broadcast %163 : vector<1x8xf32> to vector<64x8xf32>
    %165 = arith.addf %162, %164 : vector<64x8xf32>
    %cst_186 = arith.constant 0.000000e+00 : f32
    %166 = vector.broadcast %cst_186 : f32 to vector<64x8xf32>
    %167 = arith.cmpf oge, %165, %166 : vector<64x8xf32>
    %cst_187 = arith.constant 2.000000e-01 : f32
    %168 = vector.broadcast %cst_187 : f32 to vector<64x8xf32>
    %169 = arith.mulf %168, %165 : vector<64x8xf32>
    %170 = arith.select %167, %165, %169 : vector<64x8xi1>, vector<64x8xf32>
    %171 = vector.shape_cast %170 : vector<64x8xf32> to vector<1x4x16x8xf32>
    %c0_188 = arith.constant 0 : index
    %c0_189 = arith.constant 0 : index
    %c0_190 = arith.constant 0 : index
    %c0_191 = arith.constant 0 : index
    %172 = vector.load %arg11[%c0_188, %c0_189, %c0_190, %c0_191] : memref<1x4x16x8xf32, #tpu.memory_space<vmem>>, vector<1x4x16x8xf32>
    tpu.vector_store %arg11[%c0_188, %c0_189, %c0_190, %c0_191], %171 {strides = array<i32>} : memref<1x4x16x8xf32, #tpu.memory_space<vmem>>, vector<1x4x16x8xf32>,
    return
  }
  func.func @transform_0(%arg0: i32, %arg1: i32) -> (i32, i32, i32, i32) {
    %c0_i32 = arith.constant 0 : i32
    %c0_i32_0 = arith.constant 0 : i32
    %c0_i32_1 = arith.constant 0 : i32
    %c0_i32_2 = arith.constant 0 : i32
    return %arg0, %c0_i32, %c0_i32_0, %c0_i32_1 : i32, i32, i32, i32
  }
  func.func @transform_1(%arg0: i32, %arg1: i32) -> (i32, i32) {
    %c0_i32 = arith.constant 0 : i32
    %c0_i32_0 = arith.constant 0 : i32
    %c0_i32_1 = arith.constant 0 : i32
    return %c0_i32, %c0_i32_0 : i32, i32
  }
  func.func @transform_2(%arg0: i32, %arg1: i32) -> (i32, i32) {
    %c0_i32 = arith.constant 0 : i32
    %c0_i32_0 = arith.constant 0 : i32
    %c0_i32_1 = arith.constant 0 : i32
    return %c0_i32, %c0_i32_0 : i32, i32
  }
  func.func @transform_3(%arg0: i32, %arg1: i32) -> (i32, i32) {
    %c0_i32 = arith.constant 0 : i32
    %c0_i32_0 = arith.constant 0 : i32
    %c0_i32_1 = arith.constant 0 : i32
    return %c0_i32, %c0_i32_0 : i32, i32
  }
  func.func @transform_4(%arg0: i32, %arg1: i32) -> (i32, i32) {
    %c0_i32 = arith.constant 0 : i32
    %c0_i32_0 = arith.constant 0 : i32
    %c0_i32_1 = arith.constant 0 : i32
    return %c0_i32, %c0_i32_0 : i32, i32
  }
  func.func @transform_5(%arg0: i32, %arg1: i32) -> (i32, i32, i32, i32) {
    %c0_i32 = arith.constant 0 : i32
    %c0_i32_0 = arith.constant 0 : i32
    %c0_i32_1 = arith.constant 0 : i32
    %c0_i32_2 = arith.constant 0 : i32
    %c0_i32_3 = arith.constant 0 : i32
    return %c0_i32, %c0_i32_0, %c0_i32_1, %c0_i32_2 : i32, i32, i32, i32
  }
  func.func @transform_6(%arg0: i32, %arg1: i32) -> (i32, i32) {
    %c0_i32 = arith.constant 0 : i32
    %c0_i32_0 = arith.constant 0 : i32
    %c0_i32_1 = arith.constant 0 : i32
    return %c0_i32, %c0_i32_0 : i32, i32
  }
  func.func @transform_7(%arg0: i32, %arg1: i32) -> (i32, i32, i32, i32) {
    %c0_i32 = arith.constant 0 : i32
    %c0_i32_0 = arith.constant 0 : i32
    %c0_i32_1 = arith.constant 0 : i32
    %c0_i32_2 = arith.constant 0 : i32
    %c0_i32_3 = arith.constant 0 : i32
    return %c0_i32, %c0_i32_0, %c0_i32_1, %c0_i32_2 : i32, i32, i32, i32
  }
  func.func @transform_8(%arg0: i32, %arg1: i32) -> (i32, i32) {
    %c0_i32 = arith.constant 0 : i32
    %c0_i32_0 = arith.constant 0 : i32
    %c0_i32_1 = arith.constant 0 : i32
    return %c0_i32, %c0_i32_0 : i32, i32
  }
  func.func @transform_9(%arg0: i32, %arg1: i32) -> (i32, i32, i32, i32) {
    %c0_i32 = arith.constant 0 : i32
    %c0_i32_0 = arith.constant 0 : i32
    %c0_i32_1 = arith.constant 0 : i32
    return %arg0, %arg1, %c0_i32, %c0_i32_0 : i32, i32, i32, i32
  }
}

</mosaic_0001>

<llo_original>
// kernel: tpu_custom_call.1
$region0: #{tpu_custom_call.1}
  #allocation0 [shape = 'u32[]', space=smem, size = 0x4, offset = 0x4, fixed_abs, tag = 'smem constant byte address 0x4 - core index']
  #allocation1 [shape = 'u32[144,128]{1,0:T(1,128)}', space=vmem, size = 0x12000, scoped, tag = 'internal scratch']
  #allocation2 [shape = 'f32[8,18,32]{2,1,0:T(8,128)}', space=vmem, size = 0x18000, scoped, tag = 'scratch operand']
  #allocation3 [shape = 'f32[6,18,8]{2,1,0:T(8,128)}', space=vmem, size = 0x12000, scoped, tag = 'scratch operand']
  %s0 = inlined_call_operand.vmem [shape: f32[2,20,16,8], index: 0, kind: input, shape index: {}]
  %s1 = inlined_call_operand.vmem [shape: f32[8,16], index: 1, kind: input, shape index: {}]
  %s2 = inlined_call_operand.vmem [shape: f32[1,16], index: 2, kind: input, shape index: {}]
  %s3 = inlined_call_operand.vmem [shape: f32[16,32], index: 3, kind: input, shape index: {}]
  %s4 = inlined_call_operand.vmem [shape: f32[1,32], index: 4, kind: input, shape index: {}]
  %s5 = inlined_call_operand.vmem [shape: f32[3,3,32,8], index: 5, kind: input, shape index: {}]
  %s6 = inlined_call_operand.vmem [shape: f32[1,8], index: 6, kind: input, shape index: {}]
  %s7 = inlined_call_operand.vmem [shape: f32[3,3,8,8], index: 7, kind: input, shape index: {}]
  %s8 = inlined_call_operand.vmem [shape: f32[1,8], index: 8, kind: input, shape index: {}]
  %s9 = inlined_call_operand.vmem [shape: f32[2,16,16,8], index: 9, kind: output, shape index: {}]
  %s10 = sld [smem:[#allocation0]]
  $region77: #{tpu_custom_call.1} parent=0
    _
  %s12 = ssub.s32 1, %s10
  %s13 = scalar_select 0, %s12, %s10
  loop: start=0, step=1, limit=10
  $region2: #{tpu_custom_call.1} parent=0 // loop_pre_header
    _
  $region3: #{tpu_custom_call.1} parent=0 // loop_header
    %s15 = sphi 0, %s19
    %p16 = scmp.ge.s32.totalorder %s15, 10
    %s22 = sphi 0, %s34
    %s23 = sphi 0, %s30
    %s24 = sphi 0, %s22
    %s25 = sphi 0, %s23
    %s26 = sphi 0, %s24
    %s27 = sphi 0, %s25
    %s37 = sphi 0, %s39
    %s40 = sphi 0, %s37
    %s41 = sphi 0, %s40
    %s57 = sphi 0, %s41
    %s61 = sphi 0, %s61
    %s63 = sphi 0, %s61
    %s64 = sphi 0, %s63
    %s78 = sphi 0, %s64
    %s82 = sphi 0, %s82
    %s84 = sphi 0, %s82
    %s85 = sphi 0, %s84
    %s99 = sphi 0, %s85
    %s103 = sphi 0, %s103
    %s105 = sphi 0, %s103
    %s106 = sphi 0, %s105
    %s120 = sphi 0, %s106
    %s124 = sphi 0, %s124
    %s126 = sphi 0, %s124
    %s127 = sphi 0, %s126
    %s141 = sphi 0, %s127
    %s145 = sphi 0, %s145
    %s147 = sphi 0, %s145
    %s148 = sphi 0, %s147
    %s162 = sphi 0, %s148
    %s166 = sphi 0, %s166
    %s168 = sphi 0, %s166
    %s169 = sphi 0, %s168
    %s183 = sphi 0, %s169
    %s187 = sphi 0, %s187
    %s189 = sphi 0, %s187
    %s190 = sphi 0, %s189
    %s204 = sphi 0, %s190
    %s208 = sphi 0, %s208
    %s210 = sphi 0, %s208
    %s211 = sphi 0, %s210
    %s225 = sphi 0, %s211
    %s233 = sphi 0, %s235
    %s236 = sphi 0, %s233
    %s237 = sphi 0, %s236
    %s253 = sphi 0, %s237
  $region4: #{tpu_custom_call.1} parent=0 // loop_header_branch
    %18 = sbr.rel (%p16) target = $region8
  $region5: #{tpu_custom_call.1} parent=0 // loop_body
    %s20 = ssub.s32 %s15, 1
    %s21 = ssub.s32 %s15, 2
    %s28 = sadd.s32 1, %s23
    %p29 = scmp.ge.s32.totalorder %s28, 4
    %s30 = scalar_select %p29, 0, %s28
    %s31 = sadd.s32 1, %s22
    %s32 = scalar_select %p29, %s31, %s22
    %p33 = scmp.ge.s32.totalorder %s32, 2
    %s34 = scalar_select %p33, 0, %s32
    %s35 = ssub.s32 %s22, %s34
    %p36 = scmp.eq.s32.totalorder %s35, 0
    %s38 = sadd.s32 %s37, 1
    %s39 = scalar_select %p36, %s37, %s38
    %p42 = pneg %p36
    %p43 = scmp.eq.s32.totalorder %s15, 7
    %p44 = por %p42, %p43
    %p45 = scmp.ne.s32.totalorder %s37, %s40
    %p46 = scmp.eq.s32.totalorder %s15, 0
    %p47 = por %p45, %p46
    %p48 = scmp.ne.s32.totalorder %s37, %s40
    %p49 = scmp.eq.s32.totalorder %s20, 7
    %p50 = por %p48, %p49
    %p51 = scmp.ne.s32.totalorder %s40, %s41
    %p52 = scmp.eq.s32.totalorder %s20, 0
    %p53 = por %p51, %p52
    %p54 = scmp.ne.s32.totalorder %s40, %s41
    %p55 = scmp.eq.s32.totalorder %s21, 7
    %p56 = por %p54, %p55
    %p58 = scmp.ne.s32.totalorder %s41, %s57
    %p59 = scmp.eq.s32.totalorder %s21, 0
    %p60 = por %p58, %p59
    %s62 = sadd.s32 %s61, 1
    %p65 = scmp.eq.s32.totalorder %s15, 7
    %p66 = scmp.ne.s32.totalorder %s61, %s63
    %p67 = scmp.eq.s32.totalorder %s15, 0
    %p68 = por %p66, %p67
    %p69 = scmp.ne.s32.totalorder %s61, %s63
    %p70 = scmp.eq.s32.totalorder %s20, 7
    %p71 = por %p69, %p70
    %p72 = scmp.ne.s32.totalorder %s63, %s64
    %p73 = scmp.eq.s32.totalorder %s20, 0
    %p74 = por %p72, %p73
    %p75 = scmp.ne.s32.totalorder %s63, %s64
    %p76 = scmp.eq.s32.totalorder %s21, 7
    %p77 = por %p75, %p76
    %p79 = scmp.ne.s32.totalorder %s64, %s78
    %p80 = scmp.eq.s32.totalorder %s21, 0
    %p81 = por %p79, %p80
    %s83 = sadd.s32 %s82, 1
    %p86 = scmp.eq.s32.totalorder %s15, 7
    %p87 = scmp.ne.s32.totalorder %s82, %s84
    %p88 = scmp.eq.s32.totalorder %s15, 0
    %p89 = por %p87, %p88
    %p90 = scmp.ne.s32.totalorder %s82, %s84
    %p91 = scmp.eq.s32.totalorder %s20, 7
    %p92 = por %p90, %p91
    %p93 = scmp.ne.s32.totalorder %s84, %s85
    %p94 = scmp.eq.s32.totalorder %s20, 0
    %p95 = por %p93, %p94
    %p96 = scmp.ne.s32.totalorder %s84, %s85
    %p97 = scmp.eq.s32.totalorder %s21, 7
    %p98 = por %p96, %p97
    %p100 = scmp.ne.s32.totalorder %s85, %s99
    %p101 = scmp.eq.s32.totalorder %s21, 0
    %p102 = por %p100, %p101
    %s104 = sadd.s32 %s103, 1
    %p107 = scmp.eq.s32.totalorder %s15, 7
    %p108 = scmp.ne.s32.totalorder %s103, %s105
    %p109 = scmp.eq.s32.totalorder %s15, 0
    %p110 = por %p108, %p109
    %p111 = scmp.ne.s32.totalorder %s103, %s105
    %p112 = scmp.eq.s32.totalorder %s20, 7
    %p113 = por %p111, %p112
    %p114 = scmp.ne.s32.totalorder %s105, %s106
    %p115 = scmp.eq.s32.totalorder %s20, 0
    %p116 = por %p114, %p115
    %p117 = scmp.ne.s32.totalorder %s105, %s106
    %p118 = scmp.eq.s32.totalorder %s21, 7
    %p119 = por %p117, %p118
    %p121 = scmp.ne.s32.totalorder %s106, %s120
    %p122 = scmp.eq.s32.totalorder %s21, 0
    %p123 = por %p121, %p122
    %s125 = sadd.s32 %s124, 1
    %p128 = scmp.eq.s32.totalorder %s15, 7
    %p129 = scmp.ne.s32.totalorder %s124, %s126
    %p130 = scmp.eq.s32.totalorder %s15, 0
    %p131 = por %p129, %p130
    %p132 = scmp.ne.s32.totalorder %s124, %s126
    %p133 = scmp.eq.s32.totalorder %s20, 7
    %p134 = por %p132, %p133
    %p135 = scmp.ne.s32.totalorder %s126, %s127
    %p136 = scmp.eq.s32.totalorder %s20, 0
    %p137 = por %p135, %p136
    %p138 = scmp.ne.s32.totalorder %s126, %s127
    %p139 = scmp.eq.s32.totalorder %s21, 7
    %p140 = por %p138, %p139
    %p142 = scmp.ne.s32.totalorder %s127, %s141
    %p143 = scmp.eq.s32.totalorder %s21, 0
    %p144 = por %p142, %p143
    %s146 = sadd.s32 %s145, 1
    %p149 = scmp.eq.s32.totalorder %s15, 7
    %p150 = scmp.ne.s32.totalorder %s145, %s147
    %p151 = scmp.eq.s32.totalorder %s15, 0
    %p152 = por %p150, %p151
    %p153 = scmp.ne.s32.totalorder %s145, %s147
    %p154 = scmp.eq.s32.totalorder %s20, 7
    %p155 = por %p153, %p154
    %p156 = scmp.ne.s32.totalorder %s147, %s148
    %p157 = scmp.eq.s32.totalorder %s20, 0
    %p158 = por %p156, %p157
    %p159 = scmp.ne.s32.totalorder %s147, %s148
    %p160 = scmp.eq.s32.totalorder %s21, 7
    %p161 = por %p159, %p160
    %p163 = scmp.ne.s32.totalorder %s148, %s162
    %p164 = scmp.eq.s32.totalorder %s21, 0
    %p165 = por %p163, %p164
    %s167 = sadd.s32 %s166, 1
    %p170 = scmp.eq.s32.totalorder %s15, 7
    %p171 = scmp.ne.s32.totalorder %s166, %s168
    %p172 = scmp.eq.s32.totalorder %s15, 0
    %p173 = por %p171, %p172
    %p174 = scmp.ne.s32.totalorder %s166, %s168
    %p175 = scmp.eq.s32.totalorder %s20, 7
    %p176 = por %p174, %p175
    %p177 = scmp.ne.s32.totalorder %s168, %s169
    %p178 = scmp.eq.s32.totalorder %s20, 0
    %p179 = por %p177, %p178
    %p180 = scmp.ne.s32.totalorder %s168, %s169
    %p181 = scmp.eq.s32.totalorder %s21, 7
    %p182 = por %p180, %p181
    %p184 = scmp.ne.s32.totalorder %s169, %s183
    %p185 = scmp.eq.s32.totalorder %s21, 0
    %p186 = por %p184, %p185
    %s188 = sadd.s32 %s187, 1
    %p191 = scmp.eq.s32.totalorder %s15, 7
    %p192 = scmp.ne.s32.totalorder %s187, %s189
    %p193 = scmp.eq.s32.totalorder %s15, 0
    %p194 = por %p192, %p193
    %p195 = scmp.ne.s32.totalorder %s187, %s189
    %p196 = scmp.eq.s32.totalorder %s20, 7
    %p197 = por %p195, %p196
    %p198 = scmp.ne.s32.totalorder %s189, %s190
    %p199 = scmp.eq.s32.totalorder %s20, 0
    %p200 = por %p198, %p199
    %p201 = scmp.ne.s32.totalorder %s189, %s190
    %p202 = scmp.eq.s32.totalorder %s21, 7
    %p203 = por %p201, %p202
    %p205 = scmp.ne.s32.totalorder %s190, %s204
    %p206 = scmp.eq.s32.totalorder %s21, 0
    %p207 = por %p205, %p206
    %s209 = sadd.s32 %s208, 1
    %p212 = scmp.eq.s32.totalorder %s15, 7
    %p213 = scmp.ne.s32.totalorder %s208, %s210
    %p214 = scmp.eq.s32.totalorder %s15, 0
    %p215 = por %p213, %p214
    %p216 = scmp.ne.s32.totalorder %s208, %s210
    %p217 = scmp.eq.s32.totalorder %s20, 7
    %p218 = por %p216, %p217
    %p219 = scmp.ne.s32.totalorder %s210, %s211
    %p220 = scmp.eq.s32.totalorder %s20, 0
    %p221 = por %p219, %p220
    %p222 = scmp.ne.s32.totalorder %s210, %s211
    %p223 = scmp.eq.s32.totalorder %s21, 7
    %p224 = por %p222, %p223
    %p226 = scmp.ne.s32.totalorder %s211, %s225
    %p227 = scmp.eq.s32.totalorder %s21, 0
    %p228 = por %p226, %p227
    %s229 = ssub.s32 %s22, %s34
    %s230 = ssub.s32 %s23, %s30
    %s231 = sor.u32 %s229, %s230
    %p232 = scmp.eq.s32.totalorder %s231, 0
    %s234 = sadd.s32 %s233, 1
    %s235 = scalar_select %p232, %s233, %s234
    %p238 = pneg %p232
    %p239 = scmp.eq.s32.totalorder %s15, 7
    %p240 = por %p238, %p239
    %p241 = scmp.ne.s32.totalorder %s233, %s236
    %p242 = scmp.eq.s32.totalorder %s15, 0
    %p243 = por %p241, %p242
    %p244 = scmp.ne.s32.totalorder %s233, %s236
    %p245 = scmp.eq.s32.totalorder %s20, 7
    %p246 = por %p244, %p245
    %p247 = scmp.ne.s32.totalorder %s236, %s237
    %p248 = scmp.eq.s32.totalorder %s20, 0
    %p249 = por %p247, %p248
    %p250 = scmp.ne.s32.totalorder %s236, %s237
    %p251 = scmp.eq.s32.totalorder %s21, 7
    %p252 = por %p250, %p251
    %p254 = scmp.ne.s32.totalorder %s237, %s253
    %p255 = scmp.eq.s32.totalorder %s21, 0
    %p256 = por %p254, %p255
    %p257 = scmp.le.s32.totalorder 1, %s15
    %p258 = scmp.lt.s32.totalorder %s15, 9
    %p259 = pnand %p257, %p258
    %p260 = pneg %p259
    // Predicated region
    $region9: #{tpu_custom_call.1} parent=5 // pred_check
      _
    $region10: #{tpu_custom_call.1} parent=5 // pred_check_branch
      %262 = sbr.rel (%p259) target = $region12
    $region11: #{tpu_custom_call.1} parent=5 // pred_region
      %s263 = ssub.s32 %s15, 1
      // Predicated region
      $region13: #{tpu_custom_call.1} parent=11 // pred_check
        %p264 = pneg %p74
      $region14: #{tpu_custom_call.1} parent=11 // pred_check_branch
        %266 = sbr.rel (%p264) target = $region16
      $region15: #{tpu_custom_call.1} parent=11 // pred_region
        _
      $region16: #{tpu_custom_call.1} parent=11 // pred_fallthru
        _
      // Predicated region
      $region17: #{tpu_custom_call.1} parent=11 // pred_check
        %p267 = pneg %p95
      $region18: #{tpu_custom_call.1} parent=11 // pred_check_branch
        %269 = sbr.rel (%p267) target = $region20
      $region19: #{tpu_custom_call.1} parent=11 // pred_region
        _
      $region20: #{tpu_custom_call.1} parent=11 // pred_fallthru
        _
      // Predicated region
      $region21: #{tpu_custom_call.1} parent=11 // pred_check
        %p270 = pneg %p116
      $region22: #{tpu_custom_call.1} parent=11 // pred_check_branch
        %272 = sbr.rel (%p270) target = $region24
      $region23: #{tpu_custom_call.1} parent=11 // pred_region
        _
      $region24: #{tpu_custom_call.1} parent=11 // pred_fallthru
        _
      // Predicated region
      $region25: #{tpu_custom_call.1} parent=11 // pred_check
        %p273 = pneg %p137
      $region26: #{tpu_custom_call.1} parent=11 // pred_check_branch
        %275 = sbr.rel (%p273) target = $region28
      $region27: #{tpu_custom_call.1} parent=11 // pred_region
        _
      $region28: #{tpu_custom_call.1} parent=11 // pred_fallthru
        _
      // Predicated region
      $region29: #{tpu_custom_call.1} parent=11 // pred_check
        %p276 = pneg %p158
      $region30: #{tpu_custom_call.1} parent=11 // pred_check_branch
        %278 = sbr.rel (%p276) target = $region32
      $region31: #{tpu_custom_call.1} parent=11 // pred_region
        _
      $region32: #{tpu_custom_call.1} parent=11 // pred_fallthru
        _
      // Predicated region
      $region33: #{tpu_custom_call.1} parent=11 // pred_check
        %p279 = pneg %p179
      $region34: #{tpu_custom_call.1} parent=11 // pred_check_branch
        %281 = sbr.rel (%p279) target = $region36
      $region35: #{tpu_custom_call.1} parent=11 // pred_region
        _
      $region36: #{tpu_custom_call.1} parent=11 // pred_fallthru
        _
      // Predicated region
      $region37: #{tpu_custom_call.1} parent=11 // pred_check
        %p282 = pneg %p200
      $region38: #{tpu_custom_call.1} parent=11 // pred_check_branch
        %284 = sbr.rel (%p282) target = $region40
      $region39: #{tpu_custom_call.1} parent=11 // pred_region
        _
      $region40: #{tpu_custom_call.1} parent=11 // pred_fallthru
        _
      // Predicated region
      $region41: #{tpu_custom_call.1} parent=11 // pred_check
        %p285 = pneg %p221
      $region42: #{tpu_custom_call.1} parent=11 // pred_check_branch
        %287 = sbr.rel (%p285) target = $region44
      $region43: #{tpu_custom_call.1} parent=11 // pred_region
        _
      $region44: #{tpu_custom_call.1} parent=11 // pred_fallthru
        _
    $region12: #{tpu_custom_call.1} parent=5 // pred_fallthru
      _
    %p288 = scmp.lt.s32.totalorder %s15, 8
    // Predicated region
    $region45: #{tpu_custom_call.1} parent=5 // pred_check
      %p289 = pneg %p288
    $region46: #{tpu_custom_call.1} parent=5 // pred_check_branch
      %291 = sbr.rel (%p289) target = $region48
    $region47: #{tpu_custom_call.1} parent=5 // pred_region
      // Predicated region
      $region49: #{tpu_custom_call.1} parent=47 // pred_check
        %p292 = pneg %p47
      $region50: #{tpu_custom_call.1} parent=47 // pred_check_branch
        %294 = sbr.rel (%p292) target = $region52
      $region51: #{tpu_custom_call.1} parent=47 // pred_region
        %p295 = scmp.lt.s32.totalorder %s22, 1
        %s296 = scalar_select %p295, %s22, 1
        %s297 = smul.addr %s296, 40
        %s298 = smul.addr %s297, 8
        %s299 = scalar_lea.vmem %s0, %s298
      $region52: #{tpu_custom_call.1} parent=47 // pred_fallthru
        _
    $region48: #{tpu_custom_call.1} parent=5 // pred_fallthru
      _
    %p300 = scmp.le.s32.totalorder 1, %s15
    %p301 = scmp.lt.s32.totalorder %s15, 9
    %p302 = pnand %p300, %p301
    %p303 = pneg %p302
    // Predicated region
    $region53: #{tpu_custom_call.1} parent=5 // pred_check
      _
    $region54: #{tpu_custom_call.1} parent=5 // pred_check_branch
      %305 = sbr.rel (%p302) target = $region56
    $region55: #{tpu_custom_call.1} parent=5 // pred_region
      %s306 = ssub.s32 %s15, 1
      %p307 = scmp.lt.s32.totalorder %s24, 1
      %s308 = scalar_select %p307, %s24, 1
      %s309 = smul.addr %s308, 40
      %s310 = smul.addr %s309, 8
      %s311 = scalar_lea.vmem %s0, %s310
      %p312 = pneg %p53
      %p313 = pneg %p50
      %p314 = pneg %p74
      %p315 = pneg %p71
      %p316 = pneg %p95
      %p317 = pneg %p92
      %p318 = pneg %p116
      %p319 = pneg %p113
      %p320 = pneg %p137
      %p321 = pneg %p134
      %p322 = pneg %p158
      %p323 = pneg %p155
      %p324 = pneg %p179
      %p325 = pneg %p176
      %p326 = pneg %p200
      %p327 = pneg %p197
      %p328 = pneg %p221
      %p329 = pneg %p218
      %p330 = pneg %p249
      %p331 = pneg %p246
      %s332 = smul.u32 4, %s25
      %p333 = scmp.lt.s32.totalorder %s24, 1
      %s334 = scalar_select %p333, %s24, 1
      %p335 = scmp.lt.s32.totalorder %s332, 15
      %s336 = scalar_select %p335, %s332, 15
      %s337 = smul.addr %s336, 2
      %s338 = smul.addr %s334, 32
      %s339 = sadd.s32 %s337, %s338
      %s340 = smul.addr %s339, 8
      %s341 = scalar_lea.vmem %s9, %s340
      %p342 = scmp.lt.s32.totalorder %s24, 1
      %s343 = scalar_select %p342, %s24, 1
      %s344 = smul.addr %s343, 40
      %s345 = smul.addr %s344, 8
      %s346 = scalar_lea.vmem %s0, %s345
      %s347 = smul.u32 4, %s25
      %p348 = scmp.lt.s32.totalorder %s24, 1
      %s349 = scalar_select %p348, %s24, 1
      %p350 = scmp.lt.s32.totalorder %s347, 15
      %s351 = scalar_select %p350, %s347, 15
      %s352 = smul.addr %s351, 2
      %s353 = smul.addr %s349, 32
      %s354 = sadd.s32 %s352, %s353
      %s355 = smul.addr %s354, 8
      %s356 = scalar_lea.vmem %s9, %s355
      %s357 = smul.u32 4, %s25
      %s358 = smul.u32 %s25, 4
      %s359 = smul.u32 %s358, 16
      %s360 = scalar_lea.vmem %s346, %s359
      %v361 = vld [vmem:[%s360] sm:$0xff]
      %v362 = vld [vmem:[%s360 + $0x8] sm:$0xff]
      %v363 = vld [vmem:[%s360 + $0x10] sm:$0xff]
      %v364 = vld [vmem:[%s360 + $0x18] sm:$0xff]
      %v365 = vld [vmem:[%s360 + $0x20] sm:$0xff]
      %v366 = vld [vmem:[%s360 + $0x28] sm:$0xff]
      %v367 = vld [vmem:[%s360 + $0x30] sm:$0xff]
      %v368 = vld [vmem:[%s360 + $0x38] sm:$0xff]
      %v369 = vld [vmem:[%s360 + $0x40] sm:$0xff]
      %v370 = vld [vmem:[%s360 + $0x48] sm:$0xff]
      %v371 = vld [vmem:[%s360 + $0x50] sm:$0xff]
      %v372 = vld [vmem:[%s360 + $0x58] sm:$0xff]
      %v373 = vld [vmem:[%s360 + $0x60] sm:$0xff]
      %v374 = vld [vmem:[%s360 + $0x68] sm:$0xff]
      %v375 = vld [vmem:[%s360 + $0x70] sm:$0xff]
      %v376 = vld [vmem:[%s360 + $0x78] sm:$0xff]
      %v377 = vld [vmem:[%s1] sm:$0xff]
      %v378 = vld [vmem:[%s2] sm:$0x1]
      %v380 = vlaneseq
      %v381 = vshrl.u32 %v380, 7
      %v382 = vsub.s32 0, %v381
      %v383 = vrot.slane %v378, %v382
      %vm385 = vcmask 64512
      %v387 = vsel %vm385, %v361, 0
      %v390 = vsel %vm385, %v362, 0
      %v393 = vsel %vm385, %v363, 0
      %v396 = vsel %vm385, %v364, 0
      %v399 = vsel %vm385, %v365, 0
      %v402 = vsel %vm385, %v366, 0
      %v405 = vsel %vm385, %v367, 0
      %v408 = vsel %vm385, %v368, 0
      %v411 = vsel %vm385, %v369, 0
      %v414 = vsel %vm385, %v370, 0
      %v417 = vsel %vm385, %v371, 0
      %v420 = vsel %vm385, %v372, 0
      %v423 = vsel %vm385, %v373, 0
      %v426 = vsel %vm385, %v374, 0
      %v429 = vsel %vm385, %v375, 0
      %v432 = vsel %vm385, %v376, 0
      %434 = vmatprep.subr.mxu0 0.0
      %435 = vmatpush1.msra.mxu0 0.0
      %436 = vmatprep.subr.mxu0 0.0
      %437 = vmatpush1.msra.mxu0 0.0
      %438 = vmatprep.subr.mxu0 0.0
      %439 = vmatpush1.msra.mxu0 0.0
      %440 = vmatprep.subr.mxu0 0.0
      %441 = vmatpush1.msra.mxu0 0.0
      %442 = vmatprep.subr.mxu0 0.0
      %443 = vmatpush1.msra.mxu0 0.0
      %444 = vmatprep.subr.mxu0 0.0
      %445 = vmatpush1.msra.mxu0 0.0
      %446 = vmatprep.subr.mxu0 0.0
      %447 = vmatpush1.msra.mxu0 0.0
      %448 = vmatprep.subr.mxu0 0.0
      %449 = vmatpush1.msra.mxu0 0.0
      %450 = vmatprep.subr.mxu0 0.0
      %451 = vmatpush1.msra.mxu0 0.0
      %452 = vmatprep.subr.mxu0 0.0
      %453 = vmatpush1.msra.mxu0 0.0
      %454 = vmatprep.subr.mxu0 0.0
      %455 = vmatpush1.msra.mxu0 0.0
      %456 = vmatprep.subr.mxu0 0.0
      %457 = vmatpush1.msra.mxu0 0.0
      %458 = vmatprep.subr.mxu0 0.0
      %459 = vmatpush1.msra.mxu0 0.0
      %460 = vmatprep.subr.mxu0 0.0
      %461 = vmatpush1.msra.mxu0 0.0
      %462 = vmatprep.subr.mxu0 0.0
      %463 = vmatpush1.msra.mxu0 0.0
      %464 = vmatprep.subr.mxu0 0.0
      %465 = vmatpush1.msra.mxu0 %v377
      %466 = vmatprep.subr.mxu0 0.0
      %467 = vmatpush2.msra.mxu0 0.0
      %468 = vmatprep.subr.mxu0 0.0
      %469 = vmatpush2.msra.mxu0 0.0
      %470 = vmatprep.subr.mxu0 0.0
      %471 = vmatpush2.msra.mxu0 0.0
      %472 = vmatprep.subr.mxu0 0.0
      %473 = vmatpush2.msra.mxu0 0.0
      %474 = vmatprep.subr.mxu0 0.0
      %475 = vmatpush2.msra.mxu0 0.0
      %476 = vmatprep.subr.mxu0 0.0
      %477 = vmatpush2.msra.mxu0 0.0
      %478 = vmatprep.subr.mxu0 0.0
      %479 = vmatpush2.msra.mxu0 0.0
      %480 = vmatprep.subr.mxu0 0.0
      %481 = vmatpush2.msra.mxu0 0.0
      %482 = vmatprep.subr.mxu0 0.0
      %483 = vmatpush2.msra.mxu0 0.0
      %484 = vmatprep.subr.mxu0 0.0
      %485 = vmatpush2.msra.mxu0 0.0
      %486 = vmatprep.subr.mxu0 0.0
      %487 = vmatpush2.msra.mxu0 0.0
      %488 = vmatprep.subr.mxu0 0.0
      %489 = vmatpush2.msra.mxu0 0.0
      %490 = vmatprep.subr.mxu0 0.0
      %491 = vmatpush2.msra.mxu0 0.0
      %492 = vmatprep.subr.mxu0 0.0
      %493 = vmatpush2.msra.mxu0 0.0
      %494 = vmatprep.subr.mxu0 0.0
      %495 = vmatpush2.msra.mxu0 0.0
      %496 = vmatprep.subr.mxu0 0.0
      %497 = vmatpush2.msra.mxu0 0.0
      %498 = vmatprep.mubr.f32.mxu0 0.0
      %499 = vmatmul.mubr.f32.gmra.mxu0 %v387
      %v500 = vpop.f32.mrf.mxu0
      %v501 = vadd.f32 %v383, %v500
      %v502 = vpop.f32.mrf.mxu0
      %503 = vmatprep.mubr.f32.mxu0 0.0
      %504 = vmatmul.mubr.f32.gmra.mxu0 %v390
      %v505 = vpop.f32.mrf.mxu0
      %v506 = vadd.f32 %v383, %v505
      %v507 = vpop.f32.mrf.mxu0
      %508 = vmatprep.mubr.f32.mxu0 0.0
      %509 = vmatmul.mubr.f32.gmra.mxu0 %v393
      %v510 = vpop.f32.mrf.mxu0
      %v511 = vadd.f32 %v383, %v510
      %v512 = vpop.f32.mrf.mxu0
      %513 = vmatprep.mubr.f32.mxu0 0.0
      %514 = vmatmul.mubr.f32.gmra.mxu0 %v396
      %v515 = vpop.f32.mrf.mxu0
      %v516 = vadd.f32 %v383, %v515
      %v517 = vpop.f32.mrf.mxu0
      %518 = vmatprep.mubr.f32.mxu0 0.0
      %519 = vmatmul.mubr.f32.gmra.mxu0 %v399
      %v520 = vpop.f32.mrf.mxu0
      %v521 = vadd.f32 %v383, %v520
      %v522 = vpop.f32.mrf.mxu0
      %523 = vmatprep.mubr.f32.mxu0 0.0
      %524 = vmatmul.mubr.f32.gmra.mxu0 %v402
      %v525 = vpop.f32.mrf.mxu0
      %v526 = vadd.f32 %v383, %v525
      %v527 = vpop.f32.mrf.mxu0
      %528 = vmatprep.mubr.f32.mxu0 0.0
      %529 = vmatmul.mubr.f32.gmra.mxu0 %v405
      %v530 = vpop.f32.mrf.mxu0
      %v531 = vadd.f32 %v383, %v530
      %v532 = vpop.f32.mrf.mxu0
      %533 = vmatprep.mubr.f32.mxu0 0.0
      %534 = vmatmul.mubr.f32.gmra.mxu0 %v408
      %v535 = vpop.f32.mrf.mxu0
      %v536 = vadd.f32 %v383, %v535
      %v537 = vpop.f32.mrf.mxu0
      %538 = vmatprep.mubr.f32.mxu0 0.0
      %539 = vmatmul.mubr.f32.gmra.mxu0 %v411
      %v540 = vpop.f32.mrf.mxu0
      %v541 = vadd.f32 %v383, %v540
      %v542 = vpop.f32.mrf.mxu0
      %543 = vmatprep.mubr.f32.mxu0 0.0
      %544 = vmatmul.mubr.f32.gmra.mxu0 %v414
      %v545 = vpop.f32.mrf.mxu0
      %v546 = vadd.f32 %v383, %v545
      %v547 = vpop.f32.mrf.mxu0
      %548 = vmatprep.mubr.f32.mxu0 0.0
      %549 = vmatmul.mubr.f32.gmra.mxu0 %v417
      %v550 = vpop.f32.mrf.mxu0
      %v551 = vadd.f32 %v383, %v550
      %v552 = vpop.f32.mrf.mxu0
      %553 = vmatprep.mubr.f32.mxu0 0.0
      %554 = vmatmul.mubr.f32.gmra.mxu0 %v420
      %v555 = vpop.f32.mrf.mxu0
      %v556 = vadd.f32 %v383, %v555
      %v557 = vpop.f32.mrf.mxu0
      %558 = vmatprep.mubr.f32.mxu0 0.0
      %559 = vmatmul.mubr.f32.gmra.mxu0 %v423
      %v560 = vpop.f32.mrf.mxu0
      %v561 = vadd.f32 %v383, %v560
      %v562 = vpop.f32.mrf.mxu0
      %563 = vmatprep.mubr.f32.mxu0 0.0
      %564 = vmatmul.mubr.f32.gmra.mxu0 %v426
      %v565 = vpop.f32.mrf.mxu0
      %v566 = vadd.f32 %v383, %v565
      %v567 = vpop.f32.mrf.mxu0
      %568 = vmatprep.mubr.f32.mxu0 0.0
      %569 = vmatmul.mubr.f32.gmra.mxu0 %v429
      %v570 = vpop.f32.mrf.mxu0
      %v571 = vadd.f32 %v383, %v570
      %v572 = vpop.f32.mrf.mxu0
      %573 = vmatprep.mubr.f32.mxu0 0.0
      %574 = vmatmul.mubr.f32.gmra.mxu0 %v432
      %v575 = vpop.f32.mrf.mxu0
      %v576 = vadd.f32 %v383, %v575
      %v577 = vpop.f32.mrf.mxu0
      %578 = vdwg.mxu0
      %vm579 = vcmp.ge.f32.partialorder %v501, 0.0
      %vm580 = vcmp.ge.f32.partialorder %v506, 0.0
      %vm581 = vcmp.ge.f32.partialorder %v511, 0.0
      %vm582 = vcmp.ge.f32.partialorder %v516, 0.0
      %vm583 = vcmp.ge.f32.partialorder %v521, 0.0
      %vm584 = vcmp.ge.f32.partialorder %v526, 0.0
      %vm585 = vcmp.ge.f32.partialorder %v531, 0.0
      %vm586 = vcmp.ge.f32.partialorder %v536, 0.0
      %vm587 = vcmp.ge.f32.partialorder %v541, 0.0
      %vm588 = vcmp.ge.f32.partialorder %v546, 0.0
      %vm589 = vcmp.ge.f32.partialorder %v551, 0.0
      %vm590 = vcmp.ge.f32.partialorder %v556, 0.0
      %vm591 = vcmp.ge.f32.partialorder %v561, 0.0
      %vm592 = vcmp.ge.f32.partialorder %v566, 0.0
      %vm593 = vcmp.ge.f32.partialorder %v571, 0.0
      %vm594 = vcmp.ge.f32.partialorder %v576, 0.0
      %v595 = vmul.f32 %v501, 0.2
      %v596 = vmul.f32 %v506, 0.2
      %v597 = vmul.f32 %v511, 0.2
      %v598 = vmul.f32 %v516, 0.2
      %v599 = vmul.f32 %v521, 0.2
      %v600 = vmul.f32 %v526, 0.2
      %v601 = vmul.f32 %v531, 0.2
      %v602 = vmul.f32 %v536, 0.2
      %v603 = vmul.f32 %v541, 0.2
      %v604 = vmul.f32 %v546, 0.2
      %v605 = vmul.f32 %v551, 0.2
      %v606 = vmul.f32 %v556, 0.2
      %v607 = vmul.f32 %v561, 0.2
      %v608 = vmul.f32 %v566, 0.2
      %v609 = vmul.f32 %v571, 0.2
      %v610 = vmul.f32 %v576, 0.2
      %v611 = vsel %vm579, %v501, %v595
      %v612 = vsel %vm580, %v506, %v596
      %v613 = vsel %vm581, %v511, %v597
      %v614 = vsel %vm582, %v516, %v598
      %v615 = vsel %vm583, %v521, %v599
      %v616 = vsel %vm584, %v526, %v600
      %v617 = vsel %vm585, %v531, %v601
      %v618 = vsel %vm586, %v536, %v602
      %v619 = vsel %vm587, %v541, %v603
      %v620 = vsel %vm588, %v546, %v604
      %v621 = vsel %vm589, %v551, %v605
      %v622 = vsel %vm590, %v556, %v606
      %v623 = vsel %vm591, %v561, %v607
      %v624 = vsel %vm592, %v566, %v608
      %v625 = vsel %vm593, %v571, %v609
      %v626 = vsel %vm594, %v576, %v610
      %v627 = vld [vmem:[%s3] sm:$0xff]
      %v628 = vld [vmem:[%s3 + $0x8] sm:$0xff]
      %v629 = vld [vmem:[%s4] sm:$0x1]
      %v631 = vlaneseq
      %v632 = vshrl.u32 %v631, 7
      %v633 = vsub.s32 0, %v632
      %v634 = vrot.slane %v629, %v633
      %vm636 = vcmask 130048
      %v638 = vsel %vm636, %v611, 0
      %v641 = vsel %vm636, %v612, 0
      %v644 = vsel %vm636, %v613, 0
      %v647 = vsel %vm636, %v614, 0
      %v650 = vsel %vm636, %v615, 0
      %v653 = vsel %vm636, %v616, 0
      %v656 = vsel %vm636, %v617, 0
      %v659 = vsel %vm636, %v618, 0
      %v662 = vsel %vm636, %v619, 0
      %v665 = vsel %vm636, %v620, 0
      %v668 = vsel %vm636, %v621, 0
      %v671 = vsel %vm636, %v622, 0
      %v674 = vsel %vm636, %v623, 0
      %v677 = vsel %vm636, %v624, 0
      %v680 = vsel %vm636, %v625, 0
      %v683 = vsel %vm636, %v626, 0
      %685 = vmatprep.subr.mxu0 0.0
      %686 = vmatpush1.msra.mxu0 0.0
      %687 = vmatprep.subr.mxu0 0.0
      %688 = vmatpush1.msra.mxu0 0.0
      %689 = vmatprep.subr.mxu0 0.0
      %690 = vmatpush1.msra.mxu0 0.0
      %691 = vmatprep.subr.mxu0 0.0
      %692 = vmatpush1.msra.mxu0 0.0
      %693 = vmatprep.subr.mxu0 0.0
      %694 = vmatpush1.msra.mxu0 0.0
      %695 = vmatprep.subr.mxu0 0.0
      %696 = vmatpush1.msra.mxu0 0.0
      %697 = vmatprep.subr.mxu0 0.0
      %698 = vmatpush1.msra.mxu0 0.0
      %699 = vmatprep.subr.mxu0 0.0
      %700 = vmatpush1.msra.mxu0 0.0
      %701 = vmatprep.subr.mxu0 0.0
      %702 = vmatpush1.msra.mxu0 0.0
      %703 = vmatprep.subr.mxu0 0.0
      %704 = vmatpush1.msra.mxu0 0.0
      %705 = vmatprep.subr.mxu0 0.0
      %706 = vmatpush1.msra.mxu0 0.0
      %707 = vmatprep.subr.mxu0 0.0
      %708 = vmatpush1.msra.mxu0 0.0
      %709 = vmatprep.subr.mxu0 0.0
      %710 = vmatpush1.msra.mxu0 0.0
      %711 = vmatprep.subr.mxu0 0.0
      %712 = vmatpush1.msra.mxu0 0.0
      %713 = vmatprep.subr.mxu0 0.0
      %714 = vmatpush1.msra.mxu0 %v628
      %715 = vmatprep.subr.mxu0 0.0
      %716 = vmatpush1.msra.mxu0 %v627
      %717 = vmatprep.subr.mxu0 0.0
      %718 = vmatpush2.msra.mxu0 0.0
      %719 = vmatprep.subr.mxu0 0.0
      %720 = vmatpush2.msra.mxu0 0.0
      %721 = vmatprep.subr.mxu0 0.0
      %722 = vmatpush2.msra.mxu0 0.0
      %723 = vmatprep.subr.mxu0 0.0
      %724 = vmatpush2.msra.mxu0 0.0
      %725 = vmatprep.subr.mxu0 0.0
      %726 = vmatpush2.msra.mxu0 0.0
      %727 = vmatprep.subr.mxu0 0.0
      %728 = vmatpush2.msra.mxu0 0.0
      %729 = vmatprep.subr.mxu0 0.0
      %730 = vmatpush2.msra.mxu0 0.0
      %731 = vmatprep.subr.mxu0 0.0
      %732 = vmatpush2.msra.mxu0 0.0
      %733 = vmatprep.subr.mxu0 0.0
      %734 = vmatpush2.msra.mxu0 0.0
      %735 = vmatprep.subr.mxu0 0.0
      %736 = vmatpush2.msra.mxu0 0.0
      %737 = vmatprep.subr.mxu0 0.0
      %738 = vmatpush2.msra.mxu0 0.0
      %739 = vmatprep.subr.mxu0 0.0
      %740 = vmatpush2.msra.mxu0 0.0
      %741 = vmatprep.subr.mxu0 0.0
      %742 = vmatpush2.msra.mxu0 0.0
      %743 = vmatprep.subr.mxu0 0.0
      %744 = vmatpush2.msra.mxu0 0.0
      %745 = vmatprep.subr.mxu0 0.0
      %746 = vmatpush2.msra.mxu0 0.0
      %747 = vmatprep.subr.mxu0 0.0
      %748 = vmatpush2.msra.mxu0 0.0
      %749 = vmatprep.mubr.f32.mxu0 0.0
      %750 = vmatmul.mubr.f32.gmra.mxu0 %v638
      %v751 = vpop.f32.mrf.mxu0
      %v752 = vadd.f32 %v634, %v751
      %v753 = vpop.f32.mrf.mxu0
      %754 = vmatprep.mubr.f32.mxu0 0.0
      %755 = vmatmul.mubr.f32.gmra.mxu0 %v641
      %v756 = vpop.f32.mrf.mxu0
      %v757 = vadd.f32 %v634, %v756
      %v758 = vpop.f32.mrf.mxu0
      %759 = vmatprep.mubr.f32.mxu0 0.0
      %760 = vmatmul.mubr.f32.gmra.mxu0 %v644
      %v761 = vpop.f32.mrf.mxu0
      %v762 = vadd.f32 %v634, %v761
      %v763 = vpop.f32.mrf.mxu0
      %764 = vmatprep.mubr.f32.mxu0 0.0
      %765 = vmatmul.mubr.f32.gmra.mxu0 %v647
      %v766 = vpop.f32.mrf.mxu0
      %v767 = vadd.f32 %v634, %v766
      %v768 = vpop.f32.mrf.mxu0
      %769 = vmatprep.mubr.f32.mxu0 0.0
      %770 = vmatmul.mubr.f32.gmra.mxu0 %v650
      %v771 = vpop.f32.mrf.mxu0
      %v772 = vadd.f32 %v634, %v771
      %v773 = vpop.f32.mrf.mxu0
      %774 = vmatprep.mubr.f32.mxu0 0.0
      %775 = vmatmul.mubr.f32.gmra.mxu0 %v653
      %v776 = vpop.f32.mrf.mxu0
      %v777 = vadd.f32 %v634, %v776
      %v778 = vpop.f32.mrf.mxu0
      %779 = vmatprep.mubr.f32.mxu0 0.0
      %780 = vmatmul.mubr.f32.gmra.mxu0 %v656
      %v781 = vpop.f32.mrf.mxu0
      %v782 = vadd.f32 %v634, %v781
      %v783 = vpop.f32.mrf.mxu0
      %784 = vmatprep.mubr.f32.mxu0 0.0
      %785 = vmatmul.mubr.f32.gmra.mxu0 %v659
      %v786 = vpop.f32.mrf.mxu0
      %v787 = vadd.f32 %v634, %v786
      %v788 = vpop.f32.mrf.mxu0
      %789 = vmatprep.mubr.f32.mxu0 0.0
      %790 = vmatmul.mubr.f32.gmra.mxu0 %v662
      %v791 = vpop.f32.mrf.mxu0
      %v792 = vadd.f32 %v634, %v791
      %v793 = vpop.f32.mrf.mxu0
      %794 = vmatprep.mubr.f32.mxu0 0.0
      %795 = vmatmul.mubr.f32.gmra.mxu0 %v665
      %v796 = vpop.f32.mrf.mxu0
      %v797 = vadd.f32 %v634, %v796
      %v798 = vpop.f32.mrf.mxu0
      %799 = vmatprep.mubr.f32.mxu0 0.0
      %800 = vmatmul.mubr.f32.gmra.mxu0 %v668
      %v801 = vpop.f32.mrf.mxu0
      %v802 = vadd.f32 %v634, %v801
      %v803 = vpop.f32.mrf.mxu0
      %804 = vmatprep.mubr.f32.mxu0 0.0
      %805 = vmatmul.mubr.f32.gmra.mxu0 %v671
      %v806 = vpop.f32.mrf.mxu0
      %v807 = vadd.f32 %v634, %v806
      %v808 = vpop.f32.mrf.mxu0
      %809 = vmatprep.mubr.f32.mxu0 0.0
      %810 = vmatmul.mubr.f32.gmra.mxu0 %v674
      %v811 = vpop.f32.mrf.mxu0
      %v812 = vadd.f32 %v634, %v811
      %v813 = vpop.f32.mrf.mxu0
      %814 = vmatprep.mubr.f32.mxu0 0.0
      %815 = vmatmul.mubr.f32.gmra.mxu0 %v677
      %v816 = vpop.f32.mrf.mxu0
      %v817 = vadd.f32 %v634, %v816
      %v818 = vpop.f32.mrf.mxu0
      %819 = vmatprep.mubr.f32.mxu0 0.0
      %820 = vmatmul.mubr.f32.gmra.mxu0 %v680
      %v821 = vpop.f32.mrf.mxu0
      %v822 = vadd.f32 %v634, %v821
      %v823 = vpop.f32.mrf.mxu0
      %824 = vmatprep.mubr.f32.mxu0 0.0
      %825 = vmatmul.mubr.f32.gmra.mxu0 %v683
      %v826 = vpop.f32.mrf.mxu0
      %v827 = vadd.f32 %v634, %v826
      %v828 = vpop.f32.mrf.mxu0
      %829 = vdwg.mxu0
      %vm830 = vcmp.ge.f32.partialorder %v752, 0.0
      %vm831 = vcmp.ge.f32.partialorder %v757, 0.0
      %vm832 = vcmp.ge.f32.partialorder %v762, 0.0
      %vm833 = vcmp.ge.f32.partialorder %v767, 0.0
      %vm834 = vcmp.ge.f32.partialorder %v772, 0.0
      %vm835 = vcmp.ge.f32.partialorder %v777, 0.0
      %vm836 = vcmp.ge.f32.partialorder %v782, 0.0
      %vm837 = vcmp.ge.f32.partialorder %v787, 0.0
      %vm838 = vcmp.ge.f32.partialorder %v792, 0.0
      %vm839 = vcmp.ge.f32.partialorder %v797, 0.0
      %vm840 = vcmp.ge.f32.partialorder %v802, 0.0
      %vm841 = vcmp.ge.f32.partialorder %v807, 0.0
      %vm842 = vcmp.ge.f32.partialorder %v812, 0.0
      %vm843 = vcmp.ge.f32.partialorder %v817, 0.0
      %vm844 = vcmp.ge.f32.partialorder %v822, 0.0
      %vm845 = vcmp.ge.f32.partialorder %v827, 0.0
      %v846 = vmul.f32 %v752, 0.2
      %v847 = vmul.f32 %v757, 0.2
      %v848 = vmul.f32 %v762, 0.2
      %v849 = vmul.f32 %v767, 0.2
      %v850 = vmul.f32 %v772, 0.2
      %v851 = vmul.f32 %v777, 0.2
      %v852 = vmul.f32 %v782, 0.2
      %v853 = vmul.f32 %v787, 0.2
      %v854 = vmul.f32 %v792, 0.2
      %v855 = vmul.f32 %v797, 0.2
      %v856 = vmul.f32 %v802, 0.2
      %v857 = vmul.f32 %v807, 0.2
      %v858 = vmul.f32 %v812, 0.2
      %v859 = vmul.f32 %v817, 0.2
      %v860 = vmul.f32 %v822, 0.2
      %v861 = vmul.f32 %v827, 0.2
      %v862 = vsel %vm830, %v752, %v846
      %v863 = vsel %vm831, %v757, %v847
      %v864 = vsel %vm832, %v762, %v848
      %v865 = vsel %vm833, %v767, %v849
      %v866 = vsel %vm834, %v772, %v850
      %v867 = vsel %vm835, %v777, %v851
      %v868 = vsel %vm836, %v782, %v852
      %v869 = vsel %vm837, %v787, %v853
      %v870 = vsel %vm838, %v792, %v854
      %v871 = vsel %vm839, %v797, %v855
      %v872 = vsel %vm840, %v802, %v856
      %v873 = vsel %vm841, %v807, %v857
      %v874 = vsel %vm842, %v812, %v858
      %v875 = vsel %vm843, %v817, %v859
      %v876 = vsel %vm844, %v822, %v860
      %v877 = vsel %vm845, %v827, %v861
      %vm878 = vcmask 253952
      %879 = vst.msk [vmem:[#allocation2] sm:$0x1] %vm878, 0.0
      %880 = vst.msk [vmem:[#allocation2 + $0x18] sm:$0x1] %vm878, 0.0
      %881 = vst.msk [vmem:[#allocation2 + $0x30] sm:$0x1] %vm878, 0.0
      %882 = vst.msk [vmem:[#allocation2 + $0x48] sm:$0x1] %vm878, 0.0
      %883 = vst.msk [vmem:[#allocation2 + $0x60] sm:$0x1] %vm878, 0.0
      %884 = vst.msk [vmem:[#allocation2 + $0x78] sm:$0x1] %vm878, 0.0
      %885 = vst.msk [vmem:[#allocation2 + $0x90] sm:$0x1] %vm878, 0.0
      %886 = vst.msk [vmem:[#allocation2 + $0xa8] sm:$0x1] %vm878, 0.0
      %887 = vst.msk [vmem:[#allocation2 + $0x11] sm:$0x1] %vm878, 0.0
      %888 = vst.msk [vmem:[#allocation2 + $0x29] sm:$0x1] %vm878, 0.0
      %889 = vst.msk [vmem:[#allocation2 + $0x41] sm:$0x1] %vm878, 0.0
      %890 = vst.msk [vmem:[#allocation2 + $0x59] sm:$0x1] %vm878, 0.0
      %891 = vst.msk [vmem:[#allocation2 + $0x71] sm:$0x1] %vm878, 0.0
      %892 = vst.msk [vmem:[#allocation2 + $0x89] sm:$0x1] %vm878, 0.0
      %893 = vst.msk [vmem:[#allocation2 + $0xa1] sm:$0x1] %vm878, 0.0
      %894 = vst.msk [vmem:[#allocation2 + $0xb9] sm:$0x1] %vm878, 0.0
      %vm895 = vcmask 261120
      %896 = vst.msk [vmem:[#allocation2 + $0x1] sm:$0xff] %vm895, %v862
      %897 = vst.msk [vmem:[#allocation2 + $0x9] sm:$0xff] %vm895, %v863
      %898 = vst.msk [vmem:[#allocation2 + $0x19] sm:$0xff] %vm895, %v864
      %899 = vst.msk [vmem:[#allocation2 + $0x21] sm:$0xff] %vm895, %v865
      %900 = vst.msk [vmem:[#allocation2 + $0x31] sm:$0xff] %vm895, %v866
      %901 = vst.msk [vmem:[#allocation2 + $0x39] sm:$0xff] %vm895, %v867
      %902 = vst.msk [vmem:[#allocation2 + $0x49] sm:$0xff] %vm895, %v868
      %903 = vst.msk [vmem:[#allocation2 + $0x51] sm:$0xff] %vm895, %v869
      %904 = vst.msk [vmem:[#allocation2 + $0x61] sm:$0xff] %vm895, %v870
      %905 = vst.msk [vmem:[#allocation2 + $0x69] sm:$0xff] %vm895, %v871
      %906 = vst.msk [vmem:[#allocation2 + $0x79] sm:$0xff] %vm895, %v872
      %907 = vst.msk [vmem:[#allocation2 + $0x81] sm:$0xff] %vm895, %v873
      %908 = vst.msk [vmem:[#allocation2 + $0x91] sm:$0xff] %vm895, %v874
      %909 = vst.msk [vmem:[#allocation2 + $0x99] sm:$0xff] %vm895, %v875
      %910 = vst.msk [vmem:[#allocation2 + $0xa9] sm:$0xff] %vm895, %v876
      %911 = vst.msk [vmem:[#allocation2 + $0xb1] sm:$0xff] %vm895, %v877
      %p912 = scmp.eq.s32.totalorder %s25, 0
      // Predicated region
      $region57: #{tpu_custom_call.1} parent=55 // pred_check
        %p913 = pneg %p912
      $region58: #{tpu_custom_call.1} parent=55 // pred_check_branch
        %915 = sbr.rel (%p913) target = $region60
      $region59: #{tpu_custom_call.1} parent=55 // pred_region
        %916 = vst.msk [vmem:[#allocation2] sm:$0xff] %vm895, 0.0
        %917 = vst.msk [vmem:[#allocation2 + $0x8] sm:$0xff] %vm895, 0.0
        %vm918 = vcmask 254976
        %919 = vst.msk [vmem:[#allocation2 + $0x10] sm:$0x3] %vm918, 0.0
        %920 = vst.msk [vmem:[#allocation2 + $0x18] sm:$0xff] %vm895, 0.0
        %921 = vst.msk [vmem:[#allocation2 + $0x20] sm:$0xff] %vm895, 0.0
        %922 = vst.msk [vmem:[#allocation2 + $0x28] sm:$0x3] %vm918, 0.0
      $region60: #{tpu_custom_call.1} parent=55 // pred_fallthru
        _
      %p923 = scmp.eq.s32.totalorder %s25, 3
      // Predicated region
      $region61: #{tpu_custom_call.1} parent=55 // pred_check
        %p924 = pneg %p923
      $region62: #{tpu_custom_call.1} parent=55 // pred_check_branch
        %926 = sbr.rel (%p924) target = $region64
      $region63: #{tpu_custom_call.1} parent=55 // pred_region
        %s927 = scalar_lea.vmem [#allocation2], 144
        %928 = vst.msk [vmem:[%s927] sm:$0xff] %vm895, 0.0
        %929 = vst.msk [vmem:[%s927 + $0x8] sm:$0xff] %vm895, 0.0
        %vm930 = vcmask 254976
        %931 = vst.msk [vmem:[%s927 + $0x10] sm:$0x3] %vm930, 0.0
        %932 = vst.msk [vmem:[%s927 + $0x18] sm:$0xff] %vm895, 0.0
        %933 = vst.msk [vmem:[%s927 + $0x20] sm:$0xff] %vm895, 0.0
        %934 = vst.msk [vmem:[%s927 + $0x28] sm:$0x3] %vm930, 0.0
      $region64: #{tpu_custom_call.1} parent=55 // pred_fallthru
        _
      %v935 = vld [vmem:[#allocation2] sm:$0xff]
      %v936 = vld [vmem:[#allocation2 + $0x8] sm:$0xff]
      %v937 = vld [vmem:[#allocation2 + $0x18] sm:$0xff]
      %v938 = vld [vmem:[#allocation2 + $0x20] sm:$0xff]
      %v939 = vld [vmem:[#allocation2 + $0x30] sm:$0xff]
      %v940 = vld [vmem:[#allocation2 + $0x38] sm:$0xff]
      %v941 = vld [vmem:[#allocation2 + $0x48] sm:$0xff]
      %v942 = vld [vmem:[#allocation2 + $0x50] sm:$0xff]
      %v943 = vld [vmem:[#allocation2 + $0x60] sm:$0xff]
      %v944 = vld [vmem:[#allocation2 + $0x68] sm:$0xff]
      %v945 = vld [vmem:[#allocation2 + $0x78] sm:$0xff]
      %v946 = vld [vmem:[#allocation2 + $0x80] sm:$0xff]
      %v947 = vld [vmem:[%s5] sm:$0xff]
      %v948 = vld [vmem:[%s5 + $0x8] sm:$0xff]
      %v949 = vld [vmem:[%s5 + $0x10] sm:$0xff]
      %v950 = vld [vmem:[%s5 + $0x18] sm:$0xff]
      %v951 = vld [vmem:[#allocation2 + $0x1] sm:$0xff]
      %v952 = vld [vmem:[#allocation2 + $0x9] sm:$0xff]
      %v953 = vld [vmem:[#allocation2 + $0x19] sm:$0xff]
      %v954 = vld [vmem:[#allocation2 + $0x21] sm:$0xff]
      %v955 = vld [vmem:[#allocation2 + $0x31] sm:$0xff]
      %v956 = vld [vmem:[#allocation2 + $0x39] sm:$0xff]
      %v957 = vld [vmem:[#allocation2 + $0x49] sm:$0xff]
      %v958 = vld [vmem:[#allocation2 + $0x51] sm:$0xff]
      %v959 = vld [vmem:[#allocation2 + $0x61] sm:$0xff]
      %v960 = vld [vmem:[#allocation2 + $0x69] sm:$0xff]
      %v961 = vld [vmem:[#allocation2 + $0x79] sm:$0xff]
      %v962 = vld [vmem:[#allocation2 + $0x81] sm:$0xff]
      %s963 = scalar_lea.vmem %s5, 32
      %v964 = vld [vmem:[%s963] sm:$0xff]
      %v965 = vld [vmem:[%s963 + $0x8] sm:$0xff]
      %v966 = vld [vmem:[%s963 + $0x10] sm:$0xff]
      %v967 = vld [vmem:[%s963 + $0x18] sm:$0xff]
      %v969 = vsel %vm895, %v951, 0
      %v972 = vsel %vm895, %v952, 0
      %v975 = vsel %vm895, %v953, 0
      %v978 = vsel %vm895, %v954, 0
      %v981 = vsel %vm895, %v955, 0
      %v984 = vsel %vm895, %v956, 0
      %v987 = vsel %vm895, %v957, 0
      %v990 = vsel %vm895, %v958, 0
      %v993 = vsel %vm895, %v959, 0
      %v996 = vsel %vm895, %v960, 0
      %v999 = vsel %vm895, %v961, 0
      %v1002 = vsel %vm895, %v962, 0
      %1004 = vmatprep.subr.mxu0 0.0
      %1005 = vmatpush1.msra.mxu0 0.0
      %1006 = vmatprep.subr.mxu0 0.0
      %1007 = vmatpush1.msra.mxu0 0.0
      %1008 = vmatprep.subr.mxu0 0.0
      %1009 = vmatpush1.msra.mxu0 0.0
      %1010 = vmatprep.subr.mxu0 0.0
      %1011 = vmatpush1.msra.mxu0 0.0
      %1012 = vmatprep.subr.mxu0 0.0
      %1013 = vmatpush1.msra.mxu0 0.0
      %1014 = vmatprep.subr.mxu0 0.0
      %1015 = vmatpush1.msra.mxu0 0.0
      %1016 = vmatprep.subr.mxu0 0.0
      %1017 = vmatpush1.msra.mxu0 0.0
      %1018 = vmatprep.subr.mxu0 0.0
      %1019 = vmatpush1.msra.mxu0 0.0
      %1020 = vmatprep.subr.mxu0 0.0
      %1021 = vmatpush1.msra.mxu0 0.0
      %1022 = vmatprep.subr.mxu0 0.0
      %1023 = vmatpush1.msra.mxu0 0.0
      %1024 = vmatprep.subr.mxu0 0.0
      %1025 = vmatpush1.msra.mxu0 0.0
      %1026 = vmatprep.subr.mxu0 0.0
      %1027 = vmatpush1.msra.mxu0 0.0
      %1028 = vmatprep.subr.mxu0 0.0
      %1029 = vmatpush1.msra.mxu0 %v967
      %1030 = vmatprep.subr.mxu0 0.0
      %1031 = vmatpush1.msra.mxu0 %v966
      %1032 = vmatprep.subr.mxu0 0.0
      %1033 = vmatpush1.msra.mxu0 %v965
      %1034 = vmatprep.subr.mxu0 0.0
      %1035 = vmatpush1.msra.mxu0 %v964
      %1036 = vmatprep.subr.mxu0 0.0
      %1037 = vmatpush2.msra.mxu0 0.0
      %1038 = vmatprep.subr.mxu0 0.0
      %1039 = vmatpush2.msra.mxu0 0.0
      %1040 = vmatprep.subr.mxu0 0.0
      %1041 = vmatpush2.msra.mxu0 0.0
      %1042 = vmatprep.subr.mxu0 0.0
      %1043 = vmatpush2.msra.mxu0 0.0
      %1044 = vmatprep.subr.mxu0 0.0
      %1045 = vmatpush2.msra.mxu0 0.0
      %1046 = vmatprep.subr.mxu0 0.0
      %1047 = vmatpush2.msra.mxu0 0.0
      %1048 = vmatprep.subr.mxu0 0.0
      %1049 = vmatpush2.msra.mxu0 0.0
      %1050 = vmatprep.subr.mxu0 0.0
      %1051 = vmatpush2.msra.mxu0 0.0
      %1052 = vmatprep.subr.mxu0 0.0
      %1053 = vmatpush2.msra.mxu0 0.0
      %1054 = vmatprep.subr.mxu0 0.0
      %1055 = vmatpush2.msra.mxu0 0.0
      %1056 = vmatprep.subr.mxu0 0.0
      %1057 = vmatpush2.msra.mxu0 0.0
      %1058 = vmatprep.subr.mxu0 0.0
      %1059 = vmatpush2.msra.mxu0 0.0
      %1060 = vmatprep.subr.mxu0 0.0
      %1061 = vmatpush2.msra.mxu0 0.0
      %1062 = vmatprep.subr.mxu0 0.0
      %1063 = vmatpush2.msra.mxu0 0.0
      %1064 = vmatprep.subr.mxu0 0.0
      %1065 = vmatpush2.msra.mxu0 0.0
      %1066 = vmatprep.subr.mxu0 0.0
      %1067 = vmatpush2.msra.mxu0 0.0
      %1068 = vmatprep.mubr.f32.mxu0 0.0
      %1069 = vmatmul.mubr.f32.gmra.mxu0 %v969
      %v1070 = vpop.f32.mrf.mxu0
      %v1071 = vadd.f32 0.0, %v1070
      %v1072 = vpop.f32.mrf.mxu0
      %1073 = vmatprep.mubr.f32.mxu0 0.0
      %1074 = vmatmul.mubr.f32.gmra.mxu0 %v972
      %v1075 = vpop.f32.mrf.mxu0
      %v1076 = vadd.f32 0.0, %v1075
      %v1077 = vpop.f32.mrf.mxu0
      %1078 = vmatprep.mubr.f32.mxu0 0.0
      %1079 = vmatmul.mubr.f32.gmra.mxu0 %v975
      %v1080 = vpop.f32.mrf.mxu0
      %v1081 = vadd.f32 0.0, %v1080
      %v1082 = vpop.f32.mrf.mxu0
      %1083 = vmatprep.mubr.f32.mxu0 0.0
      %1084 = vmatmul.mubr.f32.gmra.mxu0 %v978
      %v1085 = vpop.f32.mrf.mxu0
      %v1086 = vadd.f32 0.0, %v1085
      %v1087 = vpop.f32.mrf.mxu0
      %1088 = vmatprep.mubr.f32.mxu0 0.0
      %1089 = vmatmul.mubr.f32.gmra.mxu0 %v981
      %v1090 = vpop.f32.mrf.mxu0
      %v1091 = vadd.f32 0.0, %v1090
      %v1092 = vpop.f32.mrf.mxu0
      %1093 = vmatprep.mubr.f32.mxu0 0.0
      %1094 = vmatmul.mubr.f32.gmra.mxu0 %v984
      %v1095 = vpop.f32.mrf.mxu0
      %v1096 = vadd.f32 0.0, %v1095
      %v1097 = vpop.f32.mrf.mxu0
      %1098 = vmatprep.mubr.f32.mxu0 0.0
      %1099 = vmatmul.mubr.f32.gmra.mxu0 %v987
      %v1100 = vpop.f32.mrf.mxu0
      %v1101 = vadd.f32 0.0, %v1100
      %v1102 = vpop.f32.mrf.mxu0
      %1103 = vmatprep.mubr.f32.mxu0 0.0
      %1104 = vmatmul.mubr.f32.gmra.mxu0 %v990
      %v1105 = vpop.f32.mrf.mxu0
      %v1106 = vadd.f32 0.0, %v1105
      %v1107 = vpop.f32.mrf.mxu0
      %1108 = vmatprep.mubr.f32.mxu0 0.0
      %1109 = vmatmul.mubr.f32.gmra.mxu0 %v993
      %v1110 = vpop.f32.mrf.mxu0
      %v1111 = vadd.f32 0.0, %v1110
      %v1112 = vpop.f32.mrf.mxu0
      %1113 = vmatprep.mubr.f32.mxu0 0.0
      %1114 = vmatmul.mubr.f32.gmra.mxu0 %v996
      %v1115 = vpop.f32.mrf.mxu0
      %v1116 = vadd.f32 0.0, %v1115
      %v1117 = vpop.f32.mrf.mxu0
      %1118 = vmatprep.mubr.f32.mxu0 0.0
      %1119 = vmatmul.mubr.f32.gmra.mxu0 %v999
      %v1120 = vpop.f32.mrf.mxu0
      %v1121 = vadd.f32 0.0, %v1120
      %v1122 = vpop.f32.mrf.mxu0
      %1123 = vmatprep.mubr.f32.mxu0 0.0
      %1124 = vmatmul.mubr.f32.gmra.mxu0 %v1002
      %v1125 = vpop.f32.mrf.mxu0
      %v1126 = vadd.f32 0.0, %v1125
      %v1127 = vpop.f32.mrf.mxu0
      %1128 = vdwg.mxu0
      %v1130 = vsel %vm895, %v935, 0
      %v1133 = vsel %vm895, %v936, 0
      %v1136 = vsel %vm895, %v937, 0
      %v1139 = vsel %vm895, %v938, 0
      %v1142 = vsel %vm895, %v939, 0
      %v1145 = vsel %vm895, %v940, 0
      %v1148 = vsel %vm895, %v941, 0
      %v1151 = vsel %vm895, %v942, 0
      %v1154 = vsel %vm895, %v943, 0
      %v1157 = vsel %vm895, %v944, 0
      %v1160 = vsel %vm895, %v945, 0
      %v1163 = vsel %vm895, %v946, 0
      %1165 = vmatprep.subr.mxu0 0.0
      %1166 = vmatpush1.msra.mxu0 0.0
      %1167 = vmatprep.subr.mxu0 0.0
      %1168 = vmatpush1.msra.mxu0 0.0
      %1169 = vmatprep.subr.mxu0 0.0
      %1170 = vmatpush1.msra.mxu0 0.0
      %1171 = vmatprep.subr.mxu0 0.0
      %1172 = vmatpush1.msra.mxu0 0.0
      %1173 = vmatprep.subr.mxu0 0.0
      %1174 = vmatpush1.msra.mxu0 0.0
      %1175 = vmatprep.subr.mxu0 0.0
      %1176 = vmatpush1.msra.mxu0 0.0
      %1177 = vmatprep.subr.mxu0 0.0
      %1178 = vmatpush1.msra.mxu0 0.0
      %1179 = vmatprep.subr.mxu0 0.0
      %1180 = vmatpush1.msra.mxu0 0.0
      %1181 = vmatprep.subr.mxu0 0.0
      %1182 = vmatpush1.msra.mxu0 0.0
      %1183 = vmatprep.subr.mxu0 0.0
      %1184 = vmatpush1.msra.mxu0 0.0
      %1185 = vmatprep.subr.mxu0 0.0
      %1186 = vmatpush1.msra.mxu0 0.0
      %1187 = vmatprep.subr.mxu0 0.0
      %1188 = vmatpush1.msra.mxu0 0.0
      %1189 = vmatprep.subr.mxu0 0.0
      %1190 = vmatpush1.msra.mxu0 %v950
      %1191 = vmatprep.subr.mxu0 0.0
      %1192 = vmatpush1.msra.mxu0 %v949
      %1193 = vmatprep.subr.mxu0 0.0
      %1194 = vmatpush1.msra.mxu0 %v948
      %1195 = vmatprep.subr.mxu0 0.0
      %1196 = vmatpush1.msra.mxu0 %v947
      %1197 = vmatprep.subr.mxu0 0.0
      %1198 = vmatpush2.msra.mxu0 0.0
      %1199 = vmatprep.subr.mxu0 0.0
      %1200 = vmatpush2.msra.mxu0 0.0
      %1201 = vmatprep.subr.mxu0 0.0
      %1202 = vmatpush2.msra.mxu0 0.0
      %1203 = vmatprep.subr.mxu0 0.0
      %1204 = vmatpush2.msra.mxu0 0.0
      %1205 = vmatprep.subr.mxu0 0.0
      %1206 = vmatpush2.msra.mxu0 0.0
      %1207 = vmatprep.subr.mxu0 0.0
      %1208 = vmatpush2.msra.mxu0 0.0
      %1209 = vmatprep.subr.mxu0 0.0
      %1210 = vmatpush2.msra.mxu0 0.0
      %1211 = vmatprep.subr.mxu0 0.0
      %1212 = vmatpush2.msra.mxu0 0.0
      %1213 = vmatprep.subr.mxu0 0.0
      %1214 = vmatpush2.msra.mxu0 0.0
      %1215 = vmatprep.subr.mxu0 0.0
      %1216 = vmatpush2.msra.mxu0 0.0
      %1217 = vmatprep.subr.mxu0 0.0
      %1218 = vmatpush2.msra.mxu0 0.0
      %1219 = vmatprep.subr.mxu0 0.0
      %1220 = vmatpush2.msra.mxu0 0.0
      %1221 = vmatprep.subr.mxu0 0.0
      %1222 = vmatpush2.msra.mxu0 0.0
      %1223 = vmatprep.subr.mxu0 0.0
      %1224 = vmatpush2.msra.mxu0 0.0
      %1225 = vmatprep.subr.mxu0 0.0
      %1226 = vmatpush2.msra.mxu0 0.0
      %1227 = vmatprep.subr.mxu0 0.0
      %1228 = vmatpush2.msra.mxu0 0.0
      %1229 = vmatprep.mubr.f32.mxu0 0.0
      %1230 = vmatmul.mubr.f32.gmra.mxu0 %v1130
      %v1231 = vpop.f32.mrf.mxu0
      %v1232 = vadd.f32 %v1071, %v1231
      %v1233 = vpop.f32.mrf.mxu0
      %1234 = vmatprep.mubr.f32.mxu0 0.0
      %1235 = vmatmul.mubr.f32.gmra.mxu0 %v1133
      %v1236 = vpop.f32.mrf.mxu0
      %v1237 = vadd.f32 %v1076, %v1236
      %v1238 = vpop.f32.mrf.mxu0
      %1239 = vmatprep.mubr.f32.mxu0 0.0
      %1240 = vmatmul.mubr.f32.gmra.mxu0 %v1136
      %v1241 = vpop.f32.mrf.mxu0
      %v1242 = vadd.f32 %v1081, %v1241
      %v1243 = vpop.f32.mrf.mxu0
      %1244 = vmatprep.mubr.f32.mxu0 0.0
      %1245 = vmatmul.mubr.f32.gmra.mxu0 %v1139
      %v1246 = vpop.f32.mrf.mxu0
      %v1247 = vadd.f32 %v1086, %v1246
      %v1248 = vpop.f32.mrf.mxu0
      %1249 = vmatprep.mubr.f32.mxu0 0.0
      %1250 = vmatmul.mubr.f32.gmra.mxu0 %v1142
      %v1251 = vpop.f32.mrf.mxu0
      %v1252 = vadd.f32 %v1091, %v1251
      %v1253 = vpop.f32.mrf.mxu0
      %1254 = vmatprep.mubr.f32.mxu0 0.0
      %1255 = vmatmul.mubr.f32.gmra.mxu0 %v1145
      %v1256 = vpop.f32.mrf.mxu0
      %v1257 = vadd.f32 %v1096, %v1256
      %v1258 = vpop.f32.mrf.mxu0
      %1259 = vmatprep.mubr.f32.mxu0 0.0
      %1260 = vmatmul.mubr.f32.gmra.mxu0 %v1148
      %v1261 = vpop.f32.mrf.mxu0
      %v1262 = vadd.f32 %v1101, %v1261
      %v1263 = vpop.f32.mrf.mxu0
      %1264 = vmatprep.mubr.f32.mxu0 0.0
      %1265 = vmatmul.mubr.f32.gmra.mxu0 %v1151
      %v1266 = vpop.f32.mrf.mxu0
      %v1267 = vadd.f32 %v1106, %v1266
      %v1268 = vpop.f32.mrf.mxu0
      %1269 = vmatprep.mubr.f32.mxu0 0.0
      %1270 = vmatmul.mubr.f32.gmra.mxu0 %v1154
      %v1271 = vpop.f32.mrf.mxu0
      %v1272 = vadd.f32 %v1111, %v1271
      %v1273 = vpop.f32.mrf.mxu0
      %1274 = vmatprep.mubr.f32.mxu0 0.0
      %1275 = vmatmul.mubr.f32.gmra.mxu0 %v1157
      %v1276 = vpop.f32.mrf.mxu0
      %v1277 = vadd.f32 %v1116, %v1276
      %v1278 = vpop.f32.mrf.mxu0
      %1279 = vmatprep.mubr.f32.mxu0 0.0
      %1280 = vmatmul.mubr.f32.gmra.mxu0 %v1160
      %v1281 = vpop.f32.mrf.mxu0
      %v1282 = vadd.f32 %v1121, %v1281
      %v1283 = vpop.f32.mrf.mxu0
      %1284 = vmatprep.mubr.f32.mxu0 0.0
      %1285 = vmatmul.mubr.f32.gmra.mxu0 %v1163
      %v1286 = vpop.f32.mrf.mxu0
      %v1287 = vadd.f32 %v1126, %v1286
      %v1288 = vpop.f32.mrf.mxu0
      %1289 = vdwg.mxu0
      %v1290 = vld [vmem:[#allocation2 + $0x2] sm:$0xff]
      %v1291 = vld [vmem:[#allocation2 + $0xa] sm:$0xff]
      %v1292 = vld [vmem:[#allocation2 + $0x1a] sm:$0xff]
      %v1293 = vld [vmem:[#allocation2 + $0x22] sm:$0xff]
      %v1294 = vld [vmem:[#allocation2 + $0x32] sm:$0xff]
      %v1295 = vld [vmem:[#allocation2 + $0x3a] sm:$0xff]
      %v1296 = vld [vmem:[#allocation2 + $0x4a] sm:$0xff]
      %v1297 = vld [vmem:[#allocation2 + $0x52] sm:$0xff]
      %v1298 = vld [vmem:[#allocation2 + $0x62] sm:$0xff]
      %v1299 = vld [vmem:[#allocation2 + $0x6a] sm:$0xff]
      %v1300 = vld [vmem:[#allocation2 + $0x7a] sm:$0xff]
      %v1301 = vld [vmem:[#allocation2 + $0x82] sm:$0xff]
      %s1302 = scalar_lea.vmem %s5, 64
      %v1303 = vld [vmem:[%s1302] sm:$0xff]
      %v1304 = vld [vmem:[%s1302 + $0x8] sm:$0xff]
      %v1305 = vld [vmem:[%s1302 + $0x10] sm:$0xff]
      %v1306 = vld [vmem:[%s1302 + $0x18] sm:$0xff]
      %v1308 = vsel %vm895, %v1290, 0
      %v1311 = vsel %vm895, %v1291, 0
      %v1314 = vsel %vm895, %v1292, 0
      %v1317 = vsel %vm895, %v1293, 0
      %v1320 = vsel %vm895, %v1294, 0
      %v1323 = vsel %vm895, %v1295, 0
      %v1326 = vsel %vm895, %v1296, 0
      %v1329 = vsel %vm895, %v1297, 0
      %v1332 = vsel %vm895, %v1298, 0
      %v1335 = vsel %vm895, %v1299, 0
      %v1338 = vsel %vm895, %v1300, 0
      %v1341 = vsel %vm895, %v1301, 0
      %1343 = vmatprep.subr.mxu0 0.0
      %1344 = vmatpush1.msra.mxu0 0.0
      %1345 = vmatprep.subr.mxu0 0.0
      %1346 = vmatpush1.msra.mxu0 0.0
      %1347 = vmatprep.subr.mxu0 0.0
      %1348 = vmatpush1.msra.mxu0 0.0
      %1349 = vmatprep.subr.mxu0 0.0
      %1350 = vmatpush1.msra.mxu0 0.0
      %1351 = vmatprep.subr.mxu0 0.0
      %1352 = vmatpush1.msra.mxu0 0.0
      %1353 = vmatprep.subr.mxu0 0.0
      %1354 = vmatpush1.msra.mxu0 0.0
      %1355 = vmatprep.subr.mxu0 0.0
      %1356 = vmatpush1.msra.mxu0 0.0
      %1357 = vmatprep.subr.mxu0 0.0
      %1358 = vmatpush1.msra.mxu0 0.0
      %1359 = vmatprep.subr.mxu0 0.0
      %1360 = vmatpush1.msra.mxu0 0.0
      %1361 = vmatprep.subr.mxu0 0.0
      %1362 = vmatpush1.msra.mxu0 0.0
      %1363 = vmatprep.subr.mxu0 0.0
      %1364 = vmatpush1.msra.mxu0 0.0
      %1365 = vmatprep.subr.mxu0 0.0
      %1366 = vmatpush1.msra.mxu0 0.0
      %1367 = vmatprep.subr.mxu0 0.0
      %1368 = vmatpush1.msra.mxu0 %v1306
      %1369 = vmatprep.subr.mxu0 0.0
      %1370 = vmatpush1.msra.mxu0 %v1305
      %1371 = vmatprep.subr.mxu0 0.0
      %1372 = vmatpush1.msra.mxu0 %v1304
      %1373 = vmatprep.subr.mxu0 0.0
      %1374 = vmatpush1.msra.mxu0 %v1303
      %1375 = vmatprep.subr.mxu0 0.0
      %1376 = vmatpush2.msra.mxu0 0.0
      %1377 = vmatprep.subr.mxu0 0.0
      %1378 = vmatpush2.msra.mxu0 0.0
      %1379 = vmatprep.subr.mxu0 0.0
      %1380 = vmatpush2.msra.mxu0 0.0
      %1381 = vmatprep.subr.mxu0 0.0
      %1382 = vmatpush2.msra.mxu0 0.0
      %1383 = vmatprep.subr.mxu0 0.0
      %1384 = vmatpush2.msra.mxu0 0.0
      %1385 = vmatprep.subr.mxu0 0.0
      %1386 = vmatpush2.msra.mxu0 0.0
      %1387 = vmatprep.subr.mxu0 0.0
      %1388 = vmatpush2.msra.mxu0 0.0
      %1389 = vmatprep.subr.mxu0 0.0
      %1390 = vmatpush2.msra.mxu0 0.0
      %1391 = vmatprep.subr.mxu0 0.0
      %1392 = vmatpush2.msra.mxu0 0.0
      %1393 = vmatprep.subr.mxu0 0.0
      %1394 = vmatpush2.msra.mxu0 0.0
      %1395 = vmatprep.subr.mxu0 0.0
      %1396 = vmatpush2.msra.mxu0 0.0
      %1397 = vmatprep.subr.mxu0 0.0
      %1398 = vmatpush2.msra.mxu0 0.0
      %1399 = vmatprep.subr.mxu0 0.0
      %1400 = vmatpush2.msra.mxu0 0.0
      %1401 = vmatprep.subr.mxu0 0.0
      %1402 = vmatpush2.msra.mxu0 0.0
      %1403 = vmatprep.subr.mxu0 0.0
      %1404 = vmatpush2.msra.mxu0 0.0
      %1405 = vmatprep.subr.mxu0 0.0
      %1406 = vmatpush2.msra.mxu0 0.0
      %1407 = vmatprep.mubr.f32.mxu0 0.0
      %1408 = vmatmul.mubr.f32.gmra.mxu0 %v1308
      %v1409 = vpop.f32.mrf.mxu0
      %v1410 = vadd.f32 0.0, %v1409
      %v1411 = vpop.f32.mrf.mxu0
      %1412 = vmatprep.mubr.f32.mxu0 0.0
      %1413 = vmatmul.mubr.f32.gmra.mxu0 %v1311
      %v1414 = vpop.f32.mrf.mxu0
      %v1415 = vadd.f32 0.0, %v1414
      %v1416 = vpop.f32.mrf.mxu0
      %1417 = vmatprep.mubr.f32.mxu0 0.0
      %1418 = vmatmul.mubr.f32.gmra.mxu0 %v1314
      %v1419 = vpop.f32.mrf.mxu0
      %v1420 = vadd.f32 0.0, %v1419
      %v1421 = vpop.f32.mrf.mxu0
      %1422 = vmatprep.mubr.f32.mxu0 0.0
      %1423 = vmatmul.mubr.f32.gmra.mxu0 %v1317
      %v1424 = vpop.f32.mrf.mxu0
      %v1425 = vadd.f32 0.0, %v1424
      %v1426 = vpop.f32.mrf.mxu0
      %1427 = vmatprep.mubr.f32.mxu0 0.0
      %1428 = vmatmul.mubr.f32.gmra.mxu0 %v1320
      %v1429 = vpop.f32.mrf.mxu0
      %v1430 = vadd.f32 0.0, %v1429
      %v1431 = vpop.f32.mrf.mxu0
      %1432 = vmatprep.mubr.f32.mxu0 0.0
      %1433 = vmatmul.mubr.f32.gmra.mxu0 %v1323
      %v1434 = vpop.f32.mrf.mxu0
      %v1435 = vadd.f32 0.0, %v1434
      %v1436 = vpop.f32.mrf.mxu0
      %1437 = vmatprep.mubr.f32.mxu0 0.0
      %1438 = vmatmul.mubr.f32.gmra.mxu0 %v1326
      %v1439 = vpop.f32.mrf.mxu0
      %v1440 = vadd.f32 0.0, %v1439
      %v1441 = vpop.f32.mrf.mxu0
      %1442 = vmatprep.mubr.f32.mxu0 0.0
      %1443 = vmatmul.mubr.f32.gmra.mxu0 %v1329
      %v1444 = vpop.f32.mrf.mxu0
      %v1445 = vadd.f32 0.0, %v1444
      %v1446 = vpop.f32.mrf.mxu0
      %1447 = vmatprep.mubr.f32.mxu0 0.0
      %1448 = vmatmul.mubr.f32.gmra.mxu0 %v1332
      %v1449 = vpop.f32.mrf.mxu0
      %v1450 = vadd.f32 0.0, %v1449
      %v1451 = vpop.f32.mrf.mxu0
      %1452 = vmatprep.mubr.f32.mxu0 0.0
      %1453 = vmatmul.mubr.f32.gmra.mxu0 %v1335
      %v1454 = vpop.f32.mrf.mxu0
      %v1455 = vadd.f32 0.0, %v1454
      %v1456 = vpop.f32.mrf.mxu0
      %1457 = vmatprep.mubr.f32.mxu0 0.0
      %1458 = vmatmul.mubr.f32.gmra.mxu0 %v1338
      %v1459 = vpop.f32.mrf.mxu0
      %v1460 = vadd.f32 0.0, %v1459
      %v1461 = vpop.f32.mrf.mxu0
      %1462 = vmatprep.mubr.f32.mxu0 0.0
      %1463 = vmatmul.mubr.f32.gmra.mxu0 %v1341
      %v1464 = vpop.f32.mrf.mxu0
      %v1465 = vadd.f32 0.0, %v1464
      %v1466 = vpop.f32.mrf.mxu0
      %1467 = vdwg.mxu0
      %v1468 = vadd.f32 %v1232, %v1410
      %v1469 = vadd.f32 %v1237, %v1415
      %v1470 = vadd.f32 %v1242, %v1420
      %v1471 = vadd.f32 %v1247, %v1425
      %v1472 = vadd.f32 %v1252, %v1430
      %v1473 = vadd.f32 %v1257, %v1435
      %v1474 = vadd.f32 %v1262, %v1440
      %v1475 = vadd.f32 %v1267, %v1445
      %v1476 = vadd.f32 %v1272, %v1450
      %v1477 = vadd.f32 %v1277, %v1455
      %v1478 = vadd.f32 %v1282, %v1460
      %v1479 = vadd.f32 %v1287, %v1465
      %s1480 = scalar_lea.vmem [#allocation2], 24
      %v1481 = vld [vmem:[%s1480] sm:$0xff]
      %v1482 = vld [vmem:[%s1480 + $0x8] sm:$0xff]
      %v1483 = vld [vmem:[%s1480 + $0x18] sm:$0xff]
      %v1484 = vld [vmem:[%s1480 + $0x20] sm:$0xff]
      %v1485 = vld [vmem:[%s1480 + $0x30] sm:$0xff]
      %v1486 = vld [vmem:[%s1480 + $0x38] sm:$0xff]
      %v1487 = vld [vmem:[%s1480 + $0x48] sm:$0xff]
      %v1488 = vld [vmem:[%s1480 + $0x50] sm:$0xff]
      %v1489 = vld [vmem:[%s1480 + $0x60] sm:$0xff]
      %v1490 = vld [vmem:[%s1480 + $0x68] sm:$0xff]
      %v1491 = vld [vmem:[%s1480 + $0x78] sm:$0xff]
      %v1492 = vld [vmem:[%s1480 + $0x80] sm:$0xff]
      %s1493 = scalar_lea.vmem %s5, 96
      %v1494 = vld [vmem:[%s1493] sm:$0xff]
      %v1495 = vld [vmem:[%s1493 + $0x8] sm:$0xff]
      %v1496 = vld [vmem:[%s1493 + $0x10] sm:$0xff]
      %v1497 = vld [vmem:[%s1493 + $0x18] sm:$0xff]
      %v1499 = vsel %vm895, %v1481, 0
      %v1502 = vsel %vm895, %v1482, 0
      %v1505 = vsel %vm895, %v1483, 0
      %v1508 = vsel %vm895, %v1484, 0
      %v1511 = vsel %vm895, %v1485, 0
      %v1514 = vsel %vm895, %v1486, 0
      %v1517 = vsel %vm895, %v1487, 0
      %v1520 = vsel %vm895, %v1488, 0
      %v1523 = vsel %vm895, %v1489, 0
      %v1526 = vsel %vm895, %v1490, 0
      %v1529 = vsel %vm895, %v1491, 0
      %v1532 = vsel %vm895, %v1492, 0
      %1534 = vmatprep.subr.mxu0 0.0
      %1535 = vmatpush1.msra.mxu0 0.0
      %1536 = vmatprep.subr.mxu0 0.0
      %1537 = vmatpush1.msra.mxu0 0.0
      %1538 = vmatprep.subr.mxu0 0.0
      %1539 = vmatpush1.msra.mxu0 0.0
      %1540 = vmatprep.subr.mxu0 0.0
      %1541 = vmatpush1.msra.mxu0 0.0
      %1542 = vmatprep.subr.mxu0 0.0
      %1543 = vmatpush1.msra.mxu0 0.0
      %1544 = vmatprep.subr.mxu0 0.0
      %1545 = vmatpush1.msra.mxu0 0.0
      %1546 = vmatprep.subr.mxu0 0.0
      %1547 = vmatpush1.msra.mxu0 0.0
      %1548 = vmatprep.subr.mxu0 0.0
      %1549 = vmatpush1.msra.mxu0 0.0
      %1550 = vmatprep.subr.mxu0 0.0
      %1551 = vmatpush1.msra.mxu0 0.0
      %1552 = vmatprep.subr.mxu0 0.0
      %1553 = vmatpush1.msra.mxu0 0.0
      %1554 = vmatprep.subr.mxu0 0.0
      %1555 = vmatpush1.msra.mxu0 0.0
      %1556 = vmatprep.subr.mxu0 0.0
      %1557 = vmatpush1.msra.mxu0 0.0
      %1558 = vmatprep.subr.mxu0 0.0
      %1559 = vmatpush1.msra.mxu0 %v1497
      %1560 = vmatprep.subr.mxu0 0.0
      %1561 = vmatpush1.msra.mxu0 %v1496
      %1562 = vmatprep.subr.mxu0 0.0
      %1563 = vmatpush1.msra.mxu0 %v1495
      %1564 = vmatprep.subr.mxu0 0.0
      %1565 = vmatpush1.msra.mxu0 %v1494
      %1566 = vmatprep.subr.mxu0 0.0
      %1567 = vmatpush2.msra.mxu0 0.0
      %1568 = vmatprep.subr.mxu0 0.0
      %1569 = vmatpush2.msra.mxu0 0.0
      %1570 = vmatprep.subr.mxu0 0.0
      %1571 = vmatpush2.msra.mxu0 0.0
      %1572 = vmatprep.subr.mxu0 0.0
      %1573 = vmatpush2.msra.mxu0 0.0
      %1574 = vmatprep.subr.mxu0 0.0
      %1575 = vmatpush2.msra.mxu0 0.0
      %1576 = vmatprep.subr.mxu0 0.0
      %1577 = vmatpush2.msra.mxu0 0.0
      %1578 = vmatprep.subr.mxu0 0.0
      %1579 = vmatpush2.msra.mxu0 0.0
      %1580 = vmatprep.subr.mxu0 0.0
      %1581 = vmatpush2.msra.mxu0 0.0
      %1582 = vmatprep.subr.mxu0 0.0
      %1583 = vmatpush2.msra.mxu0 0.0
      %1584 = vmatprep.subr.mxu0 0.0
      %1585 = vmatpush2.msra.mxu0 0.0
      %1586 = vmatprep.subr.mxu0 0.0
      %1587 = vmatpush2.msra.mxu0 0.0
      %1588 = vmatprep.subr.mxu0 0.0
      %1589 = vmatpush2.msra.mxu0 0.0
      %1590 = vmatprep.subr.mxu0 0.0
      %1591 = vmatpush2.msra.mxu0 0.0
      %1592 = vmatprep.subr.mxu0 0.0
      %1593 = vmatpush2.msra.mxu0 0.0
      %1594 = vmatprep.subr.mxu0 0.0
      %1595 = vmatpush2.msra.mxu0 0.0
      %1596 = vmatprep.subr.mxu0 0.0
      %1597 = vmatpush2.msra.mxu0 0.0
      %1598 = vmatprep.mubr.f32.mxu0 0.0
      %1599 = vmatmul.mubr.f32.gmra.mxu0 %v1499
      %v1600 = vpop.f32.mrf.mxu0
      %v1601 = vadd.f32 0.0, %v1600
      %v1602 = vpop.f32.mrf.mxu0
      %1603 = vmatprep.mubr.f32.mxu0 0.0
      %1604 = vmatmul.mubr.f32.gmra.mxu0 %v1502
      %v1605 = vpop.f32.mrf.mxu0
      %v1606 = vadd.f32 0.0, %v1605
      %v1607 = vpop.f32.mrf.mxu0
      %1608 = vmatprep.mubr.f32.mxu0 0.0
      %1609 = vmatmul.mubr.f32.gmra.mxu0 %v1505
      %v1610 = vpop.f32.mrf.mxu0
      %v1611 = vadd.f32 0.0, %v1610
      %v1612 = vpop.f32.mrf.mxu0
      %1613 = vmatprep.mubr.f32.mxu0 0.0
      %1614 = vmatmul.mubr.f32.gmra.mxu0 %v1508
      %v1615 = vpop.f32.mrf.mxu0
      %v1616 = vadd.f32 0.0, %v1615
      %v1617 = vpop.f32.mrf.mxu0
      %1618 = vmatprep.mubr.f32.mxu0 0.0
      %1619 = vmatmul.mubr.f32.gmra.mxu0 %v1511
      %v1620 = vpop.f32.mrf.mxu0
      %v1621 = vadd.f32 0.0, %v1620
      %v1622 = vpop.f32.mrf.mxu0
      %1623 = vmatprep.mubr.f32.mxu0 0.0
      %1624 = vmatmul.mubr.f32.gmra.mxu0 %v1514
      %v1625 = vpop.f32.mrf.mxu0
      %v1626 = vadd.f32 0.0, %v1625
      %v1627 = vpop.f32.mrf.mxu0
      %1628 = vmatprep.mubr.f32.mxu0 0.0
      %1629 = vmatmul.mubr.f32.gmra.mxu0 %v1517
      %v1630 = vpop.f32.mrf.mxu0
      %v1631 = vadd.f32 0.0, %v1630
      %v1632 = vpop.f32.mrf.mxu0
      %1633 = vmatprep.mubr.f32.mxu0 0.0
      %1634 = vmatmul.mubr.f32.gmra.mxu0 %v1520
      %v1635 = vpop.f32.mrf.mxu0
      %v1636 = vadd.f32 0.0, %v1635
      %v1637 = vpop.f32.mrf.mxu0
      %1638 = vmatprep.mubr.f32.mxu0 0.0
      %1639 = vmatmul.mubr.f32.gmra.mxu0 %v1523
      %v1640 = vpop.f32.mrf.mxu0
      %v1641 = vadd.f32 0.0, %v1640
      %v1642 = vpop.f32.mrf.mxu0
      %1643 = vmatprep.mubr.f32.mxu0 0.0
      %1644 = vmatmul.mubr.f32.gmra.mxu0 %v1526
      %v1645 = vpop.f32.mrf.mxu0
      %v1646 = vadd.f32 0.0, %v1645
      %v1647 = vpop.f32.mrf.mxu0
      %1648 = vmatprep.mubr.f32.mxu0 0.0
      %1649 = vmatmul.mubr.f32.gmra.mxu0 %v1529
      %v1650 = vpop.f32.mrf.mxu0
      %v1651 = vadd.f32 0.0, %v1650
      %v1652 = vpop.f32.mrf.mxu0
      %1653 = vmatprep.mubr.f32.mxu0 0.0
      %1654 = vmatmul.mubr.f32.gmra.mxu0 %v1532
      %v1655 = vpop.f32.mrf.mxu0
      %v1656 = vadd.f32 0.0, %v1655
      %v1657 = vpop.f32.mrf.mxu0
      %1658 = vdwg.mxu0
      %v1659 = vadd.f32 %v1468, %v1601
      %v1660 = vadd.f32 %v1469, %v1606
      %v1661 = vadd.f32 %v1470, %v1611
      %v1662 = vadd.f32 %v1471, %v1616
      %v1663 = vadd.f32 %v1472, %v1621
      %v1664 = vadd.f32 %v1473, %v1626
      %v1665 = vadd.f32 %v1474, %v1631
      %v1666 = vadd.f32 %v1475, %v1636
      %v1667 = vadd.f32 %v1476, %v1641
      %v1668 = vadd.f32 %v1477, %v1646
      %v1669 = vadd.f32 %v1478, %v1651
      %v1670 = vadd.f32 %v1479, %v1656
      %v1671 = vld [vmem:[%s1480 + $0x1] sm:$0xff]
      %v1672 = vld [vmem:[%s1480 + $0x9] sm:$0xff]
      %v1673 = vld [vmem:[%s1480 + $0x19] sm:$0xff]
      %v1674 = vld [vmem:[%s1480 + $0x21] sm:$0xff]
      %v1675 = vld [vmem:[%s1480 + $0x31] sm:$0xff]
      %v1676 = vld [vmem:[%s1480 + $0x39] sm:$0xff]
      %v1677 = vld [vmem:[%s1480 + $0x49] sm:$0xff]
      %v1678 = vld [vmem:[%s1480 + $0x51] sm:$0xff]
      %v1679 = vld [vmem:[%s1480 + $0x61] sm:$0xff]
      %v1680 = vld [vmem:[%s1480 + $0x69] sm:$0xff]
      %v1681 = vld [vmem:[%s1480 + $0x79] sm:$0xff]
      %v1682 = vld [vmem:[%s1480 + $0x81] sm:$0xff]
      %s1683 = scalar_lea.vmem %s5, 128
      %v1684 = vld [vmem:[%s1683] sm:$0xff]
      %v1685 = vld [vmem:[%s1683 + $0x8] sm:$0xff]
      %v1686 = vld [vmem:[%s1683 + $0x10] sm:$0xff]
      %v1687 = vld [vmem:[%s1683 + $0x18] sm:$0xff]
      %v1689 = vsel %vm895, %v1671, 0
      %v1692 = vsel %vm895, %v1672, 0
      %v1695 = vsel %vm895, %v1673, 0
      %v1698 = vsel %vm895, %v1674, 0
      %v1701 = vsel %vm895, %v1675, 0
      %v1704 = vsel %vm895, %v1676, 0
      %v1707 = vsel %vm895, %v1677, 0
      %v1710 = vsel %vm895, %v1678, 0
      %v1713 = vsel %vm895, %v1679, 0
      %v1716 = vsel %vm895, %v1680, 0
      %v1719 = vsel %vm895, %v1681, 0
      %v1722 = vsel %vm895, %v1682, 0
      %1724 = vmatprep.subr.mxu0 0.0
      %1725 = vmatpush1.msra.mxu0 0.0
      %1726 = vmatprep.subr.mxu0 0.0
      %1727 = vmatpush1.msra.mxu0 0.0
      %1728 = vmatprep.subr.mxu0 0.0
      %1729 = vmatpush1.msra.mxu0 0.0
      %1730 = vmatprep.subr.mxu0 0.0
      %1731 = vmatpush1.msra.mxu0 0.0
      %1732 = vmatprep.subr.mxu0 0.0
      %1733 = vmatpush1.msra.mxu0 0.0
      %1734 = vmatprep.subr.mxu0 0.0
      %1735 = vmatpush1.msra.mxu0 0.0
      %1736 = vmatprep.subr.mxu0 0.0
      %1737 = vmatpush1.msra.mxu0 0.0
      %1738 = vmatprep.subr.mxu0 0.0
      %1739 = vmatpush1.msra.mxu0 0.0
      %1740 = vmatprep.subr.mxu0 0.0
      %1741 = vmatpush1.msra.mxu0 0.0
      %1742 = vmatprep.subr.mxu0 0.0
      %1743 = vmatpush1.msra.mxu0 0.0
      %1744 = vmatprep.subr.mxu0 0.0
      %1745 = vmatpush1.msra.mxu0 0.0
      %1746 = vmatprep.subr.mxu0 0.0
      %1747 = vmatpush1.msra.mxu0 0.0
      %1748 = vmatprep.subr.mxu0 0.0
      %1749 = vmatpush1.msra.mxu0 %v1687
      %1750 = vmatprep.subr.mxu0 0.0
      %1751 = vmatpush1.msra.mxu0 %v1686
      %1752 = vmatprep.subr.mxu0 0.0
      %1753 = vmatpush1.msra.mxu0 %v1685
      %1754 = vmatprep.subr.mxu0 0.0
      %1755 = vmatpush1.msra.mxu0 %v1684
      %1756 = vmatprep.subr.mxu0 0.0
      %1757 = vmatpush2.msra.mxu0 0.0
      %1758 = vmatprep.subr.mxu0 0.0
      %1759 = vmatpush2.msra.mxu0 0.0
      %1760 = vmatprep.subr.mxu0 0.0
      %1761 = vmatpush2.msra.mxu0 0.0
      %1762 = vmatprep.subr.mxu0 0.0
      %1763 = vmatpush2.msra.mxu0 0.0
      %1764 = vmatprep.subr.mxu0 0.0
      %1765 = vmatpush2.msra.mxu0 0.0
      %1766 = vmatprep.subr.mxu0 0.0
      %1767 = vmatpush2.msra.mxu0 0.0
      %1768 = vmatprep.subr.mxu0 0.0
      %1769 = vmatpush2.msra.mxu0 0.0
      %1770 = vmatprep.subr.mxu0 0.0
      %1771 = vmatpush2.msra.mxu0 0.0
      %1772 = vmatprep.subr.mxu0 0.0
      %1773 = vmatpush2.msra.mxu0 0.0
      %1774 = vmatprep.subr.mxu0 0.0
      %1775 = vmatpush2.msra.mxu0 0.0
      %1776 = vmatprep.subr.mxu0 0.0
      %1777 = vmatpush2.msra.mxu0 0.0
      %1778 = vmatprep.subr.mxu0 0.0
      %1779 = vmatpush2.msra.mxu0 0.0
      %1780 = vmatprep.subr.mxu0 0.0
      %1781 = vmatpush2.msra.mxu0 0.0
      %1782 = vmatprep.subr.mxu0 0.0
      %1783 = vmatpush2.msra.mxu0 0.0
      %1784 = vmatprep.subr.mxu0 0.0
      %1785 = vmatpush2.msra.mxu0 0.0
      %1786 = vmatprep.subr.mxu0 0.0
      %1787 = vmatpush2.msra.mxu0 0.0
      %1788 = vmatprep.mubr.f32.mxu0 0.0
      %1789 = vmatmul.mubr.f32.gmra.mxu0 %v1689
      %v1790 = vpop.f32.mrf.mxu0
      %v1791 = vadd.f32 0.0, %v1790
      %v1792 = vpop.f32.mrf.mxu0
      %1793 = vmatprep.mubr.f32.mxu0 0.0
      %1794 = vmatmul.mubr.f32.gmra.mxu0 %v1692
      %v1795 = vpop.f32.mrf.mxu0
      %v1796 = vadd.f32 0.0, %v1795
      %v1797 = vpop.f32.mrf.mxu0
      %1798 = vmatprep.mubr.f32.mxu0 0.0
      %1799 = vmatmul.mubr.f32.gmra.mxu0 %v1695
      %v1800 = vpop.f32.mrf.mxu0
      %v1801 = vadd.f32 0.0, %v1800
      %v1802 = vpop.f32.mrf.mxu0
      %1803 = vmatprep.mubr.f32.mxu0 0.0
      %1804 = vmatmul.mubr.f32.gmra.mxu0 %v1698
      %v1805 = vpop.f32.mrf.mxu0
      %v1806 = vadd.f32 0.0, %v1805
      %v1807 = vpop.f32.mrf.mxu0
      %1808 = vmatprep.mubr.f32.mxu0 0.0
      %1809 = vmatmul.mubr.f32.gmra.mxu0 %v1701
      %v1810 = vpop.f32.mrf.mxu0
      %v1811 = vadd.f32 0.0, %v1810
      %v1812 = vpop.f32.mrf.mxu0
      %1813 = vmatprep.mubr.f32.mxu0 0.0
      %1814 = vmatmul.mubr.f32.gmra.mxu0 %v1704
      %v1815 = vpop.f32.mrf.mxu0
      %v1816 = vadd.f32 0.0, %v1815
      %v1817 = vpop.f32.mrf.mxu0
      %1818 = vmatprep.mubr.f32.mxu0 0.0
      %1819 = vmatmul.mubr.f32.gmra.mxu0 %v1707
      %v1820 = vpop.f32.mrf.mxu0
      %v1821 = vadd.f32 0.0, %v1820
      %v1822 = vpop.f32.mrf.mxu0
      %1823 = vmatprep.mubr.f32.mxu0 0.0
      %1824 = vmatmul.mubr.f32.gmra.mxu0 %v1710
      %v1825 = vpop.f32.mrf.mxu0
      %v1826 = vadd.f32 0.0, %v1825
      %v1827 = vpop.f32.mrf.mxu0
      %1828 = vmatprep.mubr.f32.mxu0 0.0
      %1829 = vmatmul.mubr.f32.gmra.mxu0 %v1713
      %v1830 = vpop.f32.mrf.mxu0
      %v1831 = vadd.f32 0.0, %v1830
      %v1832 = vpop.f32.mrf.mxu0
      %1833 = vmatprep.mubr.f32.mxu0 0.0
      %1834 = vmatmul.mubr.f32.gmra.mxu0 %v1716
      %v1835 = vpop.f32.mrf.mxu0
      %v1836 = vadd.f32 0.0, %v1835
      %v1837 = vpop.f32.mrf.mxu0
      %1838 = vmatprep.mubr.f32.mxu0 0.0
      %1839 = vmatmul.mubr.f32.gmra.mxu0 %v1719
      %v1840 = vpop.f32.mrf.mxu0
      %v1841 = vadd.f32 0.0, %v1840
      %v1842 = vpop.f32.mrf.mxu0
      %1843 = vmatprep.mubr.f32.mxu0 0.0
      %1844 = vmatmul.mubr.f32.gmra.mxu0 %v1722
      %v1845 = vpop.f32.mrf.mxu0
      %v1846 = vadd.f32 0.0, %v1845
      %v1847 = vpop.f32.mrf.mxu0
      %1848 = vdwg.mxu0
      %v1849 = vadd.f32 %v1659, %v1791
      %v1850 = vadd.f32 %v1660, %v1796
      %v1851 = vadd.f32 %v1661, %v1801
      %v1852 = vadd.f32 %v1662, %v1806
      %v1853 = vadd.f32 %v1663, %v1811
      %v1854 = vadd.f32 %v1664, %v1816
      %v1855 = vadd.f32 %v1665, %v1821
      %v1856 = vadd.f32 %v1666, %v1826
      %v1857 = vadd.f32 %v1667, %v1831
      %v1858 = vadd.f32 %v1668, %v1836
      %v1859 = vadd.f32 %v1669, %v1841
      %v1860 = vadd.f32 %v1670, %v1846
      %v1861 = vld [vmem:[%s1480 + $0x2] sm:$0xff]
      %v1862 = vld [vmem:[%s1480 + $0xa] sm:$0xff]
      %v1863 = vld [vmem:[%s1480 + $0x1a] sm:$0xff]
      %v1864 = vld [vmem:[%s1480 + $0x22] sm:$0xff]
      %v1865 = vld [vmem:[%s1480 + $0x32] sm:$0xff]
      %v1866 = vld [vmem:[%s1480 + $0x3a] sm:$0xff]
      %v1867 = vld [vmem:[%s1480 + $0x4a] sm:$0xff]
      %v1868 = vld [vmem:[%s1480 + $0x52] sm:$0xff]
      %v1869 = vld [vmem:[%s1480 + $0x62] sm:$0xff]
      %v1870 = vld [vmem:[%s1480 + $0x6a] sm:$0xff]
      %v1871 = vld [vmem:[%s1480 + $0x7a] sm:$0xff]
      %v1872 = vld [vmem:[%s1480 + $0x82] sm:$0xff]
      %s1873 = scalar_lea.vmem %s5, 160
      %v1874 = vld [vmem:[%s1873] sm:$0xff]
      %v1875 = vld [vmem:[%s1873 + $0x8] sm:$0xff]
      %v1876 = vld [vmem:[%s1873 + $0x10] sm:$0xff]
      %v1877 = vld [vmem:[%s1873 + $0x18] sm:$0xff]
      %v1879 = vsel %vm895, %v1861, 0
      %v1882 = vsel %vm895, %v1862, 0
      %v1885 = vsel %vm895, %v1863, 0
      %v1888 = vsel %vm895, %v1864, 0
      %v1891 = vsel %vm895, %v1865, 0
      %v1894 = vsel %vm895, %v1866, 0
      %v1897 = vsel %vm895, %v1867, 0
      %v1900 = vsel %vm895, %v1868, 0
      %v1903 = vsel %vm895, %v1869, 0
      %v1906 = vsel %vm895, %v1870, 0
      %v1909 = vsel %vm895, %v1871, 0
      %v1912 = vsel %vm895, %v1872, 0
      %1914 = vmatprep.subr.mxu0 0.0
      %1915 = vmatpush1.msra.mxu0 0.0
      %1916 = vmatprep.subr.mxu0 0.0
      %1917 = vmatpush1.msra.mxu0 0.0
      %1918 = vmatprep.subr.mxu0 0.0
      %1919 = vmatpush1.msra.mxu0 0.0
      %1920 = vmatprep.subr.mxu0 0.0
      %1921 = vmatpush1.msra.mxu0 0.0
      %1922 = vmatprep.subr.mxu0 0.0
      %1923 = vmatpush1.msra.mxu0 0.0
      %1924 = vmatprep.subr.mxu0 0.0
      %1925 = vmatpush1.msra.mxu0 0.0
      %1926 = vmatprep.subr.mxu0 0.0
      %1927 = vmatpush1.msra.mxu0 0.0
      %1928 = vmatprep.subr.mxu0 0.0
      %1929 = vmatpush1.msra.mxu0 0.0
      %1930 = vmatprep.subr.mxu0 0.0
      %1931 = vmatpush1.msra.mxu0 0.0
      %1932 = vmatprep.subr.mxu0 0.0
      %1933 = vmatpush1.msra.mxu0 0.0
      %1934 = vmatprep.subr.mxu0 0.0
      %1935 = vmatpush1.msra.mxu0 0.0
      %1936 = vmatprep.subr.mxu0 0.0
      %1937 = vmatpush1.msra.mxu0 0.0
      %1938 = vmatprep.subr.mxu0 0.0
      %1939 = vmatpush1.msra.mxu0 %v1877
      %1940 = vmatprep.subr.mxu0 0.0
      %1941 = vmatpush1.msra.mxu0 %v1876
      %1942 = vmatprep.subr.mxu0 0.0
      %1943 = vmatpush1.msra.mxu0 %v1875
      %1944 = vmatprep.subr.mxu0 0.0
      %1945 = vmatpush1.msra.mxu0 %v1874
      %1946 = vmatprep.subr.mxu0 0.0
      %1947 = vmatpush2.msra.mxu0 0.0
      %1948 = vmatprep.subr.mxu0 0.0
      %1949 = vmatpush2.msra.mxu0 0.0
      %1950 = vmatprep.subr.mxu0 0.0
      %1951 = vmatpush2.msra.mxu0 0.0
      %1952 = vmatprep.subr.mxu0 0.0
      %1953 = vmatpush2.msra.mxu0 0.0
      %1954 = vmatprep.subr.mxu0 0.0
      %1955 = vmatpush2.msra.mxu0 0.0
      %1956 = vmatprep.subr.mxu0 0.0
      %1957 = vmatpush2.msra.mxu0 0.0
      %1958 = vmatprep.subr.mxu0 0.0
      %1959 = vmatpush2.msra.mxu0 0.0
      %1960 = vmatprep.subr.mxu0 0.0
      %1961 = vmatpush2.msra.mxu0 0.0
      %1962 = vmatprep.subr.mxu0 0.0
      %1963 = vmatpush2.msra.mxu0 0.0
      %1964 = vmatprep.subr.mxu0 0.0
      %1965 = vmatpush2.msra.mxu0 0.0
      %1966 = vmatprep.subr.mxu0 0.0
      %1967 = vmatpush2.msra.mxu0 0.0
      %1968 = vmatprep.subr.mxu0 0.0
      %1969 = vmatpush2.msra.mxu0 0.0
      %1970 = vmatprep.subr.mxu0 0.0
      %1971 = vmatpush2.msra.mxu0 0.0
      %1972 = vmatprep.subr.mxu0 0.0
      %1973 = vmatpush2.msra.mxu0 0.0
      %1974 = vmatprep.subr.mxu0 0.0
      %1975 = vmatpush2.msra.mxu0 0.0
      %1976 = vmatprep.subr.mxu0 0.0
      %1977 = vmatpush2.msra.mxu0 0.0
      %1978 = vmatprep.mubr.f32.mxu0 0.0
      %1979 = vmatmul.mubr.f32.gmra.mxu0 %v1879
      %v1980 = vpop.f32.mrf.mxu0
      %v1981 = vadd.f32 0.0, %v1980
      %v1982 = vpop.f32.mrf.mxu0
      %1983 = vmatprep.mubr.f32.mxu0 0.0
      %1984 = vmatmul.mubr.f32.gmra.mxu0 %v1882
      %v1985 = vpop.f32.mrf.mxu0
      %v1986 = vadd.f32 0.0, %v1985
      %v1987 = vpop.f32.mrf.mxu0
      %1988 = vmatprep.mubr.f32.mxu0 0.0
      %1989 = vmatmul.mubr.f32.gmra.mxu0 %v1885
      %v1990 = vpop.f32.mrf.mxu0
      %v1991 = vadd.f32 0.0, %v1990
      %v1992 = vpop.f32.mrf.mxu0
      %1993 = vmatprep.mubr.f32.mxu0 0.0
      %1994 = vmatmul.mubr.f32.gmra.mxu0 %v1888
      %v1995 = vpop.f32.mrf.mxu0
      %v1996 = vadd.f32 0.0, %v1995
      %v1997 = vpop.f32.mrf.mxu0
      %1998 = vmatprep.mubr.f32.mxu0 0.0
      %1999 = vmatmul.mubr.f32.gmra.mxu0 %v1891
      %v2000 = vpop.f32.mrf.mxu0
      %v2001 = vadd.f32 0.0, %v2000
      %v2002 = vpop.f32.mrf.mxu0
      %2003 = vmatprep.mubr.f32.mxu0 0.0
      %2004 = vmatmul.mubr.f32.gmra.mxu0 %v1894
      %v2005 = vpop.f32.mrf.mxu0
      %v2006 = vadd.f32 0.0, %v2005
      %v2007 = vpop.f32.mrf.mxu0
      %2008 = vmatprep.mubr.f32.mxu0 0.0
      %2009 = vmatmul.mubr.f32.gmra.mxu0 %v1897
      %v2010 = vpop.f32.mrf.mxu0
      %v2011 = vadd.f32 0.0, %v2010
      %v2012 = vpop.f32.mrf.mxu0
      %2013 = vmatprep.mubr.f32.mxu0 0.0
      %2014 = vmatmul.mubr.f32.gmra.mxu0 %v1900
      %v2015 = vpop.f32.mrf.mxu0
      %v2016 = vadd.f32 0.0, %v2015
      %v2017 = vpop.f32.mrf.mxu0
      %2018 = vmatprep.mubr.f32.mxu0 0.0
      %2019 = vmatmul.mubr.f32.gmra.mxu0 %v1903
      %v2020 = vpop.f32.mrf.mxu0
      %v2021 = vadd.f32 0.0, %v2020
      %v2022 = vpop.f32.mrf.mxu0
      %2023 = vmatprep.mubr.f32.mxu0 0.0
      %2024 = vmatmul.mubr.f32.gmra.mxu0 %v1906
      %v2025 = vpop.f32.mrf.mxu0
      %v2026 = vadd.f32 0.0, %v2025
      %v2027 = vpop.f32.mrf.mxu0
      %2028 = vmatprep.mubr.f32.mxu0 0.0
      %2029 = vmatmul.mubr.f32.gmra.mxu0 %v1909
      %v2030 = vpop.f32.mrf.mxu0
      %v2031 = vadd.f32 0.0, %v2030
      %v2032 = vpop.f32.mrf.mxu0
      %2033 = vmatprep.mubr.f32.mxu0 0.0
      %2034 = vmatmul.mubr.f32.gmra.mxu0 %v1912
      %v2035 = vpop.f32.mrf.mxu0
      %v2036 = vadd.f32 0.0, %v2035
      %v2037 = vpop.f32.mrf.mxu0
      %2038 = vdwg.mxu0
      %v2039 = vadd.f32 %v1849, %v1981
      %v2040 = vadd.f32 %v1850, %v1986
      %v2041 = vadd.f32 %v1851, %v1991
      %v2042 = vadd.f32 %v1852, %v1996
      %v2043 = vadd.f32 %v1853, %v2001
      %v2044 = vadd.f32 %v1854, %v2006
      %v2045 = vadd.f32 %v1855, %v2011
      %v2046 = vadd.f32 %v1856, %v2016
      %v2047 = vadd.f32 %v1857, %v2021
      %v2048 = vadd.f32 %v1858, %v2026
      %v2049 = vadd.f32 %v1859, %v2031
      %v2050 = vadd.f32 %v1860, %v2036
      %s2051 = scalar_lea.vmem [#allocation2], 48
      %v2052 = vld [vmem:[%s2051] sm:$0xff]
      %v2053 = vld [vmem:[%s2051 + $0x8] sm:$0xff]
      %v2054 = vld [vmem:[%s2051 + $0x18] sm:$0xff]
      %v2055 = vld [vmem:[%s2051 + $0x20] sm:$0xff]
      %v2056 = vld [vmem:[%s2051 + $0x30] sm:$0xff]
      %v2057 = vld [vmem:[%s2051 + $0x38] sm:$0xff]
      %v2058 = vld [vmem:[%s2051 + $0x48] sm:$0xff]
      %v2059 = vld [vmem:[%s2051 + $0x50] sm:$0xff]
      %v2060 = vld [vmem:[%s2051 + $0x60] sm:$0xff]
      %v2061 = vld [vmem:[%s2051 + $0x68] sm:$0xff]
      %v2062 = vld [vmem:[%s2051 + $0x78] sm:$0xff]
      %v2063 = vld [vmem:[%s2051 + $0x80] sm:$0xff]
      %s2064 = scalar_lea.vmem %s5, 192
      %v2065 = vld [vmem:[%s2064] sm:$0xff]
      %v2066 = vld [vmem:[%s2064 + $0x8] sm:$0xff]
      %v2067 = vld [vmem:[%s2064 + $0x10] sm:$0xff]
      %v2068 = vld [vmem:[%s2064 + $0x18] sm:$0xff]
      %v2070 = vsel %vm895, %v2052, 0
      %v2073 = vsel %vm895, %v2053, 0
      %v2076 = vsel %vm895, %v2054, 0
      %v2079 = vsel %vm895, %v2055, 0
      %v2082 = vsel %vm895, %v2056, 0
      %v2085 = vsel %vm895, %v2057, 0
      %v2088 = vsel %vm895, %v2058, 0
      %v2091 = vsel %vm895, %v2059, 0
      %v2094 = vsel %vm895, %v2060, 0
      %v2097 = vsel %vm895, %v2061, 0
      %v2100 = vsel %vm895, %v2062, 0
      %v2103 = vsel %vm895, %v2063, 0
      %2105 = vmatprep.subr.mxu0 0.0
      %2106 = vmatpush1.msra.mxu0 0.0
      %2107 = vmatprep.subr.mxu0 0.0
      %2108 = vmatpush1.msra.mxu0 0.0
      %2109 = vmatprep.subr.mxu0 0.0
      %2110 = vmatpush1.msra.mxu0 0.0
      %2111 = vmatprep.subr.mxu0 0.0
      %2112 = vmatpush1.msra.mxu0 0.0
      %2113 = vmatprep.subr.mxu0 0.0
      %2114 = vmatpush1.msra.mxu0 0.0
      %2115 = vmatprep.subr.mxu0 0.0
      %2116 = vmatpush1.msra.mxu0 0.0
      %2117 = vmatprep.subr.mxu0 0.0
      %2118 = vmatpush1.msra.mxu0 0.0
      %2119 = vmatprep.subr.mxu0 0.0
      %2120 = vmatpush1.msra.mxu0 0.0
      %2121 = vmatprep.subr.mxu0 0.0
      %2122 = vmatpush1.msra.mxu0 0.0
      %2123 = vmatprep.subr.mxu0 0.0
      %2124 = vmatpush1.msra.mxu0 0.0
      %2125 = vmatprep.subr.mxu0 0.0
      %2126 = vmatpush1.msra.mxu0 0.0
      %2127 = vmatprep.subr.mxu0 0.0
      %2128 = vmatpush1.msra.mxu0 0.0
      %2129 = vmatprep.subr.mxu0 0.0
      %2130 = vmatpush1.msra.mxu0 %v2068
      %2131 = vmatprep.subr.mxu0 0.0
      %2132 = vmatpush1.msra.mxu0 %v2067
      %2133 = vmatprep.subr.mxu0 0.0
      %2134 = vmatpush1.msra.mxu0 %v2066
      %2135 = vmatprep.subr.mxu0 0.0
      %2136 = vmatpush1.msra.mxu0 %v2065
      %2137 = vmatprep.subr.mxu0 0.0
      %2138 = vmatpush2.msra.mxu0 0.0
      %2139 = vmatprep.subr.mxu0 0.0
      %2140 = vmatpush2.msra.mxu0 0.0
      %2141 = vmatprep.subr.mxu0 0.0
      %2142 = vmatpush2.msra.mxu0 0.0
      %2143 = vmatprep.subr.mxu0 0.0
      %2144 = vmatpush2.msra.mxu0 0.0
      %2145 = vmatprep.subr.mxu0 0.0
      %2146 = vmatpush2.msra.mxu0 0.0
      %2147 = vmatprep.subr.mxu0 0.0
      %2148 = vmatpush2.msra.mxu0 0.0
      %2149 = vmatprep.subr.mxu0 0.0
      %2150 = vmatpush2.msra.mxu0 0.0
      %2151 = vmatprep.subr.mxu0 0.0
      %2152 = vmatpush2.msra.mxu0 0.0
      %2153 = vmatprep.subr.mxu0 0.0
      %2154 = vmatpush2.msra.mxu0 0.0
      %2155 = vmatprep.subr.mxu0 0.0
      %2156 = vmatpush2.msra.mxu0 0.0
      %2157 = vmatprep.subr.mxu0 0.0
      %2158 = vmatpush2.msra.mxu0 0.0
      %2159 = vmatprep.subr.mxu0 0.0
      %2160 = vmatpush2.msra.mxu0 0.0
      %2161 = vmatprep.subr.mxu0 0.0
      %2162 = vmatpush2.msra.mxu0 0.0
      %2163 = vmatprep.subr.mxu0 0.0
      %2164 = vmatpush2.msra.mxu0 0.0
      %2165 = vmatprep.subr.mxu0 0.0
      %2166 = vmatpush2.msra.mxu0 0.0
      %2167 = vmatprep.subr.mxu0 0.0
      %2168 = vmatpush2.msra.mxu0 0.0
      %2169 = vmatprep.mubr.f32.mxu0 0.0
      %2170 = vmatmul.mubr.f32.gmra.mxu0 %v2070
      %v2171 = vpop.f32.mrf.mxu0
      %v2172 = vadd.f32 0.0, %v2171
      %v2173 = vpop.f32.mrf.mxu0
      %2174 = vmatprep.mubr.f32.mxu0 0.0
      %2175 = vmatmul.mubr.f32.gmra.mxu0 %v2073
      %v2176 = vpop.f32.mrf.mxu0
      %v2177 = vadd.f32 0.0, %v2176
      %v2178 = vpop.f32.mrf.mxu0
      %2179 = vmatprep.mubr.f32.mxu0 0.0
      %2180 = vmatmul.mubr.f32.gmra.mxu0 %v2076
      %v2181 = vpop.f32.mrf.mxu0
      %v2182 = vadd.f32 0.0, %v2181
      %v2183 = vpop.f32.mrf.mxu0
      %2184 = vmatprep.mubr.f32.mxu0 0.0
      %2185 = vmatmul.mubr.f32.gmra.mxu0 %v2079
      %v2186 = vpop.f32.mrf.mxu0
      %v2187 = vadd.f32 0.0, %v2186
      %v2188 = vpop.f32.mrf.mxu0
      %2189 = vmatprep.mubr.f32.mxu0 0.0
      %2190 = vmatmul.mubr.f32.gmra.mxu0 %v2082
      %v2191 = vpop.f32.mrf.mxu0
      %v2192 = vadd.f32 0.0, %v2191
      %v2193 = vpop.f32.mrf.mxu0
      %2194 = vmatprep.mubr.f32.mxu0 0.0
      %2195 = vmatmul.mubr.f32.gmra.mxu0 %v2085
      %v2196 = vpop.f32.mrf.mxu0
      %v2197 = vadd.f32 0.0, %v2196
      %v2198 = vpop.f32.mrf.mxu0
      %2199 = vmatprep.mubr.f32.mxu0 0.0
      %2200 = vmatmul.mubr.f32.gmra.mxu0 %v2088
      %v2201 = vpop.f32.mrf.mxu0
      %v2202 = vadd.f32 0.0, %v2201
      %v2203 = vpop.f32.mrf.mxu0
      %2204 = vmatprep.mubr.f32.mxu0 0.0
      %2205 = vmatmul.mubr.f32.gmra.mxu0 %v2091
      %v2206 = vpop.f32.mrf.mxu0
      %v2207 = vadd.f32 0.0, %v2206
      %v2208 = vpop.f32.mrf.mxu0
      %2209 = vmatprep.mubr.f32.mxu0 0.0
      %2210 = vmatmul.mubr.f32.gmra.mxu0 %v2094
      %v2211 = vpop.f32.mrf.mxu0
      %v2212 = vadd.f32 0.0, %v2211
      %v2213 = vpop.f32.mrf.mxu0
      %2214 = vmatprep.mubr.f32.mxu0 0.0
      %2215 = vmatmul.mubr.f32.gmra.mxu0 %v2097
      %v2216 = vpop.f32.mrf.mxu0
      %v2217 = vadd.f32 0.0, %v2216
      %v2218 = vpop.f32.mrf.mxu0
      %2219 = vmatprep.mubr.f32.mxu0 0.0
      %2220 = vmatmul.mubr.f32.gmra.mxu0 %v2100
      %v2221 = vpop.f32.mrf.mxu0
      %v2222 = vadd.f32 0.0, %v2221
      %v2223 = vpop.f32.mrf.mxu0
      %2224 = vmatprep.mubr.f32.mxu0 0.0
      %2225 = vmatmul.mubr.f32.gmra.mxu0 %v2103
      %v2226 = vpop.f32.mrf.mxu0
      %v2227 = vadd.f32 0.0, %v2226
      %v2228 = vpop.f32.mrf.mxu0
      %2229 = vdwg.mxu0
      %v2230 = vadd.f32 %v2039, %v2172
      %v2231 = vadd.f32 %v2040, %v2177
      %v2232 = vadd.f32 %v2041, %v2182
      %v2233 = vadd.f32 %v2042, %v2187
      %v2234 = vadd.f32 %v2043, %v2192
      %v2235 = vadd.f32 %v2044, %v2197
      %v2236 = vadd.f32 %v2045, %v2202
      %v2237 = vadd.f32 %v2046, %v2207
      %v2238 = vadd.f32 %v2047, %v2212
      %v2239 = vadd.f32 %v2048, %v2217
      %v2240 = vadd.f32 %v2049, %v2222
      %v2241 = vadd.f32 %v2050, %v2227
      %v2242 = vld [vmem:[%s2051 + $0x1] sm:$0xff]
      %v2243 = vld [vmem:[%s2051 + $0x9] sm:$0xff]
      %v2244 = vld [vmem:[%s2051 + $0x19] sm:$0xff]
      %v2245 = vld [vmem:[%s2051 + $0x21] sm:$0xff]
      %v2246 = vld [vmem:[%s2051 + $0x31] sm:$0xff]
      %v2247 = vld [vmem:[%s2051 + $0x39] sm:$0xff]
      %v2248 = vld [vmem:[%s2051 + $0x49] sm:$0xff]
      %v2249 = vld [vmem:[%s2051 + $0x51] sm:$0xff]
      %v2250 = vld [vmem:[%s2051 + $0x61] sm:$0xff]
      %v2251 = vld [vmem:[%s2051 + $0x69] sm:$0xff]
      %v2252 = vld [vmem:[%s2051 + $0x79] sm:$0xff]
      %v2253 = vld [vmem:[%s2051 + $0x81] sm:$0xff]
      %s2254 = scalar_lea.vmem %s5, 224
      %v2255 = vld [vmem:[%s2254] sm:$0xff]
      %v2256 = vld [vmem:[%s2254 + $0x8] sm:$0xff]
      %v2257 = vld [vmem:[%s2254 + $0x10] sm:$0xff]
      %v2258 = vld [vmem:[%s2254 + $0x18] sm:$0xff]
      %v2260 = vsel %vm895, %v2242, 0
      %v2263 = vsel %vm895, %v2243, 0
      %v2266 = vsel %vm895, %v2244, 0
      %v2269 = vsel %vm895, %v2245, 0
      %v2272 = vsel %vm895, %v2246, 0
      %v2275 = vsel %vm895, %v2247, 0
      %v2278 = vsel %vm895, %v2248, 0
      %v2281 = vsel %vm895, %v2249, 0
      %v2284 = vsel %vm895, %v2250, 0
      %v2287 = vsel %vm895, %v2251, 0
      %v2290 = vsel %vm895, %v2252, 0
      %v2293 = vsel %vm895, %v2253, 0
      %2295 = vmatprep.subr.mxu0 0.0
      %2296 = vmatpush1.msra.mxu0 0.0
      %2297 = vmatprep.subr.mxu0 0.0
      %2298 = vmatpush1.msra.mxu0 0.0
      %2299 = vmatprep.subr.mxu0 0.0
      %2300 = vmatpush1.msra.mxu0 0.0
      %2301 = vmatprep.subr.mxu0 0.0
      %2302 = vmatpush1.msra.mxu0 0.0
      %2303 = vmatprep.subr.mxu0 0.0
      %2304 = vmatpush1.msra.mxu0 0.0
      %2305 = vmatprep.subr.mxu0 0.0
      %2306 = vmatpush1.msra.mxu0 0.0
      %2307 = vmatprep.subr.mxu0 0.0
      %2308 = vmatpush1.msra.mxu0 0.0
      %2309 = vmatprep.subr.mxu0 0.0
      %2310 = vmatpush1.msra.mxu0 0.0
      %2311 = vmatprep.subr.mxu0 0.0
      %2312 = vmatpush1.msra.mxu0 0.0
      %2313 = vmatprep.subr.mxu0 0.0
      %2314 = vmatpush1.msra.mxu0 0.0
      %2315 = vmatprep.subr.mxu0 0.0
      %2316 = vmatpush1.msra.mxu0 0.0
      %2317 = vmatprep.subr.mxu0 0.0
      %2318 = vmatpush1.msra.mxu0 0.0
      %2319 = vmatprep.subr.mxu0 0.0
      %2320 = vmatpush1.msra.mxu0 %v2258
      %2321 = vmatprep.subr.mxu0 0.0
      %2322 = vmatpush1.msra.mxu0 %v2257
      %2323 = vmatprep.subr.mxu0 0.0
      %2324 = vmatpush1.msra.mxu0 %v2256
      %2325 = vmatprep.subr.mxu0 0.0
      %2326 = vmatpush1.msra.mxu0 %v2255
      %2327 = vmatprep.subr.mxu0 0.0
      %2328 = vmatpush2.msra.mxu0 0.0
      %2329 = vmatprep.subr.mxu0 0.0
      %2330 = vmatpush2.msra.mxu0 0.0
      %2331 = vmatprep.subr.mxu0 0.0
      %2332 = vmatpush2.msra.mxu0 0.0
      %2333 = vmatprep.subr.mxu0 0.0
      %2334 = vmatpush2.msra.mxu0 0.0
      %2335 = vmatprep.subr.mxu0 0.0
      %2336 = vmatpush2.msra.mxu0 0.0
      %2337 = vmatprep.subr.mxu0 0.0
      %2338 = vmatpush2.msra.mxu0 0.0
      %2339 = vmatprep.subr.mxu0 0.0
      %2340 = vmatpush2.msra.mxu0 0.0
      %2341 = vmatprep.subr.mxu0 0.0
      %2342 = vmatpush2.msra.mxu0 0.0
      %2343 = vmatprep.subr.mxu0 0.0
      %2344 = vmatpush2.msra.mxu0 0.0
      %2345 = vmatprep.subr.mxu0 0.0
      %2346 = vmatpush2.msra.mxu0 0.0
      %2347 = vmatprep.subr.mxu0 0.0
      %2348 = vmatpush2.msra.mxu0 0.0
      %2349 = vmatprep.subr.mxu0 0.0
      %2350 = vmatpush2.msra.mxu0 0.0
      %2351 = vmatprep.subr.mxu0 0.0
      %2352 = vmatpush2.msra.mxu0 0.0
      %2353 = vmatprep.subr.mxu0 0.0
      %2354 = vmatpush2.msra.mxu0 0.0
      %2355 = vmatprep.subr.mxu0 0.0
      %2356 = vmatpush2.msra.mxu0 0.0
      %2357 = vmatprep.subr.mxu0 0.0
      %2358 = vmatpush2.msra.mxu0 0.0
      %2359 = vmatprep.mubr.f32.mxu0 0.0
      %2360 = vmatmul.mubr.f32.gmra.mxu0 %v2260
      %v2361 = vpop.f32.mrf.mxu0
      %v2362 = vadd.f32 0.0, %v2361
      %v2363 = vpop.f32.mrf.mxu0
      %2364 = vmatprep.mubr.f32.mxu0 0.0
      %2365 = vmatmul.mubr.f32.gmra.mxu0 %v2263
      %v2366 = vpop.f32.mrf.mxu0
      %v2367 = vadd.f32 0.0, %v2366
      %v2368 = vpop.f32.mrf.mxu0
      %2369 = vmatprep.mubr.f32.mxu0 0.0
      %2370 = vmatmul.mubr.f32.gmra.mxu0 %v2266
      %v2371 = vpop.f32.mrf.mxu0
      %v2372 = vadd.f32 0.0, %v2371
      %v2373 = vpop.f32.mrf.mxu0
      %2374 = vmatprep.mubr.f32.mxu0 0.0
      %2375 = vmatmul.mubr.f32.gmra.mxu0 %v2269
      %v2376 = vpop.f32.mrf.mxu0
      %v2377 = vadd.f32 0.0, %v2376
      %v2378 = vpop.f32.mrf.mxu0
      %2379 = vmatprep.mubr.f32.mxu0 0.0
      %2380 = vmatmul.mubr.f32.gmra.mxu0 %v2272
      %v2381 = vpop.f32.mrf.mxu0
      %v2382 = vadd.f32 0.0, %v2381
      %v2383 = vpop.f32.mrf.mxu0
      %2384 = vmatprep.mubr.f32.mxu0 0.0
      %2385 = vmatmul.mubr.f32.gmra.mxu0 %v2275
      %v2386 = vpop.f32.mrf.mxu0
      %v2387 = vadd.f32 0.0, %v2386
      %v2388 = vpop.f32.mrf.mxu0
      %2389 = vmatprep.mubr.f32.mxu0 0.0
      %2390 = vmatmul.mubr.f32.gmra.mxu0 %v2278
      %v2391 = vpop.f32.mrf.mxu0
      %v2392 = vadd.f32 0.0, %v2391
      %v2393 = vpop.f32.mrf.mxu0
      %2394 = vmatprep.mubr.f32.mxu0 0.0
      %2395 = vmatmul.mubr.f32.gmra.mxu0 %v2281
      %v2396 = vpop.f32.mrf.mxu0
      %v2397 = vadd.f32 0.0, %v2396
      %v2398 = vpop.f32.mrf.mxu0
      %2399 = vmatprep.mubr.f32.mxu0 0.0
      %2400 = vmatmul.mubr.f32.gmra.mxu0 %v2284
      %v2401 = vpop.f32.mrf.mxu0
      %v2402 = vadd.f32 0.0, %v2401
      %v2403 = vpop.f32.mrf.mxu0
      %2404 = vmatprep.mubr.f32.mxu0 0.0
      %2405 = vmatmul.mubr.f32.gmra.mxu0 %v2287
      %v2406 = vpop.f32.mrf.mxu0
      %v2407 = vadd.f32 0.0, %v2406
      %v2408 = vpop.f32.mrf.mxu0
      %2409 = vmatprep.mubr.f32.mxu0 0.0
      %2410 = vmatmul.mubr.f32.gmra.mxu0 %v2290
      %v2411 = vpop.f32.mrf.mxu0
      %v2412 = vadd.f32 0.0, %v2411
      %v2413 = vpop.f32.mrf.mxu0
      %2414 = vmatprep.mubr.f32.mxu0 0.0
      %2415 = vmatmul.mubr.f32.gmra.mxu0 %v2293
      %v2416 = vpop.f32.mrf.mxu0
      %v2417 = vadd.f32 0.0, %v2416
      %v2418 = vpop.f32.mrf.mxu0
      %2419 = vdwg.mxu0
      %v2420 = vadd.f32 %v2230, %v2362
      %v2421 = vadd.f32 %v2231, %v2367
      %v2422 = vadd.f32 %v2232, %v2372
      %v2423 = vadd.f32 %v2233, %v2377
      %v2424 = vadd.f32 %v2234, %v2382
      %v2425 = vadd.f32 %v2235, %v2387
      %v2426 = vadd.f32 %v2236, %v2392
      %v2427 = vadd.f32 %v2237, %v2397
      %v2428 = vadd.f32 %v2238, %v2402
      %v2429 = vadd.f32 %v2239, %v2407
      %v2430 = vadd.f32 %v2240, %v2412
      %v2431 = vadd.f32 %v2241, %v2417
      %v2432 = vld [vmem:[%s2051 + $0x2] sm:$0xff]
      %v2433 = vld [vmem:[%s2051 + $0xa] sm:$0xff]
      %v2434 = vld [vmem:[%s2051 + $0x1a] sm:$0xff]
      %v2435 = vld [vmem:[%s2051 + $0x22] sm:$0xff]
      %v2436 = vld [vmem:[%s2051 + $0x32] sm:$0xff]
      %v2437 = vld [vmem:[%s2051 + $0x3a] sm:$0xff]
      %v2438 = vld [vmem:[%s2051 + $0x4a] sm:$0xff]
      %v2439 = vld [vmem:[%s2051 + $0x52] sm:$0xff]
      %v2440 = vld [vmem:[%s2051 + $0x62] sm:$0xff]
      %v2441 = vld [vmem:[%s2051 + $0x6a] sm:$0xff]
      %v2442 = vld [vmem:[%s2051 + $0x7a] sm:$0xff]
      %v2443 = vld [vmem:[%s2051 + $0x82] sm:$0xff]
      %s2444 = scalar_lea.vmem %s5, 256
      %v2445 = vld [vmem:[%s2444] sm:$0xff]
      %v2446 = vld [vmem:[%s2444 + $0x8] sm:$0xff]
      %v2447 = vld [vmem:[%s2444 + $0x10] sm:$0xff]
      %v2448 = vld [vmem:[%s2444 + $0x18] sm:$0xff]
      %v2450 = vsel %vm895, %v2432, 0
      %v2453 = vsel %vm895, %v2433, 0
      %v2456 = vsel %vm895, %v2434, 0
      %v2459 = vsel %vm895, %v2435, 0
      %v2462 = vsel %vm895, %v2436, 0
      %v2465 = vsel %vm895, %v2437, 0
      %v2468 = vsel %vm895, %v2438, 0
      %v2471 = vsel %vm895, %v2439, 0
      %v2474 = vsel %vm895, %v2440, 0
      %v2477 = vsel %vm895, %v2441, 0
      %v2480 = vsel %vm895, %v2442, 0
      %v2483 = vsel %vm895, %v2443, 0
      %2485 = vmatprep.subr.mxu0 0.0
      %2486 = vmatpush1.msra.mxu0 0.0
      %2487 = vmatprep.subr.mxu0 0.0
      %2488 = vmatpush1.msra.mxu0 0.0
      %2489 = vmatprep.subr.mxu0 0.0
      %2490 = vmatpush1.msra.mxu0 0.0
      %2491 = vmatprep.subr.mxu0 0.0
      %2492 = vmatpush1.msra.mxu0 0.0
      %2493 = vmatprep.subr.mxu0 0.0
      %2494 = vmatpush1.msra.mxu0 0.0
      %2495 = vmatprep.subr.mxu0 0.0
      %2496 = vmatpush1.msra.mxu0 0.0
      %2497 = vmatprep.subr.mxu0 0.0
      %2498 = vmatpush1.msra.mxu0 0.0
      %2499 = vmatprep.subr.mxu0 0.0
      %2500 = vmatpush1.msra.mxu0 0.0
      %2501 = vmatprep.subr.mxu0 0.0
      %2502 = vmatpush1.msra.mxu0 0.0
      %2503 = vmatprep.subr.mxu0 0.0
      %2504 = vmatpush1.msra.mxu0 0.0
      %2505 = vmatprep.subr.mxu0 0.0
      %2506 = vmatpush1.msra.mxu0 0.0
      %2507 = vmatprep.subr.mxu0 0.0
      %2508 = vmatpush1.msra.mxu0 0.0
      %2509 = vmatprep.subr.mxu0 0.0
      %2510 = vmatpush1.msra.mxu0 %v2448
      %2511 = vmatprep.subr.mxu0 0.0
      %2512 = vmatpush1.msra.mxu0 %v2447
      %2513 = vmatprep.subr.mxu0 0.0
      %2514 = vmatpush1.msra.mxu0 %v2446
      %2515 = vmatprep.subr.mxu0 0.0
      %2516 = vmatpush1.msra.mxu0 %v2445
      %2517 = vmatprep.subr.mxu0 0.0
      %2518 = vmatpush2.msra.mxu0 0.0
      %2519 = vmatprep.subr.mxu0 0.0
      %2520 = vmatpush2.msra.mxu0 0.0
      %2521 = vmatprep.subr.mxu0 0.0
      %2522 = vmatpush2.msra.mxu0 0.0
      %2523 = vmatprep.subr.mxu0 0.0
      %2524 = vmatpush2.msra.mxu0 0.0
      %2525 = vmatprep.subr.mxu0 0.0
      %2526 = vmatpush2.msra.mxu0 0.0
      %2527 = vmatprep.subr.mxu0 0.0
      %2528 = vmatpush2.msra.mxu0 0.0
      %2529 = vmatprep.subr.mxu0 0.0
      %2530 = vmatpush2.msra.mxu0 0.0
      %2531 = vmatprep.subr.mxu0 0.0
      %2532 = vmatpush2.msra.mxu0 0.0
      %2533 = vmatprep.subr.mxu0 0.0
      %2534 = vmatpush2.msra.mxu0 0.0
      %2535 = vmatprep.subr.mxu0 0.0
      %2536 = vmatpush2.msra.mxu0 0.0
      %2537 = vmatprep.subr.mxu0 0.0
      %2538 = vmatpush2.msra.mxu0 0.0
      %2539 = vmatprep.subr.mxu0 0.0
      %2540 = vmatpush2.msra.mxu0 0.0
      %2541 = vmatprep.subr.mxu0 0.0
      %2542 = vmatpush2.msra.mxu0 0.0
      %2543 = vmatprep.subr.mxu0 0.0
      %2544 = vmatpush2.msra.mxu0 0.0
      %2545 = vmatprep.subr.mxu0 0.0
      %2546 = vmatpush2.msra.mxu0 0.0
      %2547 = vmatprep.subr.mxu0 0.0
      %2548 = vmatpush2.msra.mxu0 0.0
      %2549 = vmatprep.mubr.f32.mxu0 0.0
      %2550 = vmatmul.mubr.f32.gmra.mxu0 %v2450
      %v2551 = vpop.f32.mrf.mxu0
      %v2552 = vadd.f32 0.0, %v2551
      %v2553 = vpop.f32.mrf.mxu0
      %2554 = vmatprep.mubr.f32.mxu0 0.0
      %2555 = vmatmul.mubr.f32.gmra.mxu0 %v2453
      %v2556 = vpop.f32.mrf.mxu0
      %v2557 = vadd.f32 0.0, %v2556
      %v2558 = vpop.f32.mrf.mxu0
      %2559 = vmatprep.mubr.f32.mxu0 0.0
      %2560 = vmatmul.mubr.f32.gmra.mxu0 %v2456
      %v2561 = vpop.f32.mrf.mxu0
      %v2562 = vadd.f32 0.0, %v2561
      %v2563 = vpop.f32.mrf.mxu0
      %2564 = vmatprep.mubr.f32.mxu0 0.0
      %2565 = vmatmul.mubr.f32.gmra.mxu0 %v2459
      %v2566 = vpop.f32.mrf.mxu0
      %v2567 = vadd.f32 0.0, %v2566
      %v2568 = vpop.f32.mrf.mxu0
      %2569 = vmatprep.mubr.f32.mxu0 0.0
      %2570 = vmatmul.mubr.f32.gmra.mxu0 %v2462
      %v2571 = vpop.f32.mrf.mxu0
      %v2572 = vadd.f32 0.0, %v2571
      %v2573 = vpop.f32.mrf.mxu0
      %2574 = vmatprep.mubr.f32.mxu0 0.0
      %2575 = vmatmul.mubr.f32.gmra.mxu0 %v2465
      %v2576 = vpop.f32.mrf.mxu0
      %v2577 = vadd.f32 0.0, %v2576
      %v2578 = vpop.f32.mrf.mxu0
      %2579 = vmatprep.mubr.f32.mxu0 0.0
      %2580 = vmatmul.mubr.f32.gmra.mxu0 %v2468
      %v2581 = vpop.f32.mrf.mxu0
      %v2582 = vadd.f32 0.0, %v2581
      %v2583 = vpop.f32.mrf.mxu0
      %2584 = vmatprep.mubr.f32.mxu0 0.0
      %2585 = vmatmul.mubr.f32.gmra.mxu0 %v2471
      %v2586 = vpop.f32.mrf.mxu0
      %v2587 = vadd.f32 0.0, %v2586
      %v2588 = vpop.f32.mrf.mxu0
      %2589 = vmatprep.mubr.f32.mxu0 0.0
      %2590 = vmatmul.mubr.f32.gmra.mxu0 %v2474
      %v2591 = vpop.f32.mrf.mxu0
      %v2592 = vadd.f32 0.0, %v2591
      %v2593 = vpop.f32.mrf.mxu0
      %2594 = vmatprep.mubr.f32.mxu0 0.0
      %2595 = vmatmul.mubr.f32.gmra.mxu0 %v2477
      %v2596 = vpop.f32.mrf.mxu0
      %v2597 = vadd.f32 0.0, %v2596
      %v2598 = vpop.f32.mrf.mxu0
      %2599 = vmatprep.mubr.f32.mxu0 0.0
      %2600 = vmatmul.mubr.f32.gmra.mxu0 %v2480
      %v2601 = vpop.f32.mrf.mxu0
      %v2602 = vadd.f32 0.0, %v2601
      %v2603 = vpop.f32.mrf.mxu0
      %2604 = vmatprep.mubr.f32.mxu0 0.0
      %2605 = vmatmul.mubr.f32.gmra.mxu0 %v2483
      %v2606 = vpop.f32.mrf.mxu0
      %v2607 = vadd.f32 0.0, %v2606
      %v2608 = vpop.f32.mrf.mxu0
      %2609 = vdwg.mxu0
      %v2610 = vadd.f32 %v2420, %v2552
      %v2611 = vadd.f32 %v2421, %v2557
      %v2612 = vadd.f32 %v2422, %v2562
      %v2613 = vadd.f32 %v2423, %v2567
      %v2614 = vadd.f32 %v2424, %v2572
      %v2615 = vadd.f32 %v2425, %v2577
      %v2616 = vadd.f32 %v2426, %v2582
      %v2617 = vadd.f32 %v2427, %v2587
      %v2618 = vadd.f32 %v2428, %v2592
      %v2619 = vadd.f32 %v2429, %v2597
      %v2620 = vadd.f32 %v2430, %v2602
      %v2621 = vadd.f32 %v2431, %v2607
      %v2622 = vld [vmem:[%s6] sm:$0x1]
      %v2624 = vlaneseq
      %v2625 = vshrl.u32 %v2624, 7
      %v2626 = vsub.s32 0, %v2625
      %v2627 = vrot.slane %v2622, %v2626
      %v2629 = vadd.f32 %v2610, %v2627
      %v2630 = vadd.f32 %v2611, %v2627
      %v2631 = vadd.f32 %v2612, %v2627
      %v2632 = vadd.f32 %v2613, %v2627
      %v2633 = vadd.f32 %v2614, %v2627
      %v2634 = vadd.f32 %v2615, %v2627
      %v2635 = vadd.f32 %v2616, %v2627
      %v2636 = vadd.f32 %v2617, %v2627
      %v2637 = vadd.f32 %v2618, %v2627
      %v2638 = vadd.f32 %v2619, %v2627
      %v2639 = vadd.f32 %v2620, %v2627
      %v2640 = vadd.f32 %v2621, %v2627
      %v2641 = vsub.f32 0.0, %v2629
      %v2642 = vsub.f32 0.0, %v2630
      %v2643 = vsub.f32 0.0, %v2631
      %v2644 = vsub.f32 0.0, %v2632
      %v2645 = vsub.f32 0.0, %v2633
      %v2646 = vsub.f32 0.0, %v2634
      %v2647 = vsub.f32 0.0, %v2635
      %v2648 = vsub.f32 0.0, %v2636
      %v2649 = vsub.f32 0.0, %v2637
      %v2650 = vsub.f32 0.0, %v2638
      %v2651 = vsub.f32 0.0, %v2639
      %v2652 = vsub.f32 0.0, %v2640
      %v2653 = vmul.f32 %v2641, 1.442695
      %v2654 = vpow.pop %v2653
      %v2655 = vmul.f32 %v2642, 1.442695
      %v2656 = vpow.pop %v2655
      %v2657 = vmul.f32 %v2643, 1.442695
      %v2658 = vpow.pop %v2657
      %v2659 = vmul.f32 %v2644, 1.442695
      %v2660 = vpow.pop %v2659
      %v2661 = vmul.f32 %v2645, 1.442695
      %v2662 = vpow.pop %v2661
      %v2663 = vmul.f32 %v2646, 1.442695
      %v2664 = vpow.pop %v2663
      %v2665 = vmul.f32 %v2647, 1.442695
      %v2666 = vpow.pop %v2665
      %v2667 = vmul.f32 %v2648, 1.442695
      %v2668 = vpow.pop %v2667
      %v2669 = vmul.f32 %v2649, 1.442695
      %v2670 = vpow.pop %v2669
      %v2671 = vmul.f32 %v2650, 1.442695
      %v2672 = vpow.pop %v2671
      %v2673 = vmul.f32 %v2651, 1.442695
      %v2674 = vpow.pop %v2673
      %v2675 = vmul.f32 %v2652, 1.442695
      %v2676 = vpow.pop %v2675
      %v2677 = vadd.f32 %v2654, 1.0
      %v2678 = vadd.f32 %v2656, 1.0
      %v2679 = vadd.f32 %v2658, 1.0
      %v2680 = vadd.f32 %v2660, 1.0
      %v2681 = vadd.f32 %v2662, 1.0
      %v2682 = vadd.f32 %v2664, 1.0
      %v2683 = vadd.f32 %v2666, 1.0
      %v2684 = vadd.f32 %v2668, 1.0
      %v2685 = vadd.f32 %v2670, 1.0
      %v2686 = vadd.f32 %v2672, 1.0
      %v2687 = vadd.f32 %v2674, 1.0
      %v2688 = vadd.f32 %v2676, 1.0
      %v2689 = vrcp.pop %v2677
      %v2690 = vrcp.pop %v2678
      %v2691 = vrcp.pop %v2679
      %v2692 = vrcp.pop %v2680
      %v2693 = vrcp.pop %v2681
      %v2694 = vrcp.pop %v2682
      %v2695 = vrcp.pop %v2683
      %v2696 = vrcp.pop %v2684
      %v2697 = vrcp.pop %v2685
      %v2698 = vrcp.pop %v2686
      %v2699 = vrcp.pop %v2687
      %v2700 = vrcp.pop %v2688
      %v2701 = vmul.f32 %v363, %v2689
      %v2702 = vmul.f32 %v364, %v2690
      %v2703 = vmul.f32 %v365, %v2691
      %v2704 = vmul.f32 %v366, %v2692
      %v2705 = vmul.f32 %v367, %v2693
      %v2706 = vmul.f32 %v368, %v2694
      %v2707 = vmul.f32 %v369, %v2695
      %v2708 = vmul.f32 %v370, %v2696
      %v2709 = vmul.f32 %v371, %v2697
      %v2710 = vmul.f32 %v372, %v2698
      %v2711 = vmul.f32 %v373, %v2699
      %v2712 = vmul.f32 %v374, %v2700
      %v2713 = vadd.f32 %v2701, %v363
      %v2714 = vadd.f32 %v2702, %v364
      %v2715 = vadd.f32 %v2703, %v365
      %v2716 = vadd.f32 %v2704, %v366
      %v2717 = vadd.f32 %v2705, %v367
      %v2718 = vadd.f32 %v2706, %v368
      %v2719 = vadd.f32 %v2707, %v369
      %v2720 = vadd.f32 %v2708, %v370
      %v2721 = vadd.f32 %v2709, %v371
      %v2722 = vadd.f32 %v2710, %v372
      %v2723 = vadd.f32 %v2711, %v373
      %v2724 = vadd.f32 %v2712, %v374
      %vm2725 = vcmask 57344
      %2726 = vst.msk [vmem:[#allocation3] sm:$0x1] %vm2725, 0.0
      %2727 = vst.msk [vmem:[#allocation3 + $0x18] sm:$0x1] %vm2725, 0.0
      %2728 = vst.msk [vmem:[#allocation3 + $0x30] sm:$0x1] %vm2725, 0.0
      %2729 = vst.msk [vmem:[#allocation3 + $0x48] sm:$0x1] %vm2725, 0.0
      %2730 = vst.msk [vmem:[#allocation3 + $0x60] sm:$0x1] %vm2725, 0.0
      %2731 = vst.msk [vmem:[#allocation3 + $0x78] sm:$0x1] %vm2725, 0.0
      %2732 = vst.msk [vmem:[#allocation3 + $0x11] sm:$0x1] %vm2725, 0.0
      %2733 = vst.msk [vmem:[#allocation3 + $0x29] sm:$0x1] %vm2725, 0.0
      %2734 = vst.msk [vmem:[#allocation3 + $0x41] sm:$0x1] %vm2725, 0.0
      %2735 = vst.msk [vmem:[#allocation3 + $0x59] sm:$0x1] %vm2725, 0.0
      %2736 = vst.msk [vmem:[#allocation3 + $0x71] sm:$0x1] %vm2725, 0.0
      %2737 = vst.msk [vmem:[#allocation3 + $0x89] sm:$0x1] %vm2725, 0.0
      %2738 = vst.msk [vmem:[#allocation3 + $0x1] sm:$0xff] %vm385, %v2713
      %2739 = vst.msk [vmem:[#allocation3 + $0x9] sm:$0xff] %vm385, %v2714
      %2740 = vst.msk [vmem:[#allocation3 + $0x19] sm:$0xff] %vm385, %v2715
      %2741 = vst.msk [vmem:[#allocation3 + $0x21] sm:$0xff] %vm385, %v2716
      %2742 = vst.msk [vmem:[#allocation3 + $0x31] sm:$0xff] %vm385, %v2717
      %2743 = vst.msk [vmem:[#allocation3 + $0x39] sm:$0xff] %vm385, %v2718
      %2744 = vst.msk [vmem:[#allocation3 + $0x49] sm:$0xff] %vm385, %v2719
      %2745 = vst.msk [vmem:[#allocation3 + $0x51] sm:$0xff] %vm385, %v2720
      %2746 = vst.msk [vmem:[#allocation3 + $0x61] sm:$0xff] %vm385, %v2721
      %2747 = vst.msk [vmem:[#allocation3 + $0x69] sm:$0xff] %vm385, %v2722
      %2748 = vst.msk [vmem:[#allocation3 + $0x79] sm:$0xff] %vm385, %v2723
      %2749 = vst.msk [vmem:[#allocation3 + $0x81] sm:$0xff] %vm385, %v2724
      %v2750 = vld [vmem:[#allocation3] sm:$0xff]
      %v2751 = vld [vmem:[#allocation3 + $0x8] sm:$0xff]
      %v2752 = vld [vmem:[#allocation3 + $0x18] sm:$0xff]
      %v2753 = vld [vmem:[#allocation3 + $0x20] sm:$0xff]
      %v2754 = vld [vmem:[#allocation3 + $0x30] sm:$0xff]
      %v2755 = vld [vmem:[#allocation3 + $0x38] sm:$0xff]
      %v2756 = vld [vmem:[#allocation3 + $0x48] sm:$0xff]
      %v2757 = vld [vmem:[#allocation3 + $0x50] sm:$0xff]
      %v2758 = vld [vmem:[%s7] sm:$0xff]
      %v2759 = vld [vmem:[#allocation3 + $0x1] sm:$0xff]
      %v2760 = vld [vmem:[#allocation3 + $0x9] sm:$0xff]
      %v2761 = vld [vmem:[#allocation3 + $0x19] sm:$0xff]
      %v2762 = vld [vmem:[#allocation3 + $0x21] sm:$0xff]
      %v2763 = vld [vmem:[#allocation3 + $0x31] sm:$0xff]
      %v2764 = vld [vmem:[#allocation3 + $0x39] sm:$0xff]
      %v2765 = vld [vmem:[#allocation3 + $0x49] sm:$0xff]
      %v2766 = vld [vmem:[#allocation3 + $0x51] sm:$0xff]
      %s2767 = scalar_lea.vmem %s7, 8
      %v2768 = vld [vmem:[%s2767] sm:$0xff]
      %v2770 = vsel %vm385, %v2759, 0
      %v2773 = vsel %vm385, %v2760, 0
      %v2776 = vsel %vm385, %v2761, 0
      %v2779 = vsel %vm385, %v2762, 0
      %v2782 = vsel %vm385, %v2763, 0
      %v2785 = vsel %vm385, %v2764, 0
      %v2788 = vsel %vm385, %v2765, 0
      %v2791 = vsel %vm385, %v2766, 0
      %2793 = vmatprep.subr.mxu0 0.0
      %2794 = vmatpush1.msra.mxu0 0.0
      %2795 = vmatprep.subr.mxu0 0.0
      %2796 = vmatpush1.msra.mxu0 0.0
      %2797 = vmatprep.subr.mxu0 0.0
      %2798 = vmatpush1.msra.mxu0 0.0
      %2799 = vmatprep.subr.mxu0 0.0
      %2800 = vmatpush1.msra.mxu0 0.0
      %2801 = vmatprep.subr.mxu0 0.0
      %2802 = vmatpush1.msra.mxu0 0.0
      %2803 = vmatprep.subr.mxu0 0.0
      %2804 = vmatpush1.msra.mxu0 0.0
      %2805 = vmatprep.subr.mxu0 0.0
      %2806 = vmatpush1.msra.mxu0 0.0
      %2807 = vmatprep.subr.mxu0 0.0
      %2808 = vmatpush1.msra.mxu0 0.0
      %2809 = vmatprep.subr.mxu0 0.0
      %2810 = vmatpush1.msra.mxu0 0.0
      %2811 = vmatprep.subr.mxu0 0.0
      %2812 = vmatpush1.msra.mxu0 0.0
      %2813 = vmatprep.subr.mxu0 0.0
      %2814 = vmatpush1.msra.mxu0 0.0
      %2815 = vmatprep.subr.mxu0 0.0
      %2816 = vmatpush1.msra.mxu0 0.0
      %2817 = vmatprep.subr.mxu0 0.0
      %2818 = vmatpush1.msra.mxu0 0.0
      %2819 = vmatprep.subr.mxu0 0.0
      %2820 = vmatpush1.msra.mxu0 0.0
      %2821 = vmatprep.subr.mxu0 0.0
      %2822 = vmatpush1.msra.mxu0 0.0
      %2823 = vmatprep.subr.mxu0 0.0
      %2824 = vmatpush1.msra.mxu0 %v2768
      %2825 = vmatprep.subr.mxu0 0.0
      %2826 = vmatpush2.msra.mxu0 0.0
      %2827 = vmatprep.subr.mxu0 0.0
      %2828 = vmatpush2.msra.mxu0 0.0
      %2829 = vmatprep.subr.mxu0 0.0
      %2830 = vmatpush2.msra.mxu0 0.0
      %2831 = vmatprep.subr.mxu0 0.0
      %2832 = vmatpush2.msra.mxu0 0.0
      %2833 = vmatprep.subr.mxu0 0.0
      %2834 = vmatpush2.msra.mxu0 0.0
      %2835 = vmatprep.subr.mxu0 0.0
      %2836 = vmatpush2.msra.mxu0 0.0
      %2837 = vmatprep.subr.mxu0 0.0
      %2838 = vmatpush2.msra.mxu0 0.0
      %2839 = vmatprep.subr.mxu0 0.0
      %2840 = vmatpush2.msra.mxu0 0.0
      %2841 = vmatprep.subr.mxu0 0.0
      %2842 = vmatpush2.msra.mxu0 0.0
      %2843 = vmatprep.subr.mxu0 0.0
      %2844 = vmatpush2.msra.mxu0 0.0
      %2845 = vmatprep.subr.mxu0 0.0
      %2846 = vmatpush2.msra.mxu0 0.0
      %2847 = vmatprep.subr.mxu0 0.0
      %2848 = vmatpush2.msra.mxu0 0.0
      %2849 = vmatprep.subr.mxu0 0.0
      %2850 = vmatpush2.msra.mxu0 0.0
      %2851 = vmatprep.subr.mxu0 0.0
      %2852 = vmatpush2.msra.mxu0 0.0
      %2853 = vmatprep.subr.mxu0 0.0
      %2854 = vmatpush2.msra.mxu0 0.0
      %2855 = vmatprep.subr.mxu0 0.0
      %2856 = vmatpush2.msra.mxu0 0.0
      %2857 = vmatprep.mubr.f32.mxu0 0.0
      %2858 = vmatmul.mubr.f32.gmra.mxu0 %v2770
      %v2859 = vpop.f32.mrf.mxu0
      %v2860 = vadd.f32 0.0, %v2859
      %v2861 = vpop.f32.mrf.mxu0
      %2862 = vmatprep.mubr.f32.mxu0 0.0
      %2863 = vmatmul.mubr.f32.gmra.mxu0 %v2773
      %v2864 = vpop.f32.mrf.mxu0
      %v2865 = vadd.f32 0.0, %v2864
      %v2866 = vpop.f32.mrf.mxu0
      %2867 = vmatprep.mubr.f32.mxu0 0.0
      %2868 = vmatmul.mubr.f32.gmra.mxu0 %v2776
      %v2869 = vpop.f32.mrf.mxu0
      %v2870 = vadd.f32 0.0, %v2869
      %v2871 = vpop.f32.mrf.mxu0
      %2872 = vmatprep.mubr.f32.mxu0 0.0
      %2873 = vmatmul.mubr.f32.gmra.mxu0 %v2779
      %v2874 = vpop.f32.mrf.mxu0
      %v2875 = vadd.f32 0.0, %v2874
      %v2876 = vpop.f32.mrf.mxu0
      %2877 = vmatprep.mubr.f32.mxu0 0.0
      %2878 = vmatmul.mubr.f32.gmra.mxu0 %v2782
      %v2879 = vpop.f32.mrf.mxu0
      %v2880 = vadd.f32 0.0, %v2879
      %v2881 = vpop.f32.mrf.mxu0
      %2882 = vmatprep.mubr.f32.mxu0 0.0
      %2883 = vmatmul.mubr.f32.gmra.mxu0 %v2785
      %v2884 = vpop.f32.mrf.mxu0
      %v2885 = vadd.f32 0.0, %v2884
      %v2886 = vpop.f32.mrf.mxu0
      %2887 = vmatprep.mubr.f32.mxu0 0.0
      %2888 = vmatmul.mubr.f32.gmra.mxu0 %v2788
      %v2889 = vpop.f32.mrf.mxu0
      %v2890 = vadd.f32 0.0, %v2889
      %v2891 = vpop.f32.mrf.mxu0
      %2892 = vmatprep.mubr.f32.mxu0 0.0
      %2893 = vmatmul.mubr.f32.gmra.mxu0 %v2791
      %v2894 = vpop.f32.mrf.mxu0
      %v2895 = vadd.f32 0.0, %v2894
      %v2896 = vpop.f32.mrf.mxu0
      %2897 = vdwg.mxu0
      %v2899 = vsel %vm385, %v2750, 0
      %v2902 = vsel %vm385, %v2751, 0
      %v2905 = vsel %vm385, %v2752, 0
      %v2908 = vsel %vm385, %v2753, 0
      %v2911 = vsel %vm385, %v2754, 0
      %v2914 = vsel %vm385, %v2755, 0
      %v2917 = vsel %vm385, %v2756, 0
      %v2920 = vsel %vm385, %v2757, 0
      %2922 = vmatprep.subr.mxu0 0.0
      %2923 = vmatpush1.msra.mxu0 0.0
      %2924 = vmatprep.subr.mxu0 0.0
      %2925 = vmatpush1.msra.mxu0 0.0
      %2926 = vmatprep.subr.mxu0 0.0
      %2927 = vmatpush1.msra.mxu0 0.0
      %2928 = vmatprep.subr.mxu0 0.0
      %2929 = vmatpush1.msra.mxu0 0.0
      %2930 = vmatprep.subr.mxu0 0.0
      %2931 = vmatpush1.msra.mxu0 0.0
      %2932 = vmatprep.subr.mxu0 0.0
      %2933 = vmatpush1.msra.mxu0 0.0
      %2934 = vmatprep.subr.mxu0 0.0
      %2935 = vmatpush1.msra.mxu0 0.0
      %2936 = vmatprep.subr.mxu0 0.0
      %2937 = vmatpush1.msra.mxu0 0.0
      %2938 = vmatprep.subr.mxu0 0.0
      %2939 = vmatpush1.msra.mxu0 0.0
      %2940 = vmatprep.subr.mxu0 0.0
      %2941 = vmatpush1.msra.mxu0 0.0
      %2942 = vmatprep.subr.mxu0 0.0
      %2943 = vmatpush1.msra.mxu0 0.0
      %2944 = vmatprep.subr.mxu0 0.0
      %2945 = vmatpush1.msra.mxu0 0.0
      %2946 = vmatprep.subr.mxu0 0.0
      %2947 = vmatpush1.msra.mxu0 0.0
      %2948 = vmatprep.subr.mxu0 0.0
      %2949 = vmatpush1.msra.mxu0 0.0
      %2950 = vmatprep.subr.mxu0 0.0
      %2951 = vmatpush1.msra.mxu0 0.0
      %2952 = vmatprep.subr.mxu0 0.0
      %2953 = vmatpush1.msra.mxu0 %v2758
      %2954 = vmatprep.subr.mxu0 0.0
      %2955 = vmatpush2.msra.mxu0 0.0
      %2956 = vmatprep.subr.mxu0 0.0
      %2957 = vmatpush2.msra.mxu0 0.0
      %2958 = vmatprep.subr.mxu0 0.0
      %2959 = vmatpush2.msra.mxu0 0.0
      %2960 = vmatprep.subr.mxu0 0.0
      %2961 = vmatpush2.msra.mxu0 0.0
      %2962 = vmatprep.subr.mxu0 0.0
      %2963 = vmatpush2.msra.mxu0 0.0
      %2964 = vmatprep.subr.mxu0 0.0
      %2965 = vmatpush2.msra.mxu0 0.0
      %2966 = vmatprep.subr.mxu0 0.0
      %2967 = vmatpush2.msra.mxu0 0.0
      %2968 = vmatprep.subr.mxu0 0.0
      %2969 = vmatpush2.msra.mxu0 0.0
      %2970 = vmatprep.subr.mxu0 0.0
      %2971 = vmatpush2.msra.mxu0 0.0
      %2972 = vmatprep.subr.mxu0 0.0
      %2973 = vmatpush2.msra.mxu0 0.0
      %2974 = vmatprep.subr.mxu0 0.0
      %2975 = vmatpush2.msra.mxu0 0.0
      %2976 = vmatprep.subr.mxu0 0.0
      %2977 = vmatpush2.msra.mxu0 0.0
      %2978 = vmatprep.subr.mxu0 0.0
      %2979 = vmatpush2.msra.mxu0 0.0
      %2980 = vmatprep.subr.mxu0 0.0
      %2981 = vmatpush2.msra.mxu0 0.0
      %2982 = vmatprep.subr.mxu0 0.0
      %2983 = vmatpush2.msra.mxu0 0.0
      %2984 = vmatprep.subr.mxu0 0.0
      %2985 = vmatpush2.msra.mxu0 0.0
      %2986 = vmatprep.mubr.f32.mxu0 0.0
      %2987 = vmatmul.mubr.f32.gmra.mxu0 %v2899
      %v2988 = vpop.f32.mrf.mxu0
      %v2989 = vadd.f32 %v2860, %v2988
      %v2990 = vpop.f32.mrf.mxu0
      %2991 = vmatprep.mubr.f32.mxu0 0.0
      %2992 = vmatmul.mubr.f32.gmra.mxu0 %v2902
      %v2993 = vpop.f32.mrf.mxu0
      %v2994 = vadd.f32 %v2865, %v2993
      %v2995 = vpop.f32.mrf.mxu0
      %2996 = vmatprep.mubr.f32.mxu0 0.0
      %2997 = vmatmul.mubr.f32.gmra.mxu0 %v2905
      %v2998 = vpop.f32.mrf.mxu0
      %v2999 = vadd.f32 %v2870, %v2998
      %v3000 = vpop.f32.mrf.mxu0
      %3001 = vmatprep.mubr.f32.mxu0 0.0
      %3002 = vmatmul.mubr.f32.gmra.mxu0 %v2908
      %v3003 = vpop.f32.mrf.mxu0
      %v3004 = vadd.f32 %v2875, %v3003
      %v3005 = vpop.f32.mrf.mxu0
      %3006 = vmatprep.mubr.f32.mxu0 0.0
      %3007 = vmatmul.mubr.f32.gmra.mxu0 %v2911
      %v3008 = vpop.f32.mrf.mxu0
      %v3009 = vadd.f32 %v2880, %v3008
      %v3010 = vpop.f32.mrf.mxu0
      %3011 = vmatprep.mubr.f32.mxu0 0.0
      %3012 = vmatmul.mubr.f32.gmra.mxu0 %v2914
      %v3013 = vpop.f32.mrf.mxu0
      %v3014 = vadd.f32 %v2885, %v3013
      %v3015 = vpop.f32.mrf.mxu0
      %3016 = vmatprep.mubr.f32.mxu0 0.0
      %3017 = vmatmul.mubr.f32.gmra.mxu0 %v2917
      %v3018 = vpop.f32.mrf.mxu0
      %v3019 = vadd.f32 %v2890, %v3018
      %v3020 = vpop.f32.mrf.mxu0
      %3021 = vmatprep.mubr.f32.mxu0 0.0
      %3022 = vmatmul.mubr.f32.gmra.mxu0 %v2920
      %v3023 = vpop.f32.mrf.mxu0
      %v3024 = vadd.f32 %v2895, %v3023
      %v3025 = vpop.f32.mrf.mxu0
      %3026 = vdwg.mxu0
      %v3027 = vld [vmem:[#allocation3 + $0x2] sm:$0xff]
      %v3028 = vld [vmem:[#allocation3 + $0xa] sm:$0xff]
      %v3029 = vld [vmem:[#allocation3 + $0x1a] sm:$0xff]
      %v3030 = vld [vmem:[#allocation3 + $0x22] sm:$0xff]
      %v3031 = vld [vmem:[#allocation3 + $0x32] sm:$0xff]
      %v3032 = vld [vmem:[#allocation3 + $0x3a] sm:$0xff]
      %v3033 = vld [vmem:[#allocation3 + $0x4a] sm:$0xff]
      %v3034 = vld [vmem:[#allocation3 + $0x52] sm:$0xff]
      %s3035 = scalar_lea.vmem %s7, 16
      %v3036 = vld [vmem:[%s3035] sm:$0xff]
      %v3038 = vsel %vm385, %v3027, 0
      %v3041 = vsel %vm385, %v3028, 0
      %v3044 = vsel %vm385, %v3029, 0
      %v3047 = vsel %vm385, %v3030, 0
      %v3050 = vsel %vm385, %v3031, 0
      %v3053 = vsel %vm385, %v3032, 0
      %v3056 = vsel %vm385, %v3033, 0
      %v3059 = vsel %vm385, %v3034, 0
      %3061 = vmatprep.subr.mxu0 0.0
      %3062 = vmatpush1.msra.mxu0 0.0
      %3063 = vmatprep.subr.mxu0 0.0
      %3064 = vmatpush1.msra.mxu0 0.0
      %3065 = vmatprep.subr.mxu0 0.0
      %3066 = vmatpush1.msra.mxu0 0.0
      %3067 = vmatprep.subr.mxu0 0.0
      %3068 = vmatpush1.msra.mxu0 0.0
      %3069 = vmatprep.subr.mxu0 0.0
      %3070 = vmatpush1.msra.mxu0 0.0
      %3071 = vmatprep.subr.mxu0 0.0
      %3072 = vmatpush1.msra.mxu0 0.0
      %3073 = vmatprep.subr.mxu0 0.0
      %3074 = vmatpush1.msra.mxu0 0.0
      %3075 = vmatprep.subr.mxu0 0.0
      %3076 = vmatpush1.msra.mxu0 0.0
      %3077 = vmatprep.subr.mxu0 0.0
      %3078 = vmatpush1.msra.mxu0 0.0
      %3079 = vmatprep.subr.mxu0 0.0
      %3080 = vmatpush1.msra.mxu0 0.0
      %3081 = vmatprep.subr.mxu0 0.0
      %3082 = vmatpush1.msra.mxu0 0.0
      %3083 = vmatprep.subr.mxu0 0.0
      %3084 = vmatpush1.msra.mxu0 0.0
      %3085 = vmatprep.subr.mxu0 0.0
      %3086 = vmatpush1.msra.mxu0 0.0
      %3087 = vmatprep.subr.mxu0 0.0
      %3088 = vmatpush1.msra.mxu0 0.0
      %3089 = vmatprep.subr.mxu0 0.0
      %3090 = vmatpush1.msra.mxu0 0.0
      %3091 = vmatprep.subr.mxu0 0.0
      %3092 = vmatpush1.msra.mxu0 %v3036
      %3093 = vmatprep.subr.mxu0 0.0
      %3094 = vmatpush2.msra.mxu0 0.0
      %3095 = vmatprep.subr.mxu0 0.0
      %3096 = vmatpush2.msra.mxu0 0.0
      %3097 = vmatprep.subr.mxu0 0.0
      %3098 = vmatpush2.msra.mxu0 0.0
      %3099 = vmatprep.subr.mxu0 0.0
      %3100 = vmatpush2.msra.mxu0 0.0
      %3101 = vmatprep.subr.mxu0 0.0
      %3102 = vmatpush2.msra.mxu0 0.0
      %3103 = vmatprep.subr.mxu0 0.0
      %3104 = vmatpush2.msra.mxu0 0.0
      %3105 = vmatprep.subr.mxu0 0.0
      %3106 = vmatpush2.msra.mxu0 0.0
      %3107 = vmatprep.subr.mxu0 0.0
      %3108 = vmatpush2.msra.mxu0 0.0
      %3109 = vmatprep.subr.mxu0 0.0
      %3110 = vmatpush2.msra.mxu0 0.0
      %3111 = vmatprep.subr.mxu0 0.0
      %3112 = vmatpush2.msra.mxu0 0.0
      %3113 = vmatprep.subr.mxu0 0.0
      %3114 = vmatpush2.msra.mxu0 0.0
      %3115 = vmatprep.subr.mxu0 0.0
      %3116 = vmatpush2.msra.mxu0 0.0
      %3117 = vmatprep.subr.mxu0 0.0
      %3118 = vmatpush2.msra.mxu0 0.0
      %3119 = vmatprep.subr.mxu0 0.0
      %3120 = vmatpush2.msra.mxu0 0.0
      %3121 = vmatprep.subr.mxu0 0.0
      %3122 = vmatpush2.msra.mxu0 0.0
      %3123 = vmatprep.subr.mxu0 0.0
      %3124 = vmatpush2.msra.mxu0 0.0
      %3125 = vmatprep.mubr.f32.mxu0 0.0
      %3126 = vmatmul.mubr.f32.gmra.mxu0 %v3038
      %v3127 = vpop.f32.mrf.mxu0
      %v3128 = vadd.f32 0.0, %v3127
      %v3129 = vpop.f32.mrf.mxu0
      %3130 = vmatprep.mubr.f32.mxu0 0.0
      %3131 = vmatmul.mubr.f32.gmra.mxu0 %v3041
      %v3132 = vpop.f32.mrf.mxu0
      %v3133 = vadd.f32 0.0, %v3132
      %v3134 = vpop.f32.mrf.mxu0
      %3135 = vmatprep.mubr.f32.mxu0 0.0
      %3136 = vmatmul.mubr.f32.gmra.mxu0 %v3044
      %v3137 = vpop.f32.mrf.mxu0
      %v3138 = vadd.f32 0.0, %v3137
      %v3139 = vpop.f32.mrf.mxu0
      %3140 = vmatprep.mubr.f32.mxu0 0.0
      %3141 = vmatmul.mubr.f32.gmra.mxu0 %v3047
      %v3142 = vpop.f32.mrf.mxu0
      %v3143 = vadd.f32 0.0, %v3142
      %v3144 = vpop.f32.mrf.mxu0
      %3145 = vmatprep.mubr.f32.mxu0 0.0
      %3146 = vmatmul.mubr.f32.gmra.mxu0 %v3050
      %v3147 = vpop.f32.mrf.mxu0
      %v3148 = vadd.f32 0.0, %v3147
      %v3149 = vpop.f32.mrf.mxu0
      %3150 = vmatprep.mubr.f32.mxu0 0.0
      %3151 = vmatmul.mubr.f32.gmra.mxu0 %v3053
      %v3152 = vpop.f32.mrf.mxu0
      %v3153 = vadd.f32 0.0, %v3152
      %v3154 = vpop.f32.mrf.mxu0
      %3155 = vmatprep.mubr.f32.mxu0 0.0
      %3156 = vmatmul.mubr.f32.gmra.mxu0 %v3056
      %v3157 = vpop.f32.mrf.mxu0
      %v3158 = vadd.f32 0.0, %v3157
      %v3159 = vpop.f32.mrf.mxu0
      %3160 = vmatprep.mubr.f32.mxu0 0.0
      %3161 = vmatmul.mubr.f32.gmra.mxu0 %v3059
      %v3162 = vpop.f32.mrf.mxu0
      %v3163 = vadd.f32 0.0, %v3162
      %v3164 = vpop.f32.mrf.mxu0
      %3165 = vdwg.mxu0
      %v3166 = vadd.f32 %v2989, %v3128
      %v3167 = vadd.f32 %v2994, %v3133
      %v3168 = vadd.f32 %v2999, %v3138
      %v3169 = vadd.f32 %v3004, %v3143
      %v3170 = vadd.f32 %v3009, %v3148
      %v3171 = vadd.f32 %v3014, %v3153
      %v3172 = vadd.f32 %v3019, %v3158
      %v3173 = vadd.f32 %v3024, %v3163
      %s3174 = scalar_lea.vmem [#allocation3], 24
      %v3175 = vld [vmem:[%s3174] sm:$0xff]
      %v3176 = vld [vmem:[%s3174 + $0x8] sm:$0xff]
      %v3177 = vld [vmem:[%s3174 + $0x18] sm:$0xff]
      %v3178 = vld [vmem:[%s3174 + $0x20] sm:$0xff]
      %v3179 = vld [vmem:[%s3174 + $0x30] sm:$0xff]
      %v3180 = vld [vmem:[%s3174 + $0x38] sm:$0xff]
      %v3181 = vld [vmem:[%s3174 + $0x48] sm:$0xff]
      %v3182 = vld [vmem:[%s3174 + $0x50] sm:$0xff]
      %s3183 = scalar_lea.vmem %s7, 24
      %v3184 = vld [vmem:[%s3183] sm:$0xff]
      %v3186 = vsel %vm385, %v3175, 0
      %v3189 = vsel %vm385, %v3176, 0
      %v3192 = vsel %vm385, %v3177, 0
      %v3195 = vsel %vm385, %v3178, 0
      %v3198 = vsel %vm385, %v3179, 0
      %v3201 = vsel %vm385, %v3180, 0
      %v3204 = vsel %vm385, %v3181, 0
      %v3207 = vsel %vm385, %v3182, 0
      %3209 = vmatprep.subr.mxu0 0.0
      %3210 = vmatpush1.msra.mxu0 0.0
      %3211 = vmatprep.subr.mxu0 0.0
      %3212 = vmatpush1.msra.mxu0 0.0
      %3213 = vmatprep.subr.mxu0 0.0
      %3214 = vmatpush1.msra.mxu0 0.0
      %3215 = vmatprep.subr.mxu0 0.0
      %3216 = vmatpush1.msra.mxu0 0.0
      %3217 = vmatprep.subr.mxu0 0.0
      %3218 = vmatpush1.msra.mxu0 0.0
      %3219 = vmatprep.subr.mxu0 0.0
      %3220 = vmatpush1.msra.mxu0 0.0
      %3221 = vmatprep.subr.mxu0 0.0
      %3222 = vmatpush1.msra.mxu0 0.0
      %3223 = vmatprep.subr.mxu0 0.0
      %3224 = vmatpush1.msra.mxu0 0.0
      %3225 = vmatprep.subr.mxu0 0.0
      %3226 = vmatpush1.msra.mxu0 0.0
      %3227 = vmatprep.subr.mxu0 0.0
      %3228 = vmatpush1.msra.mxu0 0.0
      %3229 = vmatprep.subr.mxu0 0.0
      %3230 = vmatpush1.msra.mxu0 0.0
      %3231 = vmatprep.subr.mxu0 0.0
      %3232 = vmatpush1.msra.mxu0 0.0
      %3233 = vmatprep.subr.mxu0 0.0
      %3234 = vmatpush1.msra.mxu0 0.0
      %3235 = vmatprep.subr.mxu0 0.0
      %3236 = vmatpush1.msra.mxu0 0.0
      %3237 = vmatprep.subr.mxu0 0.0
      %3238 = vmatpush1.msra.mxu0 0.0
      %3239 = vmatprep.subr.mxu0 0.0
      %3240 = vmatpush1.msra.mxu0 %v3184
      %3241 = vmatprep.subr.mxu0 0.0
      %3242 = vmatpush2.msra.mxu0 0.0
      %3243 = vmatprep.subr.mxu0 0.0
      %3244 = vmatpush2.msra.mxu0 0.0
      %3245 = vmatprep.subr.mxu0 0.0
      %3246 = vmatpush2.msra.mxu0 0.0
      %3247 = vmatprep.subr.mxu0 0.0
      %3248 = vmatpush2.msra.mxu0 0.0
      %3249 = vmatprep.subr.mxu0 0.0
      %3250 = vmatpush2.msra.mxu0 0.0
      %3251 = vmatprep.subr.mxu0 0.0
      %3252 = vmatpush2.msra.mxu0 0.0
      %3253 = vmatprep.subr.mxu0 0.0
      %3254 = vmatpush2.msra.mxu0 0.0
      %3255 = vmatprep.subr.mxu0 0.0
      %3256 = vmatpush2.msra.mxu0 0.0
      %3257 = vmatprep.subr.mxu0 0.0
      %3258 = vmatpush2.msra.mxu0 0.0
      %3259 = vmatprep.subr.mxu0 0.0
      %3260 = vmatpush2.msra.mxu0 0.0
      %3261 = vmatprep.subr.mxu0 0.0
      %3262 = vmatpush2.msra.mxu0 0.0
      %3263 = vmatprep.subr.mxu0 0.0
      %3264 = vmatpush2.msra.mxu0 0.0
      %3265 = vmatprep.subr.mxu0 0.0
      %3266 = vmatpush2.msra.mxu0 0.0
      %3267 = vmatprep.subr.mxu0 0.0
      %3268 = vmatpush2.msra.mxu0 0.0
      %3269 = vmatprep.subr.mxu0 0.0
      %3270 = vmatpush2.msra.mxu0 0.0
      %3271 = vmatprep.subr.mxu0 0.0
      %3272 = vmatpush2.msra.mxu0 0.0
      %3273 = vmatprep.mubr.f32.mxu0 0.0
      %3274 = vmatmul.mubr.f32.gmra.mxu0 %v3186
      %v3275 = vpop.f32.mrf.mxu0
      %v3276 = vadd.f32 0.0, %v3275
      %v3277 = vpop.f32.mrf.mxu0
      %3278 = vmatprep.mubr.f32.mxu0 0.0
      %3279 = vmatmul.mubr.f32.gmra.mxu0 %v3189
      %v3280 = vpop.f32.mrf.mxu0
      %v3281 = vadd.f32 0.0, %v3280
      %v3282 = vpop.f32.mrf.mxu0
      %3283 = vmatprep.mubr.f32.mxu0 0.0
      %3284 = vmatmul.mubr.f32.gmra.mxu0 %v3192
      %v3285 = vpop.f32.mrf.mxu0
      %v3286 = vadd.f32 0.0, %v3285
      %v3287 = vpop.f32.mrf.mxu0
      %3288 = vmatprep.mubr.f32.mxu0 0.0
      %3289 = vmatmul.mubr.f32.gmra.mxu0 %v3195
      %v3290 = vpop.f32.mrf.mxu0
      %v3291 = vadd.f32 0.0, %v3290
      %v3292 = vpop.f32.mrf.mxu0
      %3293 = vmatprep.mubr.f32.mxu0 0.0
      %3294 = vmatmul.mubr.f32.gmra.mxu0 %v3198
      %v3295 = vpop.f32.mrf.mxu0
      %v3296 = vadd.f32 0.0, %v3295
      %v3297 = vpop.f32.mrf.mxu0
      %3298 = vmatprep.mubr.f32.mxu0 0.0
      %3299 = vmatmul.mubr.f32.gmra.mxu0 %v3201
      %v3300 = vpop.f32.mrf.mxu0
      %v3301 = vadd.f32 0.0, %v3300
      %v3302 = vpop.f32.mrf.mxu0
      %3303 = vmatprep.mubr.f32.mxu0 0.0
      %3304 = vmatmul.mubr.f32.gmra.mxu0 %v3204
      %v3305 = vpop.f32.mrf.mxu0
      %v3306 = vadd.f32 0.0, %v3305
      %v3307 = vpop.f32.mrf.mxu0
      %3308 = vmatprep.mubr.f32.mxu0 0.0
      %3309 = vmatmul.mubr.f32.gmra.mxu0 %v3207
      %v3310 = vpop.f32.mrf.mxu0
      %v3311 = vadd.f32 0.0, %v3310
      %v3312 = vpop.f32.mrf.mxu0
      %3313 = vdwg.mxu0
      %v3314 = vadd.f32 %v3166, %v3276
      %v3315 = vadd.f32 %v3167, %v3281
      %v3316 = vadd.f32 %v3168, %v3286
      %v3317 = vadd.f32 %v3169, %v3291
      %v3318 = vadd.f32 %v3170, %v3296
      %v3319 = vadd.f32 %v3171, %v3301
      %v3320 = vadd.f32 %v3172, %v3306
      %v3321 = vadd.f32 %v3173, %v3311
      %v3322 = vld [vmem:[%s3174 + $0x1] sm:$0xff]
      %v3323 = vld [vmem:[%s3174 + $0x9] sm:$0xff]
      %v3324 = vld [vmem:[%s3174 + $0x19] sm:$0xff]
      %v3325 = vld [vmem:[%s3174 + $0x21] sm:$0xff]
      %v3326 = vld [vmem:[%s3174 + $0x31] sm:$0xff]
      %v3327 = vld [vmem:[%s3174 + $0x39] sm:$0xff]
      %v3328 = vld [vmem:[%s3174 + $0x49] sm:$0xff]
      %v3329 = vld [vmem:[%s3174 + $0x51] sm:$0xff]
      %s3330 = scalar_lea.vmem %s7, 32
      %v3331 = vld [vmem:[%s3330] sm:$0xff]
      %v3333 = vsel %vm385, %v3322, 0
      %v3336 = vsel %vm385, %v3323, 0
      %v3339 = vsel %vm385, %v3324, 0
      %v3342 = vsel %vm385, %v3325, 0
      %v3345 = vsel %vm385, %v3326, 0
      %v3348 = vsel %vm385, %v3327, 0
      %v3351 = vsel %vm385, %v3328, 0
      %v3354 = vsel %vm385, %v3329, 0
      %3356 = vmatprep.subr.mxu0 0.0
      %3357 = vmatpush1.msra.mxu0 0.0
      %3358 = vmatprep.subr.mxu0 0.0
      %3359 = vmatpush1.msra.mxu0 0.0
      %3360 = vmatprep.subr.mxu0 0.0
      %3361 = vmatpush1.msra.mxu0 0.0
      %3362 = vmatprep.subr.mxu0 0.0
      %3363 = vmatpush1.msra.mxu0 0.0
      %3364 = vmatprep.subr.mxu0 0.0
      %3365 = vmatpush1.msra.mxu0 0.0
      %3366 = vmatprep.subr.mxu0 0.0
      %3367 = vmatpush1.msra.mxu0 0.0
      %3368 = vmatprep.subr.mxu0 0.0
      %3369 = vmatpush1.msra.mxu0 0.0
      %3370 = vmatprep.subr.mxu0 0.0
      %3371 = vmatpush1.msra.mxu0 0.0
      %3372 = vmatprep.subr.mxu0 0.0
      %3373 = vmatpush1.msra.mxu0 0.0
      %3374 = vmatprep.subr.mxu0 0.0
      %3375 = vmatpush1.msra.mxu0 0.0
      %3376 = vmatprep.subr.mxu0 0.0
      %3377 = vmatpush1.msra.mxu0 0.0
      %3378 = vmatprep.subr.mxu0 0.0
      %3379 = vmatpush1.msra.mxu0 0.0
      %3380 = vmatprep.subr.mxu0 0.0
      %3381 = vmatpush1.msra.mxu0 0.0
      %3382 = vmatprep.subr.mxu0 0.0
      %3383 = vmatpush1.msra.mxu0 0.0
      %3384 = vmatprep.subr.mxu0 0.0
      %3385 = vmatpush1.msra.mxu0 0.0
      %3386 = vmatprep.subr.mxu0 0.0
      %3387 = vmatpush1.msra.mxu0 %v3331
      %3388 = vmatprep.subr.mxu0 0.0
      %3389 = vmatpush2.msra.mxu0 0.0
      %3390 = vmatprep.subr.mxu0 0.0
      %3391 = vmatpush2.msra.mxu0 0.0
      %3392 = vmatprep.subr.mxu0 0.0
      %3393 = vmatpush2.msra.mxu0 0.0
      %3394 = vmatprep.subr.mxu0 0.0
      %3395 = vmatpush2.msra.mxu0 0.0
      %3396 = vmatprep.subr.mxu0 0.0
      %3397 = vmatpush2.msra.mxu0 0.0
      %3398 = vmatprep.subr.mxu0 0.0
      %3399 = vmatpush2.msra.mxu0 0.0
      %3400 = vmatprep.subr.mxu0 0.0
      %3401 = vmatpush2.msra.mxu0 0.0
      %3402 = vmatprep.subr.mxu0 0.0
      %3403 = vmatpush2.msra.mxu0 0.0
      %3404 = vmatprep.subr.mxu0 0.0
      %3405 = vmatpush2.msra.mxu0 0.0
      %3406 = vmatprep.subr.mxu0 0.0
      %3407 = vmatpush2.msra.mxu0 0.0
      %3408 = vmatprep.subr.mxu0 0.0
      %3409 = vmatpush2.msra.mxu0 0.0
      %3410 = vmatprep.subr.mxu0 0.0
      %3411 = vmatpush2.msra.mxu0 0.0
      %3412 = vmatprep.subr.mxu0 0.0
      %3413 = vmatpush2.msra.mxu0 0.0
      %3414 = vmatprep.subr.mxu0 0.0
      %3415 = vmatpush2.msra.mxu0 0.0
      %3416 = vmatprep.subr.mxu0 0.0
      %3417 = vmatpush2.msra.mxu0 0.0
      %3418 = vmatprep.subr.mxu0 0.0
      %3419 = vmatpush2.msra.mxu0 0.0
      %3420 = vmatprep.mubr.f32.mxu0 0.0
      %3421 = vmatmul.mubr.f32.gmra.mxu0 %v3333
      %v3422 = vpop.f32.mrf.mxu0
      %v3423 = vadd.f32 0.0, %v3422
      %v3424 = vpop.f32.mrf.mxu0
      %3425 = vmatprep.mubr.f32.mxu0 0.0
      %3426 = vmatmul.mubr.f32.gmra.mxu0 %v3336
      %v3427 = vpop.f32.mrf.mxu0
      %v3428 = vadd.f32 0.0, %v3427
      %v3429 = vpop.f32.mrf.mxu0
      %3430 = vmatprep.mubr.f32.mxu0 0.0
      %3431 = vmatmul.mubr.f32.gmra.mxu0 %v3339
      %v3432 = vpop.f32.mrf.mxu0
      %v3433 = vadd.f32 0.0, %v3432
      %v3434 = vpop.f32.mrf.mxu0
      %3435 = vmatprep.mubr.f32.mxu0 0.0
      %3436 = vmatmul.mubr.f32.gmra.mxu0 %v3342
      %v3437 = vpop.f32.mrf.mxu0
      %v3438 = vadd.f32 0.0, %v3437
      %v3439 = vpop.f32.mrf.mxu0
      %3440 = vmatprep.mubr.f32.mxu0 0.0
      %3441 = vmatmul.mubr.f32.gmra.mxu0 %v3345
      %v3442 = vpop.f32.mrf.mxu0
      %v3443 = vadd.f32 0.0, %v3442
      %v3444 = vpop.f32.mrf.mxu0
      %3445 = vmatprep.mubr.f32.mxu0 0.0
      %3446 = vmatmul.mubr.f32.gmra.mxu0 %v3348
      %v3447 = vpop.f32.mrf.mxu0
      %v3448 = vadd.f32 0.0, %v3447
      %v3449 = vpop.f32.mrf.mxu0
      %3450 = vmatprep.mubr.f32.mxu0 0.0
      %3451 = vmatmul.mubr.f32.gmra.mxu0 %v3351
      %v3452 = vpop.f32.mrf.mxu0
      %v3453 = vadd.f32 0.0, %v3452
      %v3454 = vpop.f32.mrf.mxu0
      %3455 = vmatprep.mubr.f32.mxu0 0.0
      %3456 = vmatmul.mubr.f32.gmra.mxu0 %v3354
      %v3457 = vpop.f32.mrf.mxu0
      %v3458 = vadd.f32 0.0, %v3457
      %v3459 = vpop.f32.mrf.mxu0
      %3460 = vdwg.mxu0
      %v3461 = vadd.f32 %v3314, %v3423
      %v3462 = vadd.f32 %v3315, %v3428
      %v3463 = vadd.f32 %v3316, %v3433
      %v3464 = vadd.f32 %v3317, %v3438
      %v3465 = vadd.f32 %v3318, %v3443
      %v3466 = vadd.f32 %v3319, %v3448
      %v3467 = vadd.f32 %v3320, %v3453
      %v3468 = vadd.f32 %v3321, %v3458
      %v3469 = vld [vmem:[%s3174 + $0x2] sm:$0xff]
      %v3470 = vld [vmem:[%s3174 + $0xa] sm:$0xff]
      %v3471 = vld [vmem:[%s3174 + $0x1a] sm:$0xff]
      %v3472 = vld [vmem:[%s3174 + $0x22] sm:$0xff]
      %v3473 = vld [vmem:[%s3174 + $0x32] sm:$0xff]
      %v3474 = vld [vmem:[%s3174 + $0x3a] sm:$0xff]
      %v3475 = vld [vmem:[%s3174 + $0x4a] sm:$0xff]
      %v3476 = vld [vmem:[%s3174 + $0x52] sm:$0xff]
      %s3477 = scalar_lea.vmem %s7, 40
      %v3478 = vld [vmem:[%s3477] sm:$0xff]
      %v3480 = vsel %vm385, %v3469, 0
      %v3483 = vsel %vm385, %v3470, 0
      %v3486 = vsel %vm385, %v3471, 0
      %v3489 = vsel %vm385, %v3472, 0
      %v3492 = vsel %vm385, %v3473, 0
      %v3495 = vsel %vm385, %v3474, 0
      %v3498 = vsel %vm385, %v3475, 0
      %v3501 = vsel %vm385, %v3476, 0
      %3503 = vmatprep.subr.mxu0 0.0
      %3504 = vmatpush1.msra.mxu0 0.0
      %3505 = vmatprep.subr.mxu0 0.0
      %3506 = vmatpush1.msra.mxu0 0.0
      %3507 = vmatprep.subr.mxu0 0.0
      %3508 = vmatpush1.msra.mxu0 0.0
      %3509 = vmatprep.subr.mxu0 0.0
      %3510 = vmatpush1.msra.mxu0 0.0
      %3511 = vmatprep.subr.mxu0 0.0
      %3512 = vmatpush1.msra.mxu0 0.0
      %3513 = vmatprep.subr.mxu0 0.0
      %3514 = vmatpush1.msra.mxu0 0.0
      %3515 = vmatprep.subr.mxu0 0.0
      %3516 = vmatpush1.msra.mxu0 0.0
      %3517 = vmatprep.subr.mxu0 0.0
      %3518 = vmatpush1.msra.mxu0 0.0
      %3519 = vmatprep.subr.mxu0 0.0
      %3520 = vmatpush1.msra.mxu0 0.0
      %3521 = vmatprep.subr.mxu0 0.0
      %3522 = vmatpush1.msra.mxu0 0.0
      %3523 = vmatprep.subr.mxu0 0.0
      %3524 = vmatpush1.msra.mxu0 0.0
      %3525 = vmatprep.subr.mxu0 0.0
      %3526 = vmatpush1.msra.mxu0 0.0
      %3527 = vmatprep.subr.mxu0 0.0
      %3528 = vmatpush1.msra.mxu0 0.0
      %3529 = vmatprep.subr.mxu0 0.0
      %3530 = vmatpush1.msra.mxu0 0.0
      %3531 = vmatprep.subr.mxu0 0.0
      %3532 = vmatpush1.msra.mxu0 0.0
      %3533 = vmatprep.subr.mxu0 0.0
      %3534 = vmatpush1.msra.mxu0 %v3478
      %3535 = vmatprep.subr.mxu0 0.0
      %3536 = vmatpush2.msra.mxu0 0.0
      %3537 = vmatprep.subr.mxu0 0.0
      %3538 = vmatpush2.msra.mxu0 0.0
      %3539 = vmatprep.subr.mxu0 0.0
      %3540 = vmatpush2.msra.mxu0 0.0
      %3541 = vmatprep.subr.mxu0 0.0
      %3542 = vmatpush2.msra.mxu0 0.0
      %3543 = vmatprep.subr.mxu0 0.0
      %3544 = vmatpush2.msra.mxu0 0.0
      %3545 = vmatprep.subr.mxu0 0.0
      %3546 = vmatpush2.msra.mxu0 0.0
      %3547 = vmatprep.subr.mxu0 0.0
      %3548 = vmatpush2.msra.mxu0 0.0
      %3549 = vmatprep.subr.mxu0 0.0
      %3550 = vmatpush2.msra.mxu0 0.0
      %3551 = vmatprep.subr.mxu0 0.0
      %3552 = vmatpush2.msra.mxu0 0.0
      %3553 = vmatprep.subr.mxu0 0.0
      %3554 = vmatpush2.msra.mxu0 0.0
      %3555 = vmatprep.subr.mxu0 0.0
      %3556 = vmatpush2.msra.mxu0 0.0
      %3557 = vmatprep.subr.mxu0 0.0
      %3558 = vmatpush2.msra.mxu0 0.0
      %3559 = vmatprep.subr.mxu0 0.0
      %3560 = vmatpush2.msra.mxu0 0.0
      %3561 = vmatprep.subr.mxu0 0.0
      %3562 = vmatpush2.msra.mxu0 0.0
      %3563 = vmatprep.subr.mxu0 0.0
      %3564 = vmatpush2.msra.mxu0 0.0
      %3565 = vmatprep.subr.mxu0 0.0
      %3566 = vmatpush2.msra.mxu0 0.0
      %3567 = vmatprep.mubr.f32.mxu0 0.0
      %3568 = vmatmul.mubr.f32.gmra.mxu0 %v3480
      %v3569 = vpop.f32.mrf.mxu0
      %v3570 = vadd.f32 0.0, %v3569
      %v3571 = vpop.f32.mrf.mxu0
      %3572 = vmatprep.mubr.f32.mxu0 0.0
      %3573 = vmatmul.mubr.f32.gmra.mxu0 %v3483
      %v3574 = vpop.f32.mrf.mxu0
      %v3575 = vadd.f32 0.0, %v3574
      %v3576 = vpop.f32.mrf.mxu0
      %3577 = vmatprep.mubr.f32.mxu0 0.0
      %3578 = vmatmul.mubr.f32.gmra.mxu0 %v3486
      %v3579 = vpop.f32.mrf.mxu0
      %v3580 = vadd.f32 0.0, %v3579
      %v3581 = vpop.f32.mrf.mxu0
      %3582 = vmatprep.mubr.f32.mxu0 0.0
      %3583 = vmatmul.mubr.f32.gmra.mxu0 %v3489
      %v3584 = vpop.f32.mrf.mxu0
      %v3585 = vadd.f32 0.0, %v3584
      %v3586 = vpop.f32.mrf.mxu0
      %3587 = vmatprep.mubr.f32.mxu0 0.0
      %3588 = vmatmul.mubr.f32.gmra.mxu0 %v3492
      %v3589 = vpop.f32.mrf.mxu0
      %v3590 = vadd.f32 0.0, %v3589
      %v3591 = vpop.f32.mrf.mxu0
      %3592 = vmatprep.mubr.f32.mxu0 0.0
      %3593 = vmatmul.mubr.f32.gmra.mxu0 %v3495
      %v3594 = vpop.f32.mrf.mxu0
      %v3595 = vadd.f32 0.0, %v3594
      %v3596 = vpop.f32.mrf.mxu0
      %3597 = vmatprep.mubr.f32.mxu0 0.0
      %3598 = vmatmul.mubr.f32.gmra.mxu0 %v3498
      %v3599 = vpop.f32.mrf.mxu0
      %v3600 = vadd.f32 0.0, %v3599
      %v3601 = vpop.f32.mrf.mxu0
      %3602 = vmatprep.mubr.f32.mxu0 0.0
      %3603 = vmatmul.mubr.f32.gmra.mxu0 %v3501
      %v3604 = vpop.f32.mrf.mxu0
      %v3605 = vadd.f32 0.0, %v3604
      %v3606 = vpop.f32.mrf.mxu0
      %3607 = vdwg.mxu0
      %v3608 = vadd.f32 %v3461, %v3570
      %v3609 = vadd.f32 %v3462, %v3575
      %v3610 = vadd.f32 %v3463, %v3580
      %v3611 = vadd.f32 %v3464, %v3585
      %v3612 = vadd.f32 %v3465, %v3590
      %v3613 = vadd.f32 %v3466, %v3595
      %v3614 = vadd.f32 %v3467, %v3600
      %v3615 = vadd.f32 %v3468, %v3605
      %s3616 = scalar_lea.vmem [#allocation3], 48
      %v3617 = vld [vmem:[%s3616] sm:$0xff]
      %v3618 = vld [vmem:[%s3616 + $0x8] sm:$0xff]
      %v3619 = vld [vmem:[%s3616 + $0x18] sm:$0xff]
      %v3620 = vld [vmem:[%s3616 + $0x20] sm:$0xff]
      %v3621 = vld [vmem:[%s3616 + $0x30] sm:$0xff]
      %v3622 = vld [vmem:[%s3616 + $0x38] sm:$0xff]
      %v3623 = vld [vmem:[%s3616 + $0x48] sm:$0xff]
      %v3624 = vld [vmem:[%s3616 + $0x50] sm:$0xff]
      %s3625 = scalar_lea.vmem %s7, 48
      %v3626 = vld [vmem:[%s3625] sm:$0xff]
      %v3628 = vsel %vm385, %v3617, 0
      %v3631 = vsel %vm385, %v3618, 0
      %v3634 = vsel %vm385, %v3619, 0
      %v3637 = vsel %vm385, %v3620, 0
      %v3640 = vsel %vm385, %v3621, 0
      %v3643 = vsel %vm385, %v3622, 0
      %v3646 = vsel %vm385, %v3623, 0
      %v3649 = vsel %vm385, %v3624, 0
      %3651 = vmatprep.subr.mxu0 0.0
      %3652 = vmatpush1.msra.mxu0 0.0
      %3653 = vmatprep.subr.mxu0 0.0
      %3654 = vmatpush1.msra.mxu0 0.0
      %3655 = vmatprep.subr.mxu0 0.0
      %3656 = vmatpush1.msra.mxu0 0.0
      %3657 = vmatprep.subr.mxu0 0.0
      %3658 = vmatpush1.msra.mxu0 0.0
      %3659 = vmatprep.subr.mxu0 0.0
      %3660 = vmatpush1.msra.mxu0 0.0
      %3661 = vmatprep.subr.mxu0 0.0
      %3662 = vmatpush1.msra.mxu0 0.0
      %3663 = vmatprep.subr.mxu0 0.0
      %3664 = vmatpush1.msra.mxu0 0.0
      %3665 = vmatprep.subr.mxu0 0.0
      %3666 = vmatpush1.msra.mxu0 0.0
      %3667 = vmatprep.subr.mxu0 0.0
      %3668 = vmatpush1.msra.mxu0 0.0
      %3669 = vmatprep.subr.mxu0 0.0
      %3670 = vmatpush1.msra.mxu0 0.0
      %3671 = vmatprep.subr.mxu0 0.0
      %3672 = vmatpush1.msra.mxu0 0.0
      %3673 = vmatprep.subr.mxu0 0.0
      %3674 = vmatpush1.msra.mxu0 0.0
      %3675 = vmatprep.subr.mxu0 0.0
      %3676 = vmatpush1.msra.mxu0 0.0
      %3677 = vmatprep.subr.mxu0 0.0
      %3678 = vmatpush1.msra.mxu0 0.0
      %3679 = vmatprep.subr.mxu0 0.0
      %3680 = vmatpush1.msra.mxu0 0.0
      %3681 = vmatprep.subr.mxu0 0.0
      %3682 = vmatpush1.msra.mxu0 %v3626
      %3683 = vmatprep.subr.mxu0 0.0
      %3684 = vmatpush2.msra.mxu0 0.0
      %3685 = vmatprep.subr.mxu0 0.0
      %3686 = vmatpush2.msra.mxu0 0.0
      %3687 = vmatprep.subr.mxu0 0.0
      %3688 = vmatpush2.msra.mxu0 0.0
      %3689 = vmatprep.subr.mxu0 0.0
      %3690 = vmatpush2.msra.mxu0 0.0
      %3691 = vmatprep.subr.mxu0 0.0
      %3692 = vmatpush2.msra.mxu0 0.0
      %3693 = vmatprep.subr.mxu0 0.0
      %3694 = vmatpush2.msra.mxu0 0.0
      %3695 = vmatprep.subr.mxu0 0.0
      %3696 = vmatpush2.msra.mxu0 0.0
      %3697 = vmatprep.subr.mxu0 0.0
      %3698 = vmatpush2.msra.mxu0 0.0
      %3699 = vmatprep.subr.mxu0 0.0
      %3700 = vmatpush2.msra.mxu0 0.0
      %3701 = vmatprep.subr.mxu0 0.0
      %3702 = vmatpush2.msra.mxu0 0.0
      %3703 = vmatprep.subr.mxu0 0.0
      %3704 = vmatpush2.msra.mxu0 0.0
      %3705 = vmatprep.subr.mxu0 0.0
      %3706 = vmatpush2.msra.mxu0 0.0
      %3707 = vmatprep.subr.mxu0 0.0
      %3708 = vmatpush2.msra.mxu0 0.0
      %3709 = vmatprep.subr.mxu0 0.0
      %3710 = vmatpush2.msra.mxu0 0.0
      %3711 = vmatprep.subr.mxu0 0.0
      %3712 = vmatpush2.msra.mxu0 0.0
      %3713 = vmatprep.subr.mxu0 0.0
      %3714 = vmatpush2.msra.mxu0 0.0
      %3715 = vmatprep.mubr.f32.mxu0 0.0
      %3716 = vmatmul.mubr.f32.gmra.mxu0 %v3628
      %v3717 = vpop.f32.mrf.mxu0
      %v3718 = vadd.f32 0.0, %v3717
      %v3719 = vpop.f32.mrf.mxu0
      %3720 = vmatprep.mubr.f32.mxu0 0.0
      %3721 = vmatmul.mubr.f32.gmra.mxu0 %v3631
      %v3722 = vpop.f32.mrf.mxu0
      %v3723 = vadd.f32 0.0, %v3722
      %v3724 = vpop.f32.mrf.mxu0
      %3725 = vmatprep.mubr.f32.mxu0 0.0
      %3726 = vmatmul.mubr.f32.gmra.mxu0 %v3634
      %v3727 = vpop.f32.mrf.mxu0
      %v3728 = vadd.f32 0.0, %v3727
      %v3729 = vpop.f32.mrf.mxu0
      %3730 = vmatprep.mubr.f32.mxu0 0.0
      %3731 = vmatmul.mubr.f32.gmra.mxu0 %v3637
      %v3732 = vpop.f32.mrf.mxu0
      %v3733 = vadd.f32 0.0, %v3732
      %v3734 = vpop.f32.mrf.mxu0
      %3735 = vmatprep.mubr.f32.mxu0 0.0
      %3736 = vmatmul.mubr.f32.gmra.mxu0 %v3640
      %v3737 = vpop.f32.mrf.mxu0
      %v3738 = vadd.f32 0.0, %v3737
      %v3739 = vpop.f32.mrf.mxu0
      %3740 = vmatprep.mubr.f32.mxu0 0.0
      %3741 = vmatmul.mubr.f32.gmra.mxu0 %v3643
      %v3742 = vpop.f32.mrf.mxu0
      %v3743 = vadd.f32 0.0, %v3742
      %v3744 = vpop.f32.mrf.mxu0
      %3745 = vmatprep.mubr.f32.mxu0 0.0
      %3746 = vmatmul.mubr.f32.gmra.mxu0 %v3646
      %v3747 = vpop.f32.mrf.mxu0
      %v3748 = vadd.f32 0.0, %v3747
      %v3749 = vpop.f32.mrf.mxu0
      %3750 = vmatprep.mubr.f32.mxu0 0.0
      %3751 = vmatmul.mubr.f32.gmra.mxu0 %v3649
      %v3752 = vpop.f32.mrf.mxu0
      %v3753 = vadd.f32 0.0, %v3752
      %v3754 = vpop.f32.mrf.mxu0
      %3755 = vdwg.mxu0
      %v3756 = vadd.f32 %v3608, %v3718
      %v3757 = vadd.f32 %v3609, %v3723
      %v3758 = vadd.f32 %v3610, %v3728
      %v3759 = vadd.f32 %v3611, %v3733
      %v3760 = vadd.f32 %v3612, %v3738
      %v3761 = vadd.f32 %v3613, %v3743
      %v3762 = vadd.f32 %v3614, %v3748
      %v3763 = vadd.f32 %v3615, %v3753
      %v3764 = vld [vmem:[%s3616 + $0x1] sm:$0xff]
      %v3765 = vld [vmem:[%s3616 + $0x9] sm:$0xff]
      %v3766 = vld [vmem:[%s3616 + $0x19] sm:$0xff]
      %v3767 = vld [vmem:[%s3616 + $0x21] sm:$0xff]
      %v3768 = vld [vmem:[%s3616 + $0x31] sm:$0xff]
      %v3769 = vld [vmem:[%s3616 + $0x39] sm:$0xff]
      %v3770 = vld [vmem:[%s3616 + $0x49] sm:$0xff]
      %v3771 = vld [vmem:[%s3616 + $0x51] sm:$0xff]
      %s3772 = scalar_lea.vmem %s7, 56
      %v3773 = vld [vmem:[%s3772] sm:$0xff]
      %v3775 = vsel %vm385, %v3764, 0
      %v3778 = vsel %vm385, %v3765, 0
      %v3781 = vsel %vm385, %v3766, 0
      %v3784 = vsel %vm385, %v3767, 0
      %v3787 = vsel %vm385, %v3768, 0
      %v3790 = vsel %vm385, %v3769, 0
      %v3793 = vsel %vm385, %v3770, 0
      %v3796 = vsel %vm385, %v3771, 0
      %3798 = vmatprep.subr.mxu0 0.0
      %3799 = vmatpush1.msra.mxu0 0.0
      %3800 = vmatprep.subr.mxu0 0.0
      %3801 = vmatpush1.msra.mxu0 0.0
      %3802 = vmatprep.subr.mxu0 0.0
      %3803 = vmatpush1.msra.mxu0 0.0
      %3804 = vmatprep.subr.mxu0 0.0
      %3805 = vmatpush1.msra.mxu0 0.0
      %3806 = vmatprep.subr.mxu0 0.0
      %3807 = vmatpush1.msra.mxu0 0.0
      %3808 = vmatprep.subr.mxu0 0.0
      %3809 = vmatpush1.msra.mxu0 0.0
      %3810 = vmatprep.subr.mxu0 0.0
      %3811 = vmatpush1.msra.mxu0 0.0
      %3812 = vmatprep.subr.mxu0 0.0
      %3813 = vmatpush1.msra.mxu0 0.0
      %3814 = vmatprep.subr.mxu0 0.0
      %3815 = vmatpush1.msra.mxu0 0.0
      %3816 = vmatprep.subr.mxu0 0.0
      %3817 = vmatpush1.msra.mxu0 0.0
      %3818 = vmatprep.subr.mxu0 0.0
      %3819 = vmatpush1.msra.mxu0 0.0
      %3820 = vmatprep.subr.mxu0 0.0
      %3821 = vmatpush1.msra.mxu0 0.0
      %3822 = vmatprep.subr.mxu0 0.0
      %3823 = vmatpush1.msra.mxu0 0.0
      %3824 = vmatprep.subr.mxu0 0.0
      %3825 = vmatpush1.msra.mxu0 0.0
      %3826 = vmatprep.subr.mxu0 0.0
      %3827 = vmatpush1.msra.mxu0 0.0
      %3828 = vmatprep.subr.mxu0 0.0
      %3829 = vmatpush1.msra.mxu0 %v3773
      %3830 = vmatprep.subr.mxu0 0.0
      %3831 = vmatpush2.msra.mxu0 0.0
      %3832 = vmatprep.subr.mxu0 0.0
      %3833 = vmatpush2.msra.mxu0 0.0
      %3834 = vmatprep.subr.mxu0 0.0
      %3835 = vmatpush2.msra.mxu0 0.0
      %3836 = vmatprep.subr.mxu0 0.0
      %3837 = vmatpush2.msra.mxu0 0.0
      %3838 = vmatprep.subr.mxu0 0.0
      %3839 = vmatpush2.msra.mxu0 0.0
      %3840 = vmatprep.subr.mxu0 0.0
      %3841 = vmatpush2.msra.mxu0 0.0
      %3842 = vmatprep.subr.mxu0 0.0
      %3843 = vmatpush2.msra.mxu0 0.0
      %3844 = vmatprep.subr.mxu0 0.0
      %3845 = vmatpush2.msra.mxu0 0.0
      %3846 = vmatprep.subr.mxu0 0.0
      %3847 = vmatpush2.msra.mxu0 0.0
      %3848 = vmatprep.subr.mxu0 0.0
      %3849 = vmatpush2.msra.mxu0 0.0
      %3850 = vmatprep.subr.mxu0 0.0
      %3851 = vmatpush2.msra.mxu0 0.0
      %3852 = vmatprep.subr.mxu0 0.0
      %3853 = vmatpush2.msra.mxu0 0.0
      %3854 = vmatprep.subr.mxu0 0.0
      %3855 = vmatpush2.msra.mxu0 0.0
      %3856 = vmatprep.subr.mxu0 0.0
      %3857 = vmatpush2.msra.mxu0 0.0
      %3858 = vmatprep.subr.mxu0 0.0
      %3859 = vmatpush2.msra.mxu0 0.0
      %3860 = vmatprep.subr.mxu0 0.0
      %3861 = vmatpush2.msra.mxu0 0.0
      %3862 = vmatprep.mubr.f32.mxu0 0.0
      %3863 = vmatmul.mubr.f32.gmra.mxu0 %v3775
      %v3864 = vpop.f32.mrf.mxu0
      %v3865 = vadd.f32 0.0, %v3864
      %v3866 = vpop.f32.mrf.mxu0
      %3867 = vmatprep.mubr.f32.mxu0 0.0
      %3868 = vmatmul.mubr.f32.gmra.mxu0 %v3778
      %v3869 = vpop.f32.mrf.mxu0
      %v3870 = vadd.f32 0.0, %v3869
      %v3871 = vpop.f32.mrf.mxu0
      %3872 = vmatprep.mubr.f32.mxu0 0.0
      %3873 = vmatmul.mubr.f32.gmra.mxu0 %v3781
      %v3874 = vpop.f32.mrf.mxu0
      %v3875 = vadd.f32 0.0, %v3874
      %v3876 = vpop.f32.mrf.mxu0
      %3877 = vmatprep.mubr.f32.mxu0 0.0
      %3878 = vmatmul.mubr.f32.gmra.mxu0 %v3784
      %v3879 = vpop.f32.mrf.mxu0
      %v3880 = vadd.f32 0.0, %v3879
      %v3881 = vpop.f32.mrf.mxu0
      %3882 = vmatprep.mubr.f32.mxu0 0.0
      %3883 = vmatmul.mubr.f32.gmra.mxu0 %v3787
      %v3884 = vpop.f32.mrf.mxu0
      %v3885 = vadd.f32 0.0, %v3884
      %v3886 = vpop.f32.mrf.mxu0
      %3887 = vmatprep.mubr.f32.mxu0 0.0
      %3888 = vmatmul.mubr.f32.gmra.mxu0 %v3790
      %v3889 = vpop.f32.mrf.mxu0
      %v3890 = vadd.f32 0.0, %v3889
      %v3891 = vpop.f32.mrf.mxu0
      %3892 = vmatprep.mubr.f32.mxu0 0.0
      %3893 = vmatmul.mubr.f32.gmra.mxu0 %v3793
      %v3894 = vpop.f32.mrf.mxu0
      %v3895 = vadd.f32 0.0, %v3894
      %v3896 = vpop.f32.mrf.mxu0
      %3897 = vmatprep.mubr.f32.mxu0 0.0
      %3898 = vmatmul.mubr.f32.gmra.mxu0 %v3796
      %v3899 = vpop.f32.mrf.mxu0
      %v3900 = vadd.f32 0.0, %v3899
      %v3901 = vpop.f32.mrf.mxu0
      %3902 = vdwg.mxu0
      %v3903 = vadd.f32 %v3756, %v3865
      %v3904 = vadd.f32 %v3757, %v3870
      %v3905 = vadd.f32 %v3758, %v3875
      %v3906 = vadd.f32 %v3759, %v3880
      %v3907 = vadd.f32 %v3760, %v3885
      %v3908 = vadd.f32 %v3761, %v3890
      %v3909 = vadd.f32 %v3762, %v3895
      %v3910 = vadd.f32 %v3763, %v3900
      %v3911 = vld [vmem:[%s3616 + $0x2] sm:$0xff]
      %v3912 = vld [vmem:[%s3616 + $0xa] sm:$0xff]
      %v3913 = vld [vmem:[%s3616 + $0x1a] sm:$0xff]
      %v3914 = vld [vmem:[%s3616 + $0x22] sm:$0xff]
      %v3915 = vld [vmem:[%s3616 + $0x32] sm:$0xff]
      %v3916 = vld [vmem:[%s3616 + $0x3a] sm:$0xff]
      %v3917 = vld [vmem:[%s3616 + $0x4a] sm:$0xff]
      %v3918 = vld [vmem:[%s3616 + $0x52] sm:$0xff]
      %s3919 = scalar_lea.vmem %s7, 64
      %v3920 = vld [vmem:[%s3919] sm:$0xff]
      %v3922 = vsel %vm385, %v3911, 0
      %v3925 = vsel %vm385, %v3912, 0
      %v3928 = vsel %vm385, %v3913, 0
      %v3931 = vsel %vm385, %v3914, 0
      %v3934 = vsel %vm385, %v3915, 0
      %v3937 = vsel %vm385, %v3916, 0
      %v3940 = vsel %vm385, %v3917, 0
      %v3943 = vsel %vm385, %v3918, 0
      %3945 = vmatprep.subr.mxu0 0.0
      %3946 = vmatpush1.msra.mxu0 0.0
      %3947 = vmatprep.subr.mxu0 0.0
      %3948 = vmatpush1.msra.mxu0 0.0
      %3949 = vmatprep.subr.mxu0 0.0
      %3950 = vmatpush1.msra.mxu0 0.0
      %3951 = vmatprep.subr.mxu0 0.0
      %3952 = vmatpush1.msra.mxu0 0.0
      %3953 = vmatprep.subr.mxu0 0.0
      %3954 = vmatpush1.msra.mxu0 0.0
      %3955 = vmatprep.subr.mxu0 0.0
      %3956 = vmatpush1.msra.mxu0 0.0
      %3957 = vmatprep.subr.mxu0 0.0
      %3958 = vmatpush1.msra.mxu0 0.0
      %3959 = vmatprep.subr.mxu0 0.0
      %3960 = vmatpush1.msra.mxu0 0.0
      %3961 = vmatprep.subr.mxu0 0.0
      %3962 = vmatpush1.msra.mxu0 0.0
      %3963 = vmatprep.subr.mxu0 0.0
      %3964 = vmatpush1.msra.mxu0 0.0
      %3965 = vmatprep.subr.mxu0 0.0
      %3966 = vmatpush1.msra.mxu0 0.0
      %3967 = vmatprep.subr.mxu0 0.0
      %3968 = vmatpush1.msra.mxu0 0.0
      %3969 = vmatprep.subr.mxu0 0.0
      %3970 = vmatpush1.msra.mxu0 0.0
      %3971 = vmatprep.subr.mxu0 0.0
      %3972 = vmatpush1.msra.mxu0 0.0
      %3973 = vmatprep.subr.mxu0 0.0
      %3974 = vmatpush1.msra.mxu0 0.0
      %3975 = vmatprep.subr.mxu0 0.0
      %3976 = vmatpush1.msra.mxu0 %v3920
      %3977 = vmatprep.subr.mxu0 0.0
      %3978 = vmatpush2.msra.mxu0 0.0
      %3979 = vmatprep.subr.mxu0 0.0
      %3980 = vmatpush2.msra.mxu0 0.0
      %3981 = vmatprep.subr.mxu0 0.0
      %3982 = vmatpush2.msra.mxu0 0.0
      %3983 = vmatprep.subr.mxu0 0.0
      %3984 = vmatpush2.msra.mxu0 0.0
      %3985 = vmatprep.subr.mxu0 0.0
      %3986 = vmatpush2.msra.mxu0 0.0
      %3987 = vmatprep.subr.mxu0 0.0
      %3988 = vmatpush2.msra.mxu0 0.0
      %3989 = vmatprep.subr.mxu0 0.0
      %3990 = vmatpush2.msra.mxu0 0.0
      %3991 = vmatprep.subr.mxu0 0.0
      %3992 = vmatpush2.msra.mxu0 0.0
      %3993 = vmatprep.subr.mxu0 0.0
      %3994 = vmatpush2.msra.mxu0 0.0
      %3995 = vmatprep.subr.mxu0 0.0
      %3996 = vmatpush2.msra.mxu0 0.0
      %3997 = vmatprep.subr.mxu0 0.0
      %3998 = vmatpush2.msra.mxu0 0.0
      %3999 = vmatprep.subr.mxu0 0.0
      %4000 = vmatpush2.msra.mxu0 0.0
      %4001 = vmatprep.subr.mxu0 0.0
      %4002 = vmatpush2.msra.mxu0 0.0
      %4003 = vmatprep.subr.mxu0 0.0
      %4004 = vmatpush2.msra.mxu0 0.0
      %4005 = vmatprep.subr.mxu0 0.0
      %4006 = vmatpush2.msra.mxu0 0.0
      %4007 = vmatprep.subr.mxu0 0.0
      %4008 = vmatpush2.msra.mxu0 0.0
      %4009 = vmatprep.mubr.f32.mxu0 0.0
      %4010 = vmatmul.mubr.f32.gmra.mxu0 %v3922
      %v4011 = vpop.f32.mrf.mxu0
      %v4012 = vadd.f32 0.0, %v4011
      %v4013 = vpop.f32.mrf.mxu0
      %4014 = vmatprep.mubr.f32.mxu0 0.0
      %4015 = vmatmul.mubr.f32.gmra.mxu0 %v3925
      %v4016 = vpop.f32.mrf.mxu0
      %v4017 = vadd.f32 0.0, %v4016
      %v4018 = vpop.f32.mrf.mxu0
      %4019 = vmatprep.mubr.f32.mxu0 0.0
      %4020 = vmatmul.mubr.f32.gmra.mxu0 %v3928
      %v4021 = vpop.f32.mrf.mxu0
      %v4022 = vadd.f32 0.0, %v4021
      %v4023 = vpop.f32.mrf.mxu0
      %4024 = vmatprep.mubr.f32.mxu0 0.0
      %4025 = vmatmul.mubr.f32.gmra.mxu0 %v3931
      %v4026 = vpop.f32.mrf.mxu0
      %v4027 = vadd.f32 0.0, %v4026
      %v4028 = vpop.f32.mrf.mxu0
      %4029 = vmatprep.mubr.f32.mxu0 0.0
      %4030 = vmatmul.mubr.f32.gmra.mxu0 %v3934
      %v4031 = vpop.f32.mrf.mxu0
      %v4032 = vadd.f32 0.0, %v4031
      %v4033 = vpop.f32.mrf.mxu0
      %4034 = vmatprep.mubr.f32.mxu0 0.0
      %4035 = vmatmul.mubr.f32.gmra.mxu0 %v3937
      %v4036 = vpop.f32.mrf.mxu0
      %v4037 = vadd.f32 0.0, %v4036
      %v4038 = vpop.f32.mrf.mxu0
      %4039 = vmatprep.mubr.f32.mxu0 0.0
      %4040 = vmatmul.mubr.f32.gmra.mxu0 %v3940
      %v4041 = vpop.f32.mrf.mxu0
      %v4042 = vadd.f32 0.0, %v4041
      %v4043 = vpop.f32.mrf.mxu0
      %4044 = vmatprep.mubr.f32.mxu0 0.0
      %4045 = vmatmul.mubr.f32.gmra.mxu0 %v3943
      %v4046 = vpop.f32.mrf.mxu0
      %v4047 = vadd.f32 0.0, %v4046
      %v4048 = vpop.f32.mrf.mxu0
      %4049 = vdwg.mxu0
      %v4050 = vadd.f32 %v3903, %v4012
      %v4051 = vadd.f32 %v3904, %v4017
      %v4052 = vadd.f32 %v3905, %v4022
      %v4053 = vadd.f32 %v3906, %v4027
      %v4054 = vadd.f32 %v3907, %v4032
      %v4055 = vadd.f32 %v3908, %v4037
      %v4056 = vadd.f32 %v3909, %v4042
      %v4057 = vadd.f32 %v3910, %v4047
      %v4058 = vld [vmem:[%s8] sm:$0x1]
      %v4060 = vlaneseq
      %v4061 = vshrl.u32 %v4060, 7
      %v4062 = vsub.s32 0, %v4061
      %v4063 = vrot.slane %v4058, %v4062
      %v4065 = vadd.f32 %v4050, %v4063
      %v4066 = vadd.f32 %v4051, %v4063
      %v4067 = vadd.f32 %v4052, %v4063
      %v4068 = vadd.f32 %v4053, %v4063
      %v4069 = vadd.f32 %v4054, %v4063
      %v4070 = vadd.f32 %v4055, %v4063
      %v4071 = vadd.f32 %v4056, %v4063
      %v4072 = vadd.f32 %v4057, %v4063
      %vm4073 = vcmp.ge.f32.partialorder %v4065, 0.0
      %vm4074 = vcmp.ge.f32.partialorder %v4066, 0.0
      %vm4075 = vcmp.ge.f32.partialorder %v4067, 0.0
      %vm4076 = vcmp.ge.f32.partialorder %v4068, 0.0
      %vm4077 = vcmp.ge.f32.partialorder %v4069, 0.0
      %vm4078 = vcmp.ge.f32.partialorder %v4070, 0.0
      %vm4079 = vcmp.ge.f32.partialorder %v4071, 0.0
      %vm4080 = vcmp.ge.f32.partialorder %v4072, 0.0
      %v4081 = vmul.f32 %v4065, 0.2
      %v4082 = vmul.f32 %v4066, 0.2
      %v4083 = vmul.f32 %v4067, 0.2
      %v4084 = vmul.f32 %v4068, 0.2
      %v4085 = vmul.f32 %v4069, 0.2
      %v4086 = vmul.f32 %v4070, 0.2
      %v4087 = vmul.f32 %v4071, 0.2
      %v4088 = vmul.f32 %v4072, 0.2
      %v4089 = vsel %vm4073, %v4065, %v4081
      %v4090 = vsel %vm4074, %v4066, %v4082
      %v4091 = vsel %vm4075, %v4067, %v4083
      %v4092 = vsel %vm4076, %v4068, %v4084
      %v4093 = vsel %vm4077, %v4069, %v4085
      %v4094 = vsel %vm4078, %v4070, %v4086
      %v4095 = vsel %vm4079, %v4071, %v4087
      %v4096 = vsel %vm4080, %v4072, %v4088
      %4097 = vst.msk [vmem:[%s356] sm:$0xff] %vm385, %v4089
      %4098 = vst.msk [vmem:[%s356 + $0x8] sm:$0xff] %vm385, %v4090
      %4099 = vst.msk [vmem:[%s356 + $0x10] sm:$0xff] %vm385, %v4091
      %4100 = vst.msk [vmem:[%s356 + $0x18] sm:$0xff] %vm385, %v4092
      %4101 = vst.msk [vmem:[%s356 + $0x20] sm:$0xff] %vm385, %v4093
      %4102 = vst.msk [vmem:[%s356 + $0x28] sm:$0xff] %vm385, %v4094
      %4103 = vst.msk [vmem:[%s356 + $0x30] sm:$0xff] %vm385, %v4095
      %4104 = vst.msk [vmem:[%s356 + $0x38] sm:$0xff] %vm385, %v4096
      %s4105 = smul.u32 4, %s25
      %p4106 = scmp.lt.s32.totalorder %s24, 1
      %s4107 = scalar_select %p4106, %s24, 1
      %p4108 = scmp.lt.s32.totalorder %s4105, 15
      %s4109 = scalar_select %p4108, %s4105, 15
      %s4110 = smul.addr %s4109, 2
      %s4111 = smul.addr %s4107, 32
      %s4112 = sadd.s32 %s4110, %s4111
      %s4113 = smul.addr %s4112, 8
      %s4114 = scalar_lea.vmem %s9, %s4113
      // Predicated region
      $region65: #{tpu_custom_call.1} parent=55 // pred_check
        %p4115 = pneg %p246
      $region66: #{tpu_custom_call.1} parent=55 // pred_check_branch
        %4117 = sbr.rel (%p4115) target = $region68
      $region67: #{tpu_custom_call.1} parent=55 // pred_region
        %s4118 = smul.u32 4, %s25
      $region68: #{tpu_custom_call.1} parent=55 // pred_fallthru
        _
    $region56: #{tpu_custom_call.1} parent=5 // pred_fallthru
      _
    %p4119 = scmp.le.s32.totalorder 2, %s15
    // Predicated region
    $region69: #{tpu_custom_call.1} parent=5 // pred_check
      %p4120 = pneg %p4119
    $region70: #{tpu_custom_call.1} parent=5 // pred_check_branch
      %4122 = sbr.rel (%p4120) target = $region72
    $region71: #{tpu_custom_call.1} parent=5 // pred_region
      %s4123 = ssub.s32 %s15, 2
      // Predicated region
      $region73: #{tpu_custom_call.1} parent=71 // pred_check
        %p4124 = pneg %p252
      $region74: #{tpu_custom_call.1} parent=71 // pred_check_branch
        %4126 = sbr.rel (%p4124) target = $region76
      $region75: #{tpu_custom_call.1} parent=71 // pred_region
        %s4127 = smul.u32 4, %s27
        %p4128 = scmp.lt.s32.totalorder %s26, 1
        %s4129 = scalar_select %p4128, %s26, 1
        %p4130 = scmp.lt.s32.totalorder %s4127, 15
        %s4131 = scalar_select %p4130, %s4127, 15
        %s4132 = smul.addr %s4131, 2
        %s4133 = smul.addr %s4129, 32
        %s4134 = sadd.s32 %s4132, %s4133
        %s4135 = smul.addr %s4134, 8
        %s4136 = scalar_lea.vmem %s9, %s4135
      $region76: #{tpu_custom_call.1} parent=71 // pred_fallthru
        _
    $region72: #{tpu_custom_call.1} parent=5 // pred_fallthru
      _
  $region6: #{tpu_custom_call.1} parent=0 // loop_footer
    %s19 = sadd.s32 1, %s15
  $region7: #{tpu_custom_call.1} parent=0 // loop_footer_branch
    %14 = sbr.rel target = $region3
  $region8: #{tpu_custom_call.1} parent=0 // loop_exit
    _

</llo_original>
